<compile_context>
chip_gen: v5e
topology: v5e:2x2
jax: 0.10.0
libtpu: 0.0.40
codegen_flags: <defaults>
</compile_context>

<pallas_src>
import functools
import math

import jax
import jax.numpy as jnp
from jax.experimental import pallas as pl
from jax.experimental.pallas import tpu as pltpu


# TranAD's custom TransformerEncoderLayer / TransformerDecoderLayer (dlutils.py) use
# nn.MultiheadAttention + a 2-layer FFN with *no* LayerNorm and a LeakyReLU activation.
# TODO(synk): TranAD builds the activation as nn.LeakyReLU(True), which PyTorch parses
#             as negative_slope=True (== 1.0, i.e. identity); the intended 0.01 slope
#             is used here.
LEAKY_SLOPE = 0.01

PARAM_ORDER = (
    # encoder layer: self-attention + FFN
    "e_wq", "e_bq", "e_wk", "e_bk", "e_wv", "e_bv", "e_wo", "e_bo",
    "e_w1", "e_b1", "e_w2", "e_b2",
    # decoder layer: self-attention
    "ds_wq", "ds_bq", "ds_wk", "ds_bk", "ds_wv", "ds_bv", "ds_wo", "ds_bo",
    # decoder layer: cross-attention
    "dc_wq", "dc_bq", "dc_wk", "dc_bk", "dc_wv", "dc_bv", "dc_wo", "dc_bo",
    # decoder layer: FFN
    "d_w1", "d_b1", "d_w2", "d_b2",
    # final fcn = Linear(2*feats, feats) + Sigmoid
    "f_w", "f_b",
)


# --------------------------------------------------------------------------- kernel

def _linear(x2d, w, b):
    # Weights are pre-transposed on host: y = x @ W + b (no in-kernel transposes).
    return jnp.dot(x2d, w, preferred_element_type=jnp.float32) + b


def _leaky_relu(x):
    return jnp.where(x >= 0.0, x, LEAKY_SLOPE * x)


def _softmax_last(s):
    s = s - jnp.max(s, axis=-1, keepdims=True)
    p = jnp.exp(s)
    # divide -> EUP reciprocal (VALU stays free for the surrounding elementwise work)
    return p * pl.reciprocal(jnp.sum(p, axis=-1, keepdims=True), approx=True)


def _mha(x_q, x_kv, P, pre, hmask_exp):
    """nn.MultiheadAttention(d_model, n_heads) in eval mode, all heads at once.

    x_q: (B, Lq, D) queries; x_kv: (B, Lk, D) keys/values.  The 1/sqrt(head_dim)
    scale is already folded into P[pre+'wq'] / P[pre+'bq'].

    Heads are stacked along the row axis: hmask_exp is a host-built (H*Lq, D) 0/1
    mask whose row h*Lq+i is head h's channel mask.  Replicating q H times along the
    row axis and masking yields a (B, H*Lq, D) query whose single full-width matmul
    against K produces every head's score matrix at once (masked q keeps only head
    h's channels, so the D-wide contraction equals the per-head contraction).  The
    context matmul is likewise a single matmul; the masked per-head contexts are
    summed back into their channel slots.
    """
    B, Lq, D = x_q.shape
    Lk = x_kv.shape[1]
    H = hmask_exp.shape[0] // Lq

    q = _linear(x_q.reshape(B * Lq, D), P[pre + "wq"], P[pre + "bq"]).reshape(B, Lq, D)
    k = _linear(x_kv.reshape(B * Lk, D), P[pre + "wk"], P[pre + "bk"]).reshape(B, Lk, D)
    v = _linear(x_kv.reshape(B * Lk, D), P[pre + "wv"], P[pre + "bv"]).reshape(B, Lk, D)

    q_stack = jnp.concatenate([q] * H, axis=1) if H > 1 else q       # (B, H*Lq, D)
    q_stack = q_stack * hmask_exp[None, :, :]

    s = jnp.einsum("bnd,bkd->bnk", q_stack, k,
                   preferred_element_type=jnp.float32)               # (B, H*Lq, Lk)
    p = _softmax_last(s)
    ctx_stack = jnp.einsum("bnk,bkd->bnd", p, v,
                           preferred_element_type=jnp.float32)       # (B, H*Lq, D)
    ctx_stack = ctx_stack * hmask_exp[None, :, :]

    ctx = ctx_stack[:, 0:Lq, :]
    for h in range(1, H):                     # static unroll; cheap VALU adds
        ctx = ctx + ctx_stack[:, h * Lq:(h + 1) * Lq, :]

    return _linear(ctx.reshape(B * Lq, D), P[pre + "wo"], P[pre + "bo"]).reshape(B, Lq, D)


def _ffn(x, w1, b1, w2, b2):
    B, L, D = x.shape
    h = _leaky_relu(_linear(x.reshape(B * L, D), w1, b1))
    return _linear(h, w2, b2).reshape(B, L, D)


def _encoder_layer(x, P, hmask_exp):
    # src = src + self_attn(src); src = src + FFN(src)      (no LayerNorm in TranAD)
    x = x + _mha(x, x, P, "e_", hmask_exp)
    return x + _ffn(x, P["e_w1"], P["e_b1"], P["e_w2"], P["e_b2"])


def _decoder_layer(t, mem, P, hmask_exp_t):
    t = t + _mha(t, t, P, "ds_", hmask_exp_t)      # tgt self-attention
    t = t + _mha(t, mem, P, "dc_", hmask_exp_t)    # cross-attention over encoder memory
    return t + _ffn(t, P["d_w1"], P["d_b1"], P["d_w2"], P["d_b2"])


def tranad_adversarial_kernel(src_ref, tgt_ref, pe_ref, hml_ref, hmt_ref, *rest):
    out_ref = rest[-1]
    param_refs = rest[:-1]
    P = {name: ref[...] for name, ref in zip(PARAM_ORDER, param_refs)}

    src = src_ref[...]        # (B, L, F)    batch-major (transposed on host)
    tgt2 = tgt_ref[...]       # (B, Lt, D)   == tgt.repeat(1, 1, 2) (built on host)
    pe = pe_ref[...]          # (L, D)       sinusoidal table (built on host)
    hmask_l = hml_ref[...]    # (H*L, D)     per-(head, query-pos) channel masks (encoder)
    hmask_t = hmt_ref[...]    # (H*Lt, D)    per-(head, query-pos) channel masks (decoder)

    B, L, F = src.shape
    Lt = tgt2.shape[1]
    scale = math.sqrt(F)      # src * sqrt(n_feats) inside encode_decode

    def encode_decode(c):
        s = jnp.concatenate([src, c], axis=-1) * scale + pe          # (B, L, D)
        mem = _encoder_layer(s, P, hmask_l)
        t = _decoder_layer(tgt2, mem, P, hmask_t)
        D = t.shape[-1]
        y = _linear(t.reshape(B * Lt, D), P["f_w"], P["f_b"])
        y = 1.0 / (1.0 + jnp.exp(-y))                                # Sigmoid
        return y.reshape(B, Lt, F)

    # TODO(synk): dropout layers (p=0.1) are stochastic in training; eval-mode
    #             identity is implemented here.
    x1 = encode_decode(jnp.zeros_like(src))   # pass 1: c = 0
    c = (x1 - src) ** 2                       # (B, Lt, F) broadcasts against (B, L, F)
    out_ref[...] = encode_decode(c)           # pass 2 is the module's output


# -------------------------------------------------------------------------- wrapper

def _positional_encoding(length, d_model):
    # TranAD dlutils.PositionalEncoding: pe = sin(pos*div) + cos(pos*div), div over all dims.
    pos = jnp.arange(length, dtype=jnp.float32)[:, None]
    div = jnp.exp(jnp.arange(d_model, dtype=jnp.float32) * (-math.log(10000.0) / d_model))
    ang = pos * div[None, :]
    return jnp.sin(ang) + jnp.cos(ang)


def _head_mask(n_heads, d_model):
    head_dim = d_model // n_heads
    owner = jnp.arange(d_model, dtype=jnp.int32) // head_dim
    return (owner[None, :] == jnp.arange(n_heads, dtype=jnp.int32)[:, None]).astype(jnp.float32)


def _cost_estimate(B, L, Lt, F, D, dff, H, inputs, out_nbytes):
    mm = lambda m, k, n: 2 * m * k * n
    enc = (4 * mm(B * L, D, D) + B * (mm(H * L, D, L) + mm(H * L, L, D))
           + mm(B * L, D, dff) + mm(B * L, dff, D))
    dec_self = 4 * mm(B * Lt, D, D) + B * (mm(H * Lt, D, Lt) + mm(H * Lt, Lt, D))
    dec_cross = (2 * mm(B * Lt, D, D) + 2 * mm(B * L, D, D)
                 + B * (mm(H * Lt, D, L) + mm(H * Lt, L, D)))
    dec_ffn = mm(B * Lt, D, dff) + mm(B * Lt, dff, D)
    fcn = mm(B * Lt, D, F)
    flops = 2 * (enc + dec_self + dec_cross + dec_ffn + fcn)
    trans = 2 * (B * H * (L * L + Lt * Lt + Lt * L) + B * Lt * F)
    nbytes = int(sum(x.size * x.dtype.itemsize for x in inputs)) + int(out_nbytes)
    return pl.CostEstimate(flops=int(flops), transcendentals=int(trans),
                           bytes_accessed=nbytes)


@functools.partial(jax.jit, static_argnames=("n_heads",))
def tranad_adversarial_forward(src, tgt, params, *, n_heads):
    """src: (L, B, feats), tgt: (Lt, B, feats) in PyTorch seq-first layout.
    Returns x of shape (Lt, B, feats): the second encode_decode pass."""
    L, B, F = src.shape
    Lt = tgt.shape[0]
    D = 2 * F
    dff = params["e_w1"].shape[1]

    # Host-side (free) layout work: batch-major activations, tgt.repeat(1,1,2),
    # positional-encoding table and stacked-head channel masks.
    src_b = jnp.transpose(src, (1, 0, 2))                    # (B, L, F)
    tgt_b = jnp.transpose(tgt, (1, 0, 2))                    # (B, Lt, F)
    tgt_rep = jnp.concatenate([tgt_b, tgt_b], axis=-1)       # (B, Lt, D)
    pe = _positional_encoding(L, D)
    hmask = _head_mask(n_heads, D)                           # (H, D)
    hmask_l = jnp.repeat(hmask, L, axis=0)                   # (H*L, D)  row h*L+i -> head h
    hmask_t = jnp.repeat(hmask, Lt, axis=0)                  # (H*Lt, D)

    inputs = [src_b, tgt_rep, pe, hmask_l, hmask_t] + [params[k] for k in PARAM_ORDER]
    vmem = pl.BlockSpec(memory_space=pltpu.MemorySpace.VMEM)  # whole-array VMEM blocks

    out = pl.pallas_call(
        tranad_adversarial_kernel,
        out_shape=jax.ShapeDtypeStruct((B, Lt, F), jnp.float32),
        in_specs=[vmem] * len(inputs),
        out_specs=vmem,
        compiler_params=pltpu.CompilerParams(vmem_limit_bytes=32 * 1024 * 1024),
        cost_estimate=_cost_estimate(B, L, Lt, F, D, dff, n_heads, inputs,
                                     B * Lt * F * 4),
    )(*inputs)
    return jnp.transpose(out, (1, 0, 2))                     # back to (Lt, B, feats)


# --------------------------------------------------------------- parameter plumbing

def init_torch_params(key, feats, d_ff=16):
    """Parameters in native PyTorch layouts (Linear weight = (out, in),
    MultiheadAttention in_proj_weight = (3*D, D))."""
    D = 2 * feats
    keys = iter(jax.random.split(key, 32))

    def rnd(shape, scale):
        return jax.random.normal(next(keys), shape, jnp.float32) * scale

    def mha():
        return {"in_w": rnd((3 * D, D), 1.0 / math.sqrt(D)),
                "in_b": rnd((3 * D,), 0.02),
                "out_w": rnd((D, D), 1.0 / math.sqrt(D)),
                "out_b": rnd((D,), 0.02)}

    return {
        "enc_attn": mha(),
        "enc_lin1_w": rnd((d_ff, D), 1.0 / math.sqrt(D)), "enc_lin1_b": rnd((d_ff,), 0.02),
        "enc_lin2_w": rnd((D, d_ff), 1.0 / math.sqrt(d_ff)), "enc_lin2_b": rnd((D,), 0.02),
        "dec_self_attn": mha(),
        "dec_cross_attn": mha(),
        "dec_lin1_w": rnd((d_ff, D), 1.0 / math.sqrt(D)), "dec_lin1_b": rnd((d_ff,), 0.02),
        "dec_lin2_w": rnd((D, d_ff), 1.0 / math.sqrt(d_ff)), "dec_lin2_b": rnd((D,), 0.02),
        "fcn_w": rnd((feats, D), 1.0 / math.sqrt(D)), "fcn_b": rnd((feats,), 0.02),
    }


def pack_params(tp, feats):
    """Convert PyTorch-layout params to the kernel layout:
       * weights pre-transposed so the kernel computes x @ W (no in-kernel .T),
       * biases reshaped to (1, N) 2-D arrays,
       * MultiheadAttention 1/sqrt(head_dim) query scale folded into Wq / bq."""
    D = 2 * feats
    q_scale = 1.0 / math.sqrt(D // feats)    # head_dim = 2
    out = {}

    def pack_mha(p, pre):
        wq, wk, wv = jnp.split(p["in_w"], 3, axis=0)
        bq, bk, bv = jnp.split(p["in_b"], 3, axis=0)
        out[pre + "wq"] = wq.T * q_scale
        out[pre + "bq"] = (bq * q_scale).reshape(1, D)
        out[pre + "wk"] = wk.T
        out[pre + "bk"] = bk.reshape(1, D)
        out[pre + "wv"] = wv.T
        out[pre + "bv"] = bv.reshape(1, D)
        out[pre + "wo"] = p["out_w"].T
        out[pre + "bo"] = p["out_b"].reshape(1, D)

    pack_mha(tp["enc_attn"], "e_")
    out["e_w1"] = tp["enc_lin1_w"].T
    out["e_b1"] = tp["enc_lin1_b"].reshape(1, -1)
    out["e_w2"] = tp["enc_lin2_w"].T
    out["e_b2"] = tp["enc_lin2_b"].reshape(1, -1)
    pack_mha(tp["dec_self_attn"], "ds_")
    pack_mha(tp["dec_cross_attn"], "dc_")
    out["d_w1"] = tp["dec_lin1_w"].T
    out["d_b1"] = tp["dec_lin1_b"].reshape(1, -1)
    out["d_w2"] = tp["dec_lin2_w"].T
    out["d_b2"] = tp["dec_lin2_b"].reshape(1, -1)
    out["f_w"] = tp["fcn_w"].T
    out["f_b"] = tp["fcn_b"].reshape(1, -1)
    return out


if __name__ == "__main__":
    feats = 8          # n_feats -> d_model = 16, nhead = feats = 8, head_dim = 2
    n_window = 10      # fixed by the module
    batch = 2
    d_ff = 16          # dim_feedforward fixed by the module

    key = jax.random.PRNGKey(0)
    k_src, k_par = jax.random.split(key)
    src = jax.random.normal(k_src, (n_window, batch, feats), jnp.float32)
    tgt = src[-1:, :, :]        # last timestep (1, B, feats), as in TranAD training

    params = pack_params(init_torch_params(k_par, feats, d_ff), feats)

    out = tranad_adversarial_forward(src, tgt, params, n_heads=feats)
    jax.block_until_ready(out)

    assert out.shape == (1, batch, feats)
    assert bool(jnp.all(jnp.isfinite(out)))
    print("KERNEL_OK")
</pallas_src>

<mosaic_0001>
module attributes {stable_mosaic.version = 11 : i64} {
  func.func @tranad_adversarial_kernel(%arg0: memref<2x10x8xf32, #tpu.memory_space<vmem>>, %arg1: memref<2x1x16xf32, #tpu.memory_space<vmem>>, %arg2: memref<10x16xf32, #tpu.memory_space<vmem>>, %arg3: memref<80x16xf32, #tpu.memory_space<vmem>>, %arg4: memref<8x16xf32, #tpu.memory_space<vmem>>, %arg5: memref<16x16xf32, #tpu.memory_space<vmem>>, %arg6: memref<1x16xf32, #tpu.memory_space<vmem>>, %arg7: memref<16x16xf32, #tpu.memory_space<vmem>>, %arg8: memref<1x16xf32, #tpu.memory_space<vmem>>, %arg9: memref<16x16xf32, #tpu.memory_space<vmem>>, %arg10: memref<1x16xf32, #tpu.memory_space<vmem>>, %arg11: memref<16x16xf32, #tpu.memory_space<vmem>>, %arg12: memref<1x16xf32, #tpu.memory_space<vmem>>, %arg13: memref<16x16xf32, #tpu.memory_space<vmem>>, %arg14: memref<1x16xf32, #tpu.memory_space<vmem>>, %arg15: memref<16x16xf32, #tpu.memory_space<vmem>>, %arg16: memref<1x16xf32, #tpu.memory_space<vmem>>, %arg17: memref<16x16xf32, #tpu.memory_space<vmem>>, %arg18: memref<1x16xf32, #tpu.memory_space<vmem>>, %arg19: memref<16x16xf32, #tpu.memory_space<vmem>>, %arg20: memref<1x16xf32, #tpu.memory_space<vmem>>, %arg21: memref<16x16xf32, #tpu.memory_space<vmem>>, %arg22: memref<1x16xf32, #tpu.memory_space<vmem>>, %arg23: memref<16x16xf32, #tpu.memory_space<vmem>>, %arg24: memref<1x16xf32, #tpu.memory_space<vmem>>, %arg25: memref<16x16xf32, #tpu.memory_space<vmem>>, %arg26: memref<1x16xf32, #tpu.memory_space<vmem>>, %arg27: memref<16x16xf32, #tpu.memory_space<vmem>>, %arg28: memref<1x16xf32, #tpu.memory_space<vmem>>, %arg29: memref<16x16xf32, #tpu.memory_space<vmem>>, %arg30: memref<1x16xf32, #tpu.memory_space<vmem>>, %arg31: memref<16x16xf32, #tpu.memory_space<vmem>>, %arg32: memref<1x16xf32, #tpu.memory_space<vmem>>, %arg33: memref<16x16xf32, #tpu.memory_space<vmem>>, %arg34: memref<1x16xf32, #tpu.memory_space<vmem>>, %arg35: memref<16x16xf32, #tpu.memory_space<vmem>>, %arg36: memref<1x16xf32, #tpu.memory_space<vmem>>, %arg37: memref<16x8xf32, #tpu.memory_space<vmem>>, %arg38: memref<1x8xf32, #tpu.memory_space<vmem>>, %arg39: memref<2x1x8xf32, #tpu.memory_space<vmem>>) attributes {dimension_semantics = [], scalar_prefetch = 0 : i64, scratch_operands = 0 : i64, tpu.core_type = #tpu.core_type<tc>} {
    %c0 = arith.constant 0 : index
    %c0_0 = arith.constant 0 : index
    %0 = vector.load %arg5[%c0, %c0_0] : memref<16x16xf32, #tpu.memory_space<vmem>>, vector<16x16xf32>
    %c0_1 = arith.constant 0 : index
    %c0_2 = arith.constant 0 : index
    %1 = vector.load %arg6[%c0_1, %c0_2] : memref<1x16xf32, #tpu.memory_space<vmem>>, vector<1x16xf32>
    %c0_3 = arith.constant 0 : index
    %c0_4 = arith.constant 0 : index
    %2 = vector.load %arg7[%c0_3, %c0_4] : memref<16x16xf32, #tpu.memory_space<vmem>>, vector<16x16xf32>
    %c0_5 = arith.constant 0 : index
    %c0_6 = arith.constant 0 : index
    %3 = vector.load %arg8[%c0_5, %c0_6] : memref<1x16xf32, #tpu.memory_space<vmem>>, vector<1x16xf32>
    %c0_7 = arith.constant 0 : index
    %c0_8 = arith.constant 0 : index
    %4 = vector.load %arg9[%c0_7, %c0_8] : memref<16x16xf32, #tpu.memory_space<vmem>>, vector<16x16xf32>
    %c0_9 = arith.constant 0 : index
    %c0_10 = arith.constant 0 : index
    %5 = vector.load %arg10[%c0_9, %c0_10] : memref<1x16xf32, #tpu.memory_space<vmem>>, vector<1x16xf32>
    %c0_11 = arith.constant 0 : index
    %c0_12 = arith.constant 0 : index
    %6 = vector.load %arg11[%c0_11, %c0_12] : memref<16x16xf32, #tpu.memory_space<vmem>>, vector<16x16xf32>
    %c0_13 = arith.constant 0 : index
    %c0_14 = arith.constant 0 : index
    %7 = vector.load %arg12[%c0_13, %c0_14] : memref<1x16xf32, #tpu.memory_space<vmem>>, vector<1x16xf32>
    %c0_15 = arith.constant 0 : index
    %c0_16 = arith.constant 0 : index
    %8 = vector.load %arg13[%c0_15, %c0_16] : memref<16x16xf32, #tpu.memory_space<vmem>>, vector<16x16xf32>
    %c0_17 = arith.constant 0 : index
    %c0_18 = arith.constant 0 : index
    %9 = vector.load %arg14[%c0_17, %c0_18] : memref<1x16xf32, #tpu.memory_space<vmem>>, vector<1x16xf32>
    %c0_19 = arith.constant 0 : index
    %c0_20 = arith.constant 0 : index
    %10 = vector.load %arg15[%c0_19, %c0_20] : memref<16x16xf32, #tpu.memory_space<vmem>>, vector<16x16xf32>
    %c0_21 = arith.constant 0 : index
    %c0_22 = arith.constant 0 : index
    %11 = vector.load %arg16[%c0_21, %c0_22] : memref<1x16xf32, #tpu.memory_space<vmem>>, vector<1x16xf32>
    %c0_23 = arith.constant 0 : index
    %c0_24 = arith.constant 0 : index
    %12 = vector.load %arg17[%c0_23, %c0_24] : memref<16x16xf32, #tpu.memory_space<vmem>>, vector<16x16xf32>
    %c0_25 = arith.constant 0 : index
    %c0_26 = arith.constant 0 : index
    %13 = vector.load %arg18[%c0_25, %c0_26] : memref<1x16xf32, #tpu.memory_space<vmem>>, vector<1x16xf32>
    %c0_27 = arith.constant 0 : index
    %c0_28 = arith.constant 0 : index
    %14 = vector.load %arg19[%c0_27, %c0_28] : memref<16x16xf32, #tpu.memory_space<vmem>>, vector<16x16xf32>
    %c0_29 = arith.constant 0 : index
    %c0_30 = arith.constant 0 : index
    %15 = vector.load %arg20[%c0_29, %c0_30] : memref<1x16xf32, #tpu.memory_space<vmem>>, vector<1x16xf32>
    %c0_31 = arith.constant 0 : index
    %c0_32 = arith.constant 0 : index
    %16 = vector.load %arg21[%c0_31, %c0_32] : memref<16x16xf32, #tpu.memory_space<vmem>>, vector<16x16xf32>
    %c0_33 = arith.constant 0 : index
    %c0_34 = arith.constant 0 : index
    %17 = vector.load %arg22[%c0_33, %c0_34] : memref<1x16xf32, #tpu.memory_space<vmem>>, vector<1x16xf32>
    %c0_35 = arith.constant 0 : index
    %c0_36 = arith.constant 0 : index
    %18 = vector.load %arg23[%c0_35, %c0_36] : memref<16x16xf32, #tpu.memory_space<vmem>>, vector<16x16xf32>
    %c0_37 = arith.constant 0 : index
    %c0_38 = arith.constant 0 : index
    %19 = vector.load %arg24[%c0_37, %c0_38] : memref<1x16xf32, #tpu.memory_space<vmem>>, vector<1x16xf32>
    %c0_39 = arith.constant 0 : index
    %c0_40 = arith.constant 0 : index
    %20 = vector.load %arg25[%c0_39, %c0_40] : memref<16x16xf32, #tpu.memory_space<vmem>>, vector<16x16xf32>
    %c0_41 = arith.constant 0 : index
    %c0_42 = arith.constant 0 : index
    %21 = vector.load %arg26[%c0_41, %c0_42] : memref<1x16xf32, #tpu.memory_space<vmem>>, vector<1x16xf32>
    %c0_43 = arith.constant 0 : index
    %c0_44 = arith.constant 0 : index
    %22 = vector.load %arg27[%c0_43, %c0_44] : memref<16x16xf32, #tpu.memory_space<vmem>>, vector<16x16xf32>
    %c0_45 = arith.constant 0 : index
    %c0_46 = arith.constant 0 : index
    %23 = vector.load %arg28[%c0_45, %c0_46] : memref<1x16xf32, #tpu.memory_space<vmem>>, vector<1x16xf32>
    %c0_47 = arith.constant 0 : index
    %c0_48 = arith.constant 0 : index
    %24 = vector.load %arg29[%c0_47, %c0_48] : memref<16x16xf32, #tpu.memory_space<vmem>>, vector<16x16xf32>
    %c0_49 = arith.constant 0 : index
    %c0_50 = arith.constant 0 : index
    %25 = vector.load %arg30[%c0_49, %c0_50] : memref<1x16xf32, #tpu.memory_space<vmem>>, vector<1x16xf32>
    %c0_51 = arith.constant 0 : index
    %c0_52 = arith.constant 0 : index
    %26 = vector.load %arg31[%c0_51, %c0_52] : memref<16x16xf32, #tpu.memory_space<vmem>>, vector<16x16xf32>
    %c0_53 = arith.constant 0 : index
    %c0_54 = arith.constant 0 : index
    %27 = vector.load %arg32[%c0_53, %c0_54] : memref<1x16xf32, #tpu.memory_space<vmem>>, vector<1x16xf32>
    %c0_55 = arith.constant 0 : index
    %c0_56 = arith.constant 0 : index
    %28 = vector.load %arg33[%c0_55, %c0_56] : memref<16x16xf32, #tpu.memory_space<vmem>>, vector<16x16xf32>
    %c0_57 = arith.constant 0 : index
    %c0_58 = arith.constant 0 : index
    %29 = vector.load %arg34[%c0_57, %c0_58] : memref<1x16xf32, #tpu.memory_space<vmem>>, vector<1x16xf32>
    %c0_59 = arith.constant 0 : index
    %c0_60 = arith.constant 0 : index
    %30 = vector.load %arg35[%c0_59, %c0_60] : memref<16x16xf32, #tpu.memory_space<vmem>>, vector<16x16xf32>
    %c0_61 = arith.constant 0 : index
    %c0_62 = arith.constant 0 : index
    %31 = vector.load %arg36[%c0_61, %c0_62] : memref<1x16xf32, #tpu.memory_space<vmem>>, vector<1x16xf32>
    %c0_63 = arith.constant 0 : index
    %c0_64 = arith.constant 0 : index
    %32 = vector.load %arg37[%c0_63, %c0_64] : memref<16x8xf32, #tpu.memory_space<vmem>>, vector<16x8xf32>
    %c0_65 = arith.constant 0 : index
    %c0_66 = arith.constant 0 : index
    %33 = vector.load %arg38[%c0_65, %c0_66] : memref<1x8xf32, #tpu.memory_space<vmem>>, vector<1x8xf32>
    %c0_67 = arith.constant 0 : index
    %c0_68 = arith.constant 0 : index
    %c0_69 = arith.constant 0 : index
    %34 = vector.load %arg0[%c0_67, %c0_68, %c0_69] : memref<2x10x8xf32, #tpu.memory_space<vmem>>, vector<2x10x8xf32>
    %c0_70 = arith.constant 0 : index
    %c0_71 = arith.constant 0 : index
    %c0_72 = arith.constant 0 : index
    %35 = vector.load %arg1[%c0_70, %c0_71, %c0_72] : memref<2x1x16xf32, #tpu.memory_space<vmem>>, vector<2x1x16xf32>
    %c0_73 = arith.constant 0 : index
    %c0_74 = arith.constant 0 : index
    %36 = vector.load %arg2[%c0_73, %c0_74] : memref<10x16xf32, #tpu.memory_space<vmem>>, vector<10x16xf32>
    %c0_75 = arith.constant 0 : index
    %c0_76 = arith.constant 0 : index
    %37 = vector.load %arg3[%c0_75, %c0_76] : memref<80x16xf32, #tpu.memory_space<vmem>>, vector<80x16xf32>
    %c0_77 = arith.constant 0 : index
    %c0_78 = arith.constant 0 : index
    %38 = vector.load %arg4[%c0_77, %c0_78] : memref<8x16xf32, #tpu.memory_space<vmem>>, vector<8x16xf32>
    %cst = arith.constant 0.000000e+00 : f32
    %39 = vector.broadcast %cst : f32 to vector<2x10x8xf32>
    %40 = tpu.concatenate %34, %39 in 2 : vector<2x10x8xf32>, vector<2x10x8xf32> -> vector<2x10x16xf32>
    %cst_79 = arith.constant 2.82842708 : f32
    %41 = vector.broadcast %cst_79 : f32 to vector<2x10x16xf32>
    %42 = arith.mulf %40, %41 : vector<2x10x16xf32>
    %43 = vector.shape_cast %36 : vector<10x16xf32> to vector<1x10x16xf32>
    %44 = vector.broadcast %43 : vector<1x10x16xf32> to vector<2x10x16xf32>
    %45 = arith.addf %42, %44 : vector<2x10x16xf32>
    %46 = vector.shape_cast %45 : vector<2x10x16xf32> to vector<20x16xf32>
    %cst_80 = arith.constant dense<0.000000e+00> : vector<20x16xf32>
    %47 = tpu.matmul %46, %0, %cst_80 {dimension_numbers = #tpu.dot_dimension_numbers<[1], [0], [0], [1], [0, 0, 1, 1], [], []>} : vector<20x16xf32>, vector<16x16xf32>, vector<20x16xf32> -> vector<20x16xf32>
    %48 = vector.broadcast %1 : vector<1x16xf32> to vector<20x16xf32>
    %49 = arith.addf %47, %48 : vector<20x16xf32>
    %50 = vector.shape_cast %49 : vector<20x16xf32> to vector<2x10x16xf32>
    %51 = vector.shape_cast %45 : vector<2x10x16xf32> to vector<20x16xf32>
    %cst_81 = arith.constant dense<0.000000e+00> : vector<20x16xf32>
    %52 = tpu.matmul %51, %2, %cst_81 {dimension_numbers = #tpu.dot_dimension_numbers<[1], [0], [0], [1], [0, 0, 1, 1], [], []>} : vector<20x16xf32>, vector<16x16xf32>, vector<20x16xf32> -> vector<20x16xf32>
    %53 = vector.broadcast %3 : vector<1x16xf32> to vector<20x16xf32>
    %54 = arith.addf %52, %53 : vector<20x16xf32>
    %55 = vector.shape_cast %54 : vector<20x16xf32> to vector<2x10x16xf32>
    %56 = vector.shape_cast %45 : vector<2x10x16xf32> to vector<20x16xf32>
    %cst_82 = arith.constant dense<0.000000e+00> : vector<20x16xf32>
    %57 = tpu.matmul %56, %4, %cst_82 {dimension_numbers = #tpu.dot_dimension_numbers<[1], [0], [0], [1], [0, 0, 1, 1], [], []>} : vector<20x16xf32>, vector<16x16xf32>, vector<20x16xf32> -> vector<20x16xf32>
    %58 = vector.broadcast %5 : vector<1x16xf32> to vector<20x16xf32>
    %59 = arith.addf %57, %58 : vector<20x16xf32>
    %60 = vector.shape_cast %59 : vector<20x16xf32> to vector<2x10x16xf32>
    %61 = tpu.concatenate %50, %50, %50, %50, %50, %50, %50, %50 in 1 : vector<2x10x16xf32>, vector<2x10x16xf32>, vector<2x10x16xf32>, vector<2x10x16xf32>, vector<2x10x16xf32>, vector<2x10x16xf32>, vector<2x10x16xf32>, vector<2x10x16xf32> -> vector<2x80x16xf32>
    %62 = vector.shape_cast %37 : vector<80x16xf32> to vector<1x80x16xf32>
    %63 = vector.broadcast %62 : vector<1x80x16xf32> to vector<2x80x16xf32>
    %64 = arith.mulf %61, %63 : vector<2x80x16xf32>
    "tpu.trace_start"() <{level = 10 : i32, message = "bnd,bkd->bnk"}> : () -> ()
    %cst_83 = arith.constant dense<0.000000e+00> : vector<2x80x10xf32>
    %65 = tpu.matmul %64, %55, %cst_83 {dimension_numbers = #tpu.dot_dimension_numbers<[2], [2], [1], [1], [0, 0, 0, 1, 1, 1], [0], [0]>} : vector<2x80x16xf32>, vector<2x10x16xf32>, vector<2x80x10xf32> -> vector<2x80x10xf32>
    "tpu.trace_stop"() : () -> ()
    %cst_84 = arith.constant dense<0xFF800000> : vector<2x80xf32>
    %66 = vector.multi_reduction <maximumf>, %65, %cst_84 [2] : vector<2x80x10xf32> to vector<2x80xf32>
    %67 = vector.shape_cast %66 : vector<2x80xf32> to vector<2x80x1xf32>
    %68 = vector.broadcast %67 : vector<2x80x1xf32> to vector<2x80x10xf32>
    %69 = arith.subf %65, %68 : vector<2x80x10xf32>
    %70 = math.exp %69 : vector<2x80x10xf32>
    %cst_85 = arith.constant dense<0.000000e+00> : vector<2x80xf32>
    %71 = vector.multi_reduction <add>, %70, %cst_85 [2] : vector<2x80x10xf32> to vector<2x80xf32>
    %72 = vector.shape_cast %71 : vector<2x80xf32> to vector<2x80x1xf32>
    %73 = tpu.reciprocal %72 {approx = true} : vector<2x80x1xf32> -> vector<2x80x1xf32>
    %74 = vector.broadcast %73 : vector<2x80x1xf32> to vector<2x80x10xf32>
    %75 = arith.mulf %70, %74 : vector<2x80x10xf32>
    "tpu.trace_start"() <{level = 10 : i32, message = "bnk,bkd->bnd"}> : () -> ()
    %cst_86 = arith.constant dense<0.000000e+00> : vector<2x80x16xf32>
    %76 = tpu.matmul %75, %60, %cst_86 {dimension_numbers = #tpu.dot_dimension_numbers<[2], [1], [1], [2], [0, 0, 0, 1, 1, 2], [0], [0]>} : vector<2x80x10xf32>, vector<2x10x16xf32>, vector<2x80x16xf32> -> vector<2x80x16xf32>
    "tpu.trace_stop"() : () -> ()
    %77 = vector.shape_cast %37 : vector<80x16xf32> to vector<1x80x16xf32>
    %78 = vector.broadcast %77 : vector<1x80x16xf32> to vector<2x80x16xf32>
    %79 = arith.mulf %76, %78 : vector<2x80x16xf32>
    %80 = vector.extract_strided_slice %79 {offsets = [0, 0, 0], sizes = [2, 10, 16], strides = [1, 1, 1]} : vector<2x80x16xf32> to vector<2x10x16xf32>
    %81 = vector.extract_strided_slice %79 {offsets = [0, 10, 0], sizes = [2, 10, 16], strides = [1, 1, 1]} : vector<2x80x16xf32> to vector<2x10x16xf32>
    %82 = arith.addf %80, %81 : vector<2x10x16xf32>
    %83 = vector.extract_strided_slice %79 {offsets = [0, 20, 0], sizes = [2, 10, 16], strides = [1, 1, 1]} : vector<2x80x16xf32> to vector<2x10x16xf32>
    %84 = arith.addf %82, %83 : vector<2x10x16xf32>
    %85 = vector.extract_strided_slice %79 {offsets = [0, 30, 0], sizes = [2, 10, 16], strides = [1, 1, 1]} : vector<2x80x16xf32> to vector<2x10x16xf32>
    %86 = arith.addf %84, %85 : vector<2x10x16xf32>
    %87 = vector.extract_strided_slice %79 {offsets = [0, 40, 0], sizes = [2, 10, 16], strides = [1, 1, 1]} : vector<2x80x16xf32> to vector<2x10x16xf32>
    %88 = arith.addf %86, %87 : vector<2x10x16xf32>
    %89 = vector.extract_strided_slice %79 {offsets = [0, 50, 0], sizes = [2, 10, 16], strides = [1, 1, 1]} : vector<2x80x16xf32> to vector<2x10x16xf32>
    %90 = arith.addf %88, %89 : vector<2x10x16xf32>
    %91 = vector.extract_strided_slice %79 {offsets = [0, 60, 0], sizes = [2, 10, 16], strides = [1, 1, 1]} : vector<2x80x16xf32> to vector<2x10x16xf32>
    %92 = arith.addf %90, %91 : vector<2x10x16xf32>
    %93 = vector.extract_strided_slice %79 {offsets = [0, 70, 0], sizes = [2, 10, 16], strides = [1, 1, 1]} : vector<2x80x16xf32> to vector<2x10x16xf32>
    %94 = arith.addf %92, %93 : vector<2x10x16xf32>
    %95 = vector.shape_cast %94 : vector<2x10x16xf32> to vector<20x16xf32>
    %cst_87 = arith.constant dense<0.000000e+00> : vector<20x16xf32>
    %96 = tpu.matmul %95, %6, %cst_87 {dimension_numbers = #tpu.dot_dimension_numbers<[1], [0], [0], [1], [0, 0, 1, 1], [], []>} : vector<20x16xf32>, vector<16x16xf32>, vector<20x16xf32> -> vector<20x16xf32>
    %97 = vector.broadcast %7 : vector<1x16xf32> to vector<20x16xf32>
    %98 = arith.addf %96, %97 : vector<20x16xf32>
    %99 = vector.shape_cast %98 : vector<20x16xf32> to vector<2x10x16xf32>
    %100 = arith.addf %45, %99 : vector<2x10x16xf32>
    %101 = vector.shape_cast %100 : vector<2x10x16xf32> to vector<20x16xf32>
    %cst_88 = arith.constant dense<0.000000e+00> : vector<20x16xf32>
    %102 = tpu.matmul %101, %8, %cst_88 {dimension_numbers = #tpu.dot_dimension_numbers<[1], [0], [0], [1], [0, 0, 1, 1], [], []>} : vector<20x16xf32>, vector<16x16xf32>, vector<20x16xf32> -> vector<20x16xf32>
    %103 = vector.broadcast %9 : vector<1x16xf32> to vector<20x16xf32>
    %104 = arith.addf %102, %103 : vector<20x16xf32>
    %cst_89 = arith.constant 0.000000e+00 : f32
    %105 = vector.broadcast %cst_89 : f32 to vector<20x16xf32>
    %106 = arith.cmpf oge, %104, %105 : vector<20x16xf32>
    %cst_90 = arith.constant 0.00999999977 : f32
    %107 = vector.broadcast %cst_90 : f32 to vector<20x16xf32>
    %108 = arith.mulf %107, %104 : vector<20x16xf32>
    %109 = arith.select %106, %104, %108 : vector<20x16xi1>, vector<20x16xf32>
    %cst_91 = arith.constant dense<0.000000e+00> : vector<20x16xf32>
    %110 = tpu.matmul %109, %10, %cst_91 {dimension_numbers = #tpu.dot_dimension_numbers<[1], [0], [0], [1], [0, 0, 1, 1], [], []>} : vector<20x16xf32>, vector<16x16xf32>, vector<20x16xf32> -> vector<20x16xf32>
    %111 = vector.broadcast %11 : vector<1x16xf32> to vector<20x16xf32>
    %112 = arith.addf %110, %111 : vector<20x16xf32>
    %113 = vector.shape_cast %112 : vector<20x16xf32> to vector<2x10x16xf32>
    %114 = arith.addf %100, %113 : vector<2x10x16xf32>
    %115 = vector.shape_cast %35 : vector<2x1x16xf32> to vector<2x16xf32>
    %cst_92 = arith.constant dense<0.000000e+00> : vector<2x16xf32>
    %116 = tpu.matmul %115, %12, %cst_92 {dimension_numbers = #tpu.dot_dimension_numbers<[1], [0], [0], [1], [0, 0, 1, 1], [], []>} : vector<2x16xf32>, vector<16x16xf32>, vector<2x16xf32> -> vector<2x16xf32>
    %117 = vector.broadcast %13 : vector<1x16xf32> to vector<2x16xf32>
    %118 = arith.addf %116, %117 : vector<2x16xf32>
    %119 = vector.shape_cast %118 : vector<2x16xf32> to vector<2x1x16xf32>
    %120 = vector.shape_cast %35 : vector<2x1x16xf32> to vector<2x16xf32>
    %cst_93 = arith.constant dense<0.000000e+00> : vector<2x16xf32>
    %121 = tpu.matmul %120, %14, %cst_93 {dimension_numbers = #tpu.dot_dimension_numbers<[1], [0], [0], [1], [0, 0, 1, 1], [], []>} : vector<2x16xf32>, vector<16x16xf32>, vector<2x16xf32> -> vector<2x16xf32>
    %122 = vector.broadcast %15 : vector<1x16xf32> to vector<2x16xf32>
    %123 = arith.addf %121, %122 : vector<2x16xf32>
    %124 = vector.shape_cast %123 : vector<2x16xf32> to vector<2x1x16xf32>
    %125 = vector.shape_cast %35 : vector<2x1x16xf32> to vector<2x16xf32>
    %cst_94 = arith.constant dense<0.000000e+00> : vector<2x16xf32>
    %126 = tpu.matmul %125, %16, %cst_94 {dimension_numbers = #tpu.dot_dimension_numbers<[1], [0], [0], [1], [0, 0, 1, 1], [], []>} : vector<2x16xf32>, vector<16x16xf32>, vector<2x16xf32> -> vector<2x16xf32>
    %127 = vector.broadcast %17 : vector<1x16xf32> to vector<2x16xf32>
    %128 = arith.addf %126, %127 : vector<2x16xf32>
    %129 = vector.shape_cast %128 : vector<2x16xf32> to vector<2x1x16xf32>
    %130 = tpu.concatenate %119, %119, %119, %119, %119, %119, %119, %119 in 1 : vector<2x1x16xf32>, vector<2x1x16xf32>, vector<2x1x16xf32>, vector<2x1x16xf32>, vector<2x1x16xf32>, vector<2x1x16xf32>, vector<2x1x16xf32>, vector<2x1x16xf32> -> vector<2x8x16xf32>
    %131 = vector.shape_cast %38 : vector<8x16xf32> to vector<1x8x16xf32>
    %132 = vector.broadcast %131 : vector<1x8x16xf32> to vector<2x8x16xf32>
    %133 = arith.mulf %130, %132 : vector<2x8x16xf32>
    "tpu.trace_start"() <{level = 10 : i32, message = "bnd,bkd->bnk"}> : () -> ()
    %cst_95 = arith.constant dense<0.000000e+00> : vector<2x8x1xf32>
    %134 = tpu.matmul %133, %124, %cst_95 {dimension_numbers = #tpu.dot_dimension_numbers<[2], [2], [1], [1], [0, 0, 0, 1, 1, 1], [0], [0]>} : vector<2x8x16xf32>, vector<2x1x16xf32>, vector<2x8x1xf32> -> vector<2x8x1xf32>
    "tpu.trace_stop"() : () -> ()
    %cst_96 = arith.constant dense<0xFF800000> : vector<2x8xf32>
    %135 = vector.multi_reduction <maximumf>, %134, %cst_96 [2] : vector<2x8x1xf32> to vector<2x8xf32>
    %136 = vector.shape_cast %135 : vector<2x8xf32> to vector<2x8x1xf32>
    %137 = arith.subf %134, %136 : vector<2x8x1xf32>
    %138 = math.exp %137 : vector<2x8x1xf32>
    %cst_97 = arith.constant dense<0.000000e+00> : vector<2x8xf32>
    %139 = vector.multi_reduction <add>, %138, %cst_97 [2] : vector<2x8x1xf32> to vector<2x8xf32>
    %140 = vector.shape_cast %139 : vector<2x8xf32> to vector<2x8x1xf32>
    %141 = tpu.reciprocal %140 {approx = true} : vector<2x8x1xf32> -> vector<2x8x1xf32>
    %142 = arith.mulf %138, %141 : vector<2x8x1xf32>
    "tpu.trace_start"() <{level = 10 : i32, message = "bnk,bkd->bnd"}> : () -> ()
    %cst_98 = arith.constant dense<0.000000e+00> : vector<2x8x16xf32>
    %143 = tpu.matmul %142, %129, %cst_98 {dimension_numbers = #tpu.dot_dimension_numbers<[2], [1], [1], [2], [0, 0, 0, 1, 1, 2], [0], [0]>} : vector<2x8x1xf32>, vector<2x1x16xf32>, vector<2x8x16xf32> -> vector<2x8x16xf32>
    "tpu.trace_stop"() : () -> ()
    %144 = vector.shape_cast %38 : vector<8x16xf32> to vector<1x8x16xf32>
    %145 = vector.broadcast %144 : vector<1x8x16xf32> to vector<2x8x16xf32>
    %146 = arith.mulf %143, %145 : vector<2x8x16xf32>
    %147 = vector.extract_strided_slice %146 {offsets = [0, 0, 0], sizes = [2, 1, 16], strides = [1, 1, 1]} : vector<2x8x16xf32> to vector<2x1x16xf32>
    %148 = vector.extract_strided_slice %146 {offsets = [0, 1, 0], sizes = [2, 1, 16], strides = [1, 1, 1]} : vector<2x8x16xf32> to vector<2x1x16xf32>
    %149 = arith.addf %147, %148 : vector<2x1x16xf32>
    %150 = vector.extract_strided_slice %146 {offsets = [0, 2, 0], sizes = [2, 1, 16], strides = [1, 1, 1]} : vector<2x8x16xf32> to vector<2x1x16xf32>
    %151 = arith.addf %149, %150 : vector<2x1x16xf32>
    %152 = vector.extract_strided_slice %146 {offsets = [0, 3, 0], sizes = [2, 1, 16], strides = [1, 1, 1]} : vector<2x8x16xf32> to vector<2x1x16xf32>
    %153 = arith.addf %151, %152 : vector<2x1x16xf32>
    %154 = vector.extract_strided_slice %146 {offsets = [0, 4, 0], sizes = [2, 1, 16], strides = [1, 1, 1]} : vector<2x8x16xf32> to vector<2x1x16xf32>
    %155 = arith.addf %153, %154 : vector<2x1x16xf32>
    %156 = vector.extract_strided_slice %146 {offsets = [0, 5, 0], sizes = [2, 1, 16], strides = [1, 1, 1]} : vector<2x8x16xf32> to vector<2x1x16xf32>
    %157 = arith.addf %155, %156 : vector<2x1x16xf32>
    %158 = vector.extract_strided_slice %146 {offsets = [0, 6, 0], sizes = [2, 1, 16], strides = [1, 1, 1]} : vector<2x8x16xf32> to vector<2x1x16xf32>
    %159 = arith.addf %157, %158 : vector<2x1x16xf32>
    %160 = vector.extract_strided_slice %146 {offsets = [0, 7, 0], sizes = [2, 1, 16], strides = [1, 1, 1]} : vector<2x8x16xf32> to vector<2x1x16xf32>
    %161 = arith.addf %159, %160 : vector<2x1x16xf32>
    %162 = vector.shape_cast %161 : vector<2x1x16xf32> to vector<2x16xf32>
    %cst_99 = arith.constant dense<0.000000e+00> : vector<2x16xf32>
    %163 = tpu.matmul %162, %18, %cst_99 {dimension_numbers = #tpu.dot_dimension_numbers<[1], [0], [0], [1], [0, 0, 1, 1], [], []>} : vector<2x16xf32>, vector<16x16xf32>, vector<2x16xf32> -> vector<2x16xf32>
    %164 = vector.broadcast %19 : vector<1x16xf32> to vector<2x16xf32>
    %165 = arith.addf %163, %164 : vector<2x16xf32>
    %166 = vector.shape_cast %165 : vector<2x16xf32> to vector<2x1x16xf32>
    %167 = arith.addf %35, %166 : vector<2x1x16xf32>
    %168 = vector.shape_cast %167 : vector<2x1x16xf32> to vector<2x16xf32>
    %cst_100 = arith.constant dense<0.000000e+00> : vector<2x16xf32>
    %169 = tpu.matmul %168, %20, %cst_100 {dimension_numbers = #tpu.dot_dimension_numbers<[1], [0], [0], [1], [0, 0, 1, 1], [], []>} : vector<2x16xf32>, vector<16x16xf32>, vector<2x16xf32> -> vector<2x16xf32>
    %170 = vector.broadcast %21 : vector<1x16xf32> to vector<2x16xf32>
    %171 = arith.addf %169, %170 : vector<2x16xf32>
    %172 = vector.shape_cast %171 : vector<2x16xf32> to vector<2x1x16xf32>
    %173 = vector.shape_cast %114 : vector<2x10x16xf32> to vector<20x16xf32>
    %cst_101 = arith.constant dense<0.000000e+00> : vector<20x16xf32>
    %174 = tpu.matmul %173, %22, %cst_101 {dimension_numbers = #tpu.dot_dimension_numbers<[1], [0], [0], [1], [0, 0, 1, 1], [], []>} : vector<20x16xf32>, vector<16x16xf32>, vector<20x16xf32> -> vector<20x16xf32>
    %175 = vector.broadcast %23 : vector<1x16xf32> to vector<20x16xf32>
    %176 = arith.addf %174, %175 : vector<20x16xf32>
    %177 = vector.shape_cast %176 : vector<20x16xf32> to vector<2x10x16xf32>
    %178 = vector.shape_cast %114 : vector<2x10x16xf32> to vector<20x16xf32>
    %cst_102 = arith.constant dense<0.000000e+00> : vector<20x16xf32>
    %179 = tpu.matmul %178, %24, %cst_102 {dimension_numbers = #tpu.dot_dimension_numbers<[1], [0], [0], [1], [0, 0, 1, 1], [], []>} : vector<20x16xf32>, vector<16x16xf32>, vector<20x16xf32> -> vector<20x16xf32>
    %180 = vector.broadcast %25 : vector<1x16xf32> to vector<20x16xf32>
    %181 = arith.addf %179, %180 : vector<20x16xf32>
    %182 = vector.shape_cast %181 : vector<20x16xf32> to vector<2x10x16xf32>
    %183 = tpu.concatenate %172, %172, %172, %172, %172, %172, %172, %172 in 1 : vector<2x1x16xf32>, vector<2x1x16xf32>, vector<2x1x16xf32>, vector<2x1x16xf32>, vector<2x1x16xf32>, vector<2x1x16xf32>, vector<2x1x16xf32>, vector<2x1x16xf32> -> vector<2x8x16xf32>
    %184 = vector.shape_cast %38 : vector<8x16xf32> to vector<1x8x16xf32>
    %185 = vector.broadcast %184 : vector<1x8x16xf32> to vector<2x8x16xf32>
    %186 = arith.mulf %183, %185 : vector<2x8x16xf32>
    "tpu.trace_start"() <{level = 10 : i32, message = "bnd,bkd->bnk"}> : () -> ()
    %cst_103 = arith.constant dense<0.000000e+00> : vector<2x8x10xf32>
    %187 = tpu.matmul %186, %177, %cst_103 {dimension_numbers = #tpu.dot_dimension_numbers<[2], [2], [1], [1], [0, 0, 0, 1, 1, 1], [0], [0]>} : vector<2x8x16xf32>, vector<2x10x16xf32>, vector<2x8x10xf32> -> vector<2x8x10xf32>
    "tpu.trace_stop"() : () -> ()
    %cst_104 = arith.constant dense<0xFF800000> : vector<2x8xf32>
    %188 = vector.multi_reduction <maximumf>, %187, %cst_104 [2] : vector<2x8x10xf32> to vector<2x8xf32>
    %189 = vector.shape_cast %188 : vector<2x8xf32> to vector<2x8x1xf32>
    %190 = vector.broadcast %189 : vector<2x8x1xf32> to vector<2x8x10xf32>
    %191 = arith.subf %187, %190 : vector<2x8x10xf32>
    %192 = math.exp %191 : vector<2x8x10xf32>
    %cst_105 = arith.constant dense<0.000000e+00> : vector<2x8xf32>
    %193 = vector.multi_reduction <add>, %192, %cst_105 [2] : vector<2x8x10xf32> to vector<2x8xf32>
    %194 = vector.shape_cast %193 : vector<2x8xf32> to vector<2x8x1xf32>
    %195 = tpu.reciprocal %194 {approx = true} : vector<2x8x1xf32> -> vector<2x8x1xf32>
    %196 = vector.broadcast %195 : vector<2x8x1xf32> to vector<2x8x10xf32>
    %197 = arith.mulf %192, %196 : vector<2x8x10xf32>
    "tpu.trace_start"() <{level = 10 : i32, message = "bnk,bkd->bnd"}> : () -> ()
    %cst_106 = arith.constant dense<0.000000e+00> : vector<2x8x16xf32>
    %198 = tpu.matmul %197, %182, %cst_106 {dimension_numbers = #tpu.dot_dimension_numbers<[2], [1], [1], [2], [0, 0, 0, 1, 1, 2], [0], [0]>} : vector<2x8x10xf32>, vector<2x10x16xf32>, vector<2x8x16xf32> -> vector<2x8x16xf32>
    "tpu.trace_stop"() : () -> ()
    %199 = vector.shape_cast %38 : vector<8x16xf32> to vector<1x8x16xf32>
    %200 = vector.broadcast %199 : vector<1x8x16xf32> to vector<2x8x16xf32>
    %201 = arith.mulf %198, %200 : vector<2x8x16xf32>
    %202 = vector.extract_strided_slice %201 {offsets = [0, 0, 0], sizes = [2, 1, 16], strides = [1, 1, 1]} : vector<2x8x16xf32> to vector<2x1x16xf32>
    %203 = vector.extract_strided_slice %201 {offsets = [0, 1, 0], sizes = [2, 1, 16], strides = [1, 1, 1]} : vector<2x8x16xf32> to vector<2x1x16xf32>
    %204 = arith.addf %202, %203 : vector<2x1x16xf32>
    %205 = vector.extract_strided_slice %201 {offsets = [0, 2, 0], sizes = [2, 1, 16], strides = [1, 1, 1]} : vector<2x8x16xf32> to vector<2x1x16xf32>
    %206 = arith.addf %204, %205 : vector<2x1x16xf32>
    %207 = vector.extract_strided_slice %201 {offsets = [0, 3, 0], sizes = [2, 1, 16], strides = [1, 1, 1]} : vector<2x8x16xf32> to vector<2x1x16xf32>
    %208 = arith.addf %206, %207 : vector<2x1x16xf32>
    %209 = vector.extract_strided_slice %201 {offsets = [0, 4, 0], sizes = [2, 1, 16], strides = [1, 1, 1]} : vector<2x8x16xf32> to vector<2x1x16xf32>
    %210 = arith.addf %208, %209 : vector<2x1x16xf32>
    %211 = vector.extract_strided_slice %201 {offsets = [0, 5, 0], sizes = [2, 1, 16], strides = [1, 1, 1]} : vector<2x8x16xf32> to vector<2x1x16xf32>
    %212 = arith.addf %210, %211 : vector<2x1x16xf32>
    %213 = vector.extract_strided_slice %201 {offsets = [0, 6, 0], sizes = [2, 1, 16], strides = [1, 1, 1]} : vector<2x8x16xf32> to vector<2x1x16xf32>
    %214 = arith.addf %212, %213 : vector<2x1x16xf32>
    %215 = vector.extract_strided_slice %201 {offsets = [0, 7, 0], sizes = [2, 1, 16], strides = [1, 1, 1]} : vector<2x8x16xf32> to vector<2x1x16xf32>
    %216 = arith.addf %214, %215 : vector<2x1x16xf32>
    %217 = vector.shape_cast %216 : vector<2x1x16xf32> to vector<2x16xf32>
    %cst_107 = arith.constant dense<0.000000e+00> : vector<2x16xf32>
    %218 = tpu.matmul %217, %26, %cst_107 {dimension_numbers = #tpu.dot_dimension_numbers<[1], [0], [0], [1], [0, 0, 1, 1], [], []>} : vector<2x16xf32>, vector<16x16xf32>, vector<2x16xf32> -> vector<2x16xf32>
    %219 = vector.broadcast %27 : vector<1x16xf32> to vector<2x16xf32>
    %220 = arith.addf %218, %219 : vector<2x16xf32>
    %221 = vector.shape_cast %220 : vector<2x16xf32> to vector<2x1x16xf32>
    %222 = arith.addf %167, %221 : vector<2x1x16xf32>
    %223 = vector.shape_cast %222 : vector<2x1x16xf32> to vector<2x16xf32>
    %cst_108 = arith.constant dense<0.000000e+00> : vector<2x16xf32>
    %224 = tpu.matmul %223, %28, %cst_108 {dimension_numbers = #tpu.dot_dimension_numbers<[1], [0], [0], [1], [0, 0, 1, 1], [], []>} : vector<2x16xf32>, vector<16x16xf32>, vector<2x16xf32> -> vector<2x16xf32>
    %225 = vector.broadcast %29 : vector<1x16xf32> to vector<2x16xf32>
    %226 = arith.addf %224, %225 : vector<2x16xf32>
    %cst_109 = arith.constant 0.000000e+00 : f32
    %227 = vector.broadcast %cst_109 : f32 to vector<2x16xf32>
    %228 = arith.cmpf oge, %226, %227 : vector<2x16xf32>
    %cst_110 = arith.constant 0.00999999977 : f32
    %229 = vector.broadcast %cst_110 : f32 to vector<2x16xf32>
    %230 = arith.mulf %229, %226 : vector<2x16xf32>
    %231 = arith.select %228, %226, %230 : vector<2x16xi1>, vector<2x16xf32>
    %cst_111 = arith.constant dense<0.000000e+00> : vector<2x16xf32>
    %232 = tpu.matmul %231, %30, %cst_111 {dimension_numbers = #tpu.dot_dimension_numbers<[1], [0], [0], [1], [0, 0, 1, 1], [], []>} : vector<2x16xf32>, vector<16x16xf32>, vector<2x16xf32> -> vector<2x16xf32>
    %233 = vector.broadcast %31 : vector<1x16xf32> to vector<2x16xf32>
    %234 = arith.addf %232, %233 : vector<2x16xf32>
    %235 = vector.shape_cast %234 : vector<2x16xf32> to vector<2x1x16xf32>
    %236 = arith.addf %222, %235 : vector<2x1x16xf32>
    %237 = vector.shape_cast %236 : vector<2x1x16xf32> to vector<2x16xf32>
    %cst_112 = arith.constant dense<0.000000e+00> : vector<2x8xf32>
    %238 = tpu.matmul %237, %32, %cst_112 {dimension_numbers = #tpu.dot_dimension_numbers<[1], [0], [0], [1], [0, 0, 1, 1], [], []>} : vector<2x16xf32>, vector<16x8xf32>, vector<2x8xf32> -> vector<2x8xf32>
    %239 = vector.broadcast %33 : vector<1x8xf32> to vector<2x8xf32>
    %240 = arith.addf %238, %239 : vector<2x8xf32>
    %cst_113 = arith.constant 0.000000e+00 : f32
    %241 = vector.broadcast %cst_113 : f32 to vector<2x8xf32>
    %242 = arith.subf %241, %240 : vector<2x8xf32>
    %243 = math.exp %242 : vector<2x8xf32>
    %cst_114 = arith.constant 1.000000e+00 : f32
    %244 = vector.broadcast %cst_114 : f32 to vector<2x8xf32>
    %245 = arith.addf %244, %243 : vector<2x8xf32>
    %cst_115 = arith.constant 1.000000e+00 : f32
    %246 = vector.broadcast %cst_115 : f32 to vector<2x8xf32>
    %247 = arith.divf %246, %245 : vector<2x8xf32>
    %248 = vector.shape_cast %247 : vector<2x8xf32> to vector<2x1x8xf32>
    %249 = vector.broadcast %248 : vector<2x1x8xf32> to vector<2x10x8xf32>
    %250 = arith.subf %249, %34 : vector<2x10x8xf32>
    %251 = arith.mulf %250, %250 : vector<2x10x8xf32>
    %252 = tpu.concatenate %34, %251 in 2 : vector<2x10x8xf32>, vector<2x10x8xf32> -> vector<2x10x16xf32>
    %cst_116 = arith.constant 2.82842708 : f32
    %253 = vector.broadcast %cst_116 : f32 to vector<2x10x16xf32>
    %254 = arith.mulf %252, %253 : vector<2x10x16xf32>
    %255 = vector.shape_cast %36 : vector<10x16xf32> to vector<1x10x16xf32>
    %256 = vector.broadcast %255 : vector<1x10x16xf32> to vector<2x10x16xf32>
    %257 = arith.addf %254, %256 : vector<2x10x16xf32>
    %258 = vector.shape_cast %257 : vector<2x10x16xf32> to vector<20x16xf32>
    %cst_117 = arith.constant dense<0.000000e+00> : vector<20x16xf32>
    %259 = tpu.matmul %258, %0, %cst_117 {dimension_numbers = #tpu.dot_dimension_numbers<[1], [0], [0], [1], [0, 0, 1, 1], [], []>} : vector<20x16xf32>, vector<16x16xf32>, vector<20x16xf32> -> vector<20x16xf32>
    %260 = vector.broadcast %1 : vector<1x16xf32> to vector<20x16xf32>
    %261 = arith.addf %259, %260 : vector<20x16xf32>
    %262 = vector.shape_cast %261 : vector<20x16xf32> to vector<2x10x16xf32>
    %263 = vector.shape_cast %257 : vector<2x10x16xf32> to vector<20x16xf32>
    %cst_118 = arith.constant dense<0.000000e+00> : vector<20x16xf32>
    %264 = tpu.matmul %263, %2, %cst_118 {dimension_numbers = #tpu.dot_dimension_numbers<[1], [0], [0], [1], [0, 0, 1, 1], [], []>} : vector<20x16xf32>, vector<16x16xf32>, vector<20x16xf32> -> vector<20x16xf32>
    %265 = vector.broadcast %3 : vector<1x16xf32> to vector<20x16xf32>
    %266 = arith.addf %264, %265 : vector<20x16xf32>
    %267 = vector.shape_cast %266 : vector<20x16xf32> to vector<2x10x16xf32>
    %268 = vector.shape_cast %257 : vector<2x10x16xf32> to vector<20x16xf32>
    %cst_119 = arith.constant dense<0.000000e+00> : vector<20x16xf32>
    %269 = tpu.matmul %268, %4, %cst_119 {dimension_numbers = #tpu.dot_dimension_numbers<[1], [0], [0], [1], [0, 0, 1, 1], [], []>} : vector<20x16xf32>, vector<16x16xf32>, vector<20x16xf32> -> vector<20x16xf32>
    %270 = vector.broadcast %5 : vector<1x16xf32> to vector<20x16xf32>
    %271 = arith.addf %269, %270 : vector<20x16xf32>
    %272 = vector.shape_cast %271 : vector<20x16xf32> to vector<2x10x16xf32>
    %273 = tpu.concatenate %262, %262, %262, %262, %262, %262, %262, %262 in 1 : vector<2x10x16xf32>, vector<2x10x16xf32>, vector<2x10x16xf32>, vector<2x10x16xf32>, vector<2x10x16xf32>, vector<2x10x16xf32>, vector<2x10x16xf32>, vector<2x10x16xf32> -> vector<2x80x16xf32>
    %274 = vector.shape_cast %37 : vector<80x16xf32> to vector<1x80x16xf32>
    %275 = vector.broadcast %274 : vector<1x80x16xf32> to vector<2x80x16xf32>
    %276 = arith.mulf %273, %275 : vector<2x80x16xf32>
    "tpu.trace_start"() <{level = 10 : i32, message = "bnd,bkd->bnk"}> : () -> ()
    %cst_120 = arith.constant dense<0.000000e+00> : vector<2x80x10xf32>
    %277 = tpu.matmul %276, %267, %cst_120 {dimension_numbers = #tpu.dot_dimension_numbers<[2], [2], [1], [1], [0, 0, 0, 1, 1, 1], [0], [0]>} : vector<2x80x16xf32>, vector<2x10x16xf32>, vector<2x80x10xf32> -> vector<2x80x10xf32>
    "tpu.trace_stop"() : () -> ()
    %cst_121 = arith.constant dense<0xFF800000> : vector<2x80xf32>
    %278 = vector.multi_reduction <maximumf>, %277, %cst_121 [2] : vector<2x80x10xf32> to vector<2x80xf32>
    %279 = vector.shape_cast %278 : vector<2x80xf32> to vector<2x80x1xf32>
    %280 = vector.broadcast %279 : vector<2x80x1xf32> to vector<2x80x10xf32>
    %281 = arith.subf %277, %280 : vector<2x80x10xf32>
    %282 = math.exp %281 : vector<2x80x10xf32>
    %cst_122 = arith.constant dense<0.000000e+00> : vector<2x80xf32>
    %283 = vector.multi_reduction <add>, %282, %cst_122 [2] : vector<2x80x10xf32> to vector<2x80xf32>
    %284 = vector.shape_cast %283 : vector<2x80xf32> to vector<2x80x1xf32>
    %285 = tpu.reciprocal %284 {approx = true} : vector<2x80x1xf32> -> vector<2x80x1xf32>
    %286 = vector.broadcast %285 : vector<2x80x1xf32> to vector<2x80x10xf32>
    %287 = arith.mulf %282, %286 : vector<2x80x10xf32>
    "tpu.trace_start"() <{level = 10 : i32, message = "bnk,bkd->bnd"}> : () -> ()
    %cst_123 = arith.constant dense<0.000000e+00> : vector<2x80x16xf32>
    %288 = tpu.matmul %287, %272, %cst_123 {dimension_numbers = #tpu.dot_dimension_numbers<[2], [1], [1], [2], [0, 0, 0, 1, 1, 2], [0], [0]>} : vector<2x80x10xf32>, vector<2x10x16xf32>, vector<2x80x16xf32> -> vector<2x80x16xf32>
    "tpu.trace_stop"() : () -> ()
    %289 = vector.shape_cast %37 : vector<80x16xf32> to vector<1x80x16xf32>
    %290 = vector.broadcast %289 : vector<1x80x16xf32> to vector<2x80x16xf32>
    %291 = arith.mulf %288, %290 : vector<2x80x16xf32>
    %292 = vector.extract_strided_slice %291 {offsets = [0, 0, 0], sizes = [2, 10, 16], strides = [1, 1, 1]} : vector<2x80x16xf32> to vector<2x10x16xf32>
    %293 = vector.extract_strided_slice %291 {offsets = [0, 10, 0], sizes = [2, 10, 16], strides = [1, 1, 1]} : vector<2x80x16xf32> to vector<2x10x16xf32>
    %294 = arith.addf %292, %293 : vector<2x10x16xf32>
    %295 = vector.extract_strided_slice %291 {offsets = [0, 20, 0], sizes = [2, 10, 16], strides = [1, 1, 1]} : vector<2x80x16xf32> to vector<2x10x16xf32>
    %296 = arith.addf %294, %295 : vector<2x10x16xf32>
    %297 = vector.extract_strided_slice %291 {offsets = [0, 30, 0], sizes = [2, 10, 16], strides = [1, 1, 1]} : vector<2x80x16xf32> to vector<2x10x16xf32>
    %298 = arith.addf %296, %297 : vector<2x10x16xf32>
    %299 = vector.extract_strided_slice %291 {offsets = [0, 40, 0], sizes = [2, 10, 16], strides = [1, 1, 1]} : vector<2x80x16xf32> to vector<2x10x16xf32>
    %300 = arith.addf %298, %299 : vector<2x10x16xf32>
    %301 = vector.extract_strided_slice %291 {offsets = [0, 50, 0], sizes = [2, 10, 16], strides = [1, 1, 1]} : vector<2x80x16xf32> to vector<2x10x16xf32>
    %302 = arith.addf %300, %301 : vector<2x10x16xf32>
    %303 = vector.extract_strided_slice %291 {offsets = [0, 60, 0], sizes = [2, 10, 16], strides = [1, 1, 1]} : vector<2x80x16xf32> to vector<2x10x16xf32>
    %304 = arith.addf %302, %303 : vector<2x10x16xf32>
    %305 = vector.extract_strided_slice %291 {offsets = [0, 70, 0], sizes = [2, 10, 16], strides = [1, 1, 1]} : vector<2x80x16xf32> to vector<2x10x16xf32>
    %306 = arith.addf %304, %305 : vector<2x10x16xf32>
    %307 = vector.shape_cast %306 : vector<2x10x16xf32> to vector<20x16xf32>
    %cst_124 = arith.constant dense<0.000000e+00> : vector<20x16xf32>
    %308 = tpu.matmul %307, %6, %cst_124 {dimension_numbers = #tpu.dot_dimension_numbers<[1], [0], [0], [1], [0, 0, 1, 1], [], []>} : vector<20x16xf32>, vector<16x16xf32>, vector<20x16xf32> -> vector<20x16xf32>
    %309 = vector.broadcast %7 : vector<1x16xf32> to vector<20x16xf32>
    %310 = arith.addf %308, %309 : vector<20x16xf32>
    %311 = vector.shape_cast %310 : vector<20x16xf32> to vector<2x10x16xf32>
    %312 = arith.addf %257, %311 : vector<2x10x16xf32>
    %313 = vector.shape_cast %312 : vector<2x10x16xf32> to vector<20x16xf32>
    %cst_125 = arith.constant dense<0.000000e+00> : vector<20x16xf32>
    %314 = tpu.matmul %313, %8, %cst_125 {dimension_numbers = #tpu.dot_dimension_numbers<[1], [0], [0], [1], [0, 0, 1, 1], [], []>} : vector<20x16xf32>, vector<16x16xf32>, vector<20x16xf32> -> vector<20x16xf32>
    %315 = vector.broadcast %9 : vector<1x16xf32> to vector<20x16xf32>
    %316 = arith.addf %314, %315 : vector<20x16xf32>
    %cst_126 = arith.constant 0.000000e+00 : f32
    %317 = vector.broadcast %cst_126 : f32 to vector<20x16xf32>
    %318 = arith.cmpf oge, %316, %317 : vector<20x16xf32>
    %cst_127 = arith.constant 0.00999999977 : f32
    %319 = vector.broadcast %cst_127 : f32 to vector<20x16xf32>
    %320 = arith.mulf %319, %316 : vector<20x16xf32>
    %321 = arith.select %318, %316, %320 : vector<20x16xi1>, vector<20x16xf32>
    %cst_128 = arith.constant dense<0.000000e+00> : vector<20x16xf32>
    %322 = tpu.matmul %321, %10, %cst_128 {dimension_numbers = #tpu.dot_dimension_numbers<[1], [0], [0], [1], [0, 0, 1, 1], [], []>} : vector<20x16xf32>, vector<16x16xf32>, vector<20x16xf32> -> vector<20x16xf32>
    %323 = vector.broadcast %11 : vector<1x16xf32> to vector<20x16xf32>
    %324 = arith.addf %322, %323 : vector<20x16xf32>
    %325 = vector.shape_cast %324 : vector<20x16xf32> to vector<2x10x16xf32>
    %326 = arith.addf %312, %325 : vector<2x10x16xf32>
    %327 = vector.shape_cast %35 : vector<2x1x16xf32> to vector<2x16xf32>
    %cst_129 = arith.constant dense<0.000000e+00> : vector<2x16xf32>
    %328 = tpu.matmul %327, %12, %cst_129 {dimension_numbers = #tpu.dot_dimension_numbers<[1], [0], [0], [1], [0, 0, 1, 1], [], []>} : vector<2x16xf32>, vector<16x16xf32>, vector<2x16xf32> -> vector<2x16xf32>
    %329 = vector.broadcast %13 : vector<1x16xf32> to vector<2x16xf32>
    %330 = arith.addf %328, %329 : vector<2x16xf32>
    %331 = vector.shape_cast %330 : vector<2x16xf32> to vector<2x1x16xf32>
    %332 = vector.shape_cast %35 : vector<2x1x16xf32> to vector<2x16xf32>
    %cst_130 = arith.constant dense<0.000000e+00> : vector<2x16xf32>
    %333 = tpu.matmul %332, %14, %cst_130 {dimension_numbers = #tpu.dot_dimension_numbers<[1], [0], [0], [1], [0, 0, 1, 1], [], []>} : vector<2x16xf32>, vector<16x16xf32>, vector<2x16xf32> -> vector<2x16xf32>
    %334 = vector.broadcast %15 : vector<1x16xf32> to vector<2x16xf32>
    %335 = arith.addf %333, %334 : vector<2x16xf32>
    %336 = vector.shape_cast %335 : vector<2x16xf32> to vector<2x1x16xf32>
    %337 = vector.shape_cast %35 : vector<2x1x16xf32> to vector<2x16xf32>
    %cst_131 = arith.constant dense<0.000000e+00> : vector<2x16xf32>
    %338 = tpu.matmul %337, %16, %cst_131 {dimension_numbers = #tpu.dot_dimension_numbers<[1], [0], [0], [1], [0, 0, 1, 1], [], []>} : vector<2x16xf32>, vector<16x16xf32>, vector<2x16xf32> -> vector<2x16xf32>
    %339 = vector.broadcast %17 : vector<1x16xf32> to vector<2x16xf32>
    %340 = arith.addf %338, %339 : vector<2x16xf32>
    %341 = vector.shape_cast %340 : vector<2x16xf32> to vector<2x1x16xf32>
    %342 = tpu.concatenate %331, %331, %331, %331, %331, %331, %331, %331 in 1 : vector<2x1x16xf32>, vector<2x1x16xf32>, vector<2x1x16xf32>, vector<2x1x16xf32>, vector<2x1x16xf32>, vector<2x1x16xf32>, vector<2x1x16xf32>, vector<2x1x16xf32> -> vector<2x8x16xf32>
    %343 = vector.shape_cast %38 : vector<8x16xf32> to vector<1x8x16xf32>
    %344 = vector.broadcast %343 : vector<1x8x16xf32> to vector<2x8x16xf32>
    %345 = arith.mulf %342, %344 : vector<2x8x16xf32>
    "tpu.trace_start"() <{level = 10 : i32, message = "bnd,bkd->bnk"}> : () -> ()
    %cst_132 = arith.constant dense<0.000000e+00> : vector<2x8x1xf32>
    %346 = tpu.matmul %345, %336, %cst_132 {dimension_numbers = #tpu.dot_dimension_numbers<[2], [2], [1], [1], [0, 0, 0, 1, 1, 1], [0], [0]>} : vector<2x8x16xf32>, vector<2x1x16xf32>, vector<2x8x1xf32> -> vector<2x8x1xf32>
    "tpu.trace_stop"() : () -> ()
    %cst_133 = arith.constant dense<0xFF800000> : vector<2x8xf32>
    %347 = vector.multi_reduction <maximumf>, %346, %cst_133 [2] : vector<2x8x1xf32> to vector<2x8xf32>
    %348 = vector.shape_cast %347 : vector<2x8xf32> to vector<2x8x1xf32>
    %349 = arith.subf %346, %348 : vector<2x8x1xf32>
    %350 = math.exp %349 : vector<2x8x1xf32>
    %cst_134 = arith.constant dense<0.000000e+00> : vector<2x8xf32>
    %351 = vector.multi_reduction <add>, %350, %cst_134 [2] : vector<2x8x1xf32> to vector<2x8xf32>
    %352 = vector.shape_cast %351 : vector<2x8xf32> to vector<2x8x1xf32>
    %353 = tpu.reciprocal %352 {approx = true} : vector<2x8x1xf32> -> vector<2x8x1xf32>
    %354 = arith.mulf %350, %353 : vector<2x8x1xf32>
    "tpu.trace_start"() <{level = 10 : i32, message = "bnk,bkd->bnd"}> : () -> ()
    %cst_135 = arith.constant dense<0.000000e+00> : vector<2x8x16xf32>
    %355 = tpu.matmul %354, %341, %cst_135 {dimension_numbers = #tpu.dot_dimension_numbers<[2], [1], [1], [2], [0, 0, 0, 1, 1, 2], [0], [0]>} : vector<2x8x1xf32>, vector<2x1x16xf32>, vector<2x8x16xf32> -> vector<2x8x16xf32>
    "tpu.trace_stop"() : () -> ()
    %356 = vector.shape_cast %38 : vector<8x16xf32> to vector<1x8x16xf32>
    %357 = vector.broadcast %356 : vector<1x8x16xf32> to vector<2x8x16xf32>
    %358 = arith.mulf %355, %357 : vector<2x8x16xf32>
    %359 = vector.extract_strided_slice %358 {offsets = [0, 0, 0], sizes = [2, 1, 16], strides = [1, 1, 1]} : vector<2x8x16xf32> to vector<2x1x16xf32>
    %360 = vector.extract_strided_slice %358 {offsets = [0, 1, 0], sizes = [2, 1, 16], strides = [1, 1, 1]} : vector<2x8x16xf32> to vector<2x1x16xf32>
    %361 = arith.addf %359, %360 : vector<2x1x16xf32>
    %362 = vector.extract_strided_slice %358 {offsets = [0, 2, 0], sizes = [2, 1, 16], strides = [1, 1, 1]} : vector<2x8x16xf32> to vector<2x1x16xf32>
    %363 = arith.addf %361, %362 : vector<2x1x16xf32>
    %364 = vector.extract_strided_slice %358 {offsets = [0, 3, 0], sizes = [2, 1, 16], strides = [1, 1, 1]} : vector<2x8x16xf32> to vector<2x1x16xf32>
    %365 = arith.addf %363, %364 : vector<2x1x16xf32>
    %366 = vector.extract_strided_slice %358 {offsets = [0, 4, 0], sizes = [2, 1, 16], strides = [1, 1, 1]} : vector<2x8x16xf32> to vector<2x1x16xf32>
    %367 = arith.addf %365, %366 : vector<2x1x16xf32>
    %368 = vector.extract_strided_slice %358 {offsets = [0, 5, 0], sizes = [2, 1, 16], strides = [1, 1, 1]} : vector<2x8x16xf32> to vector<2x1x16xf32>
    %369 = arith.addf %367, %368 : vector<2x1x16xf32>
    %370 = vector.extract_strided_slice %358 {offsets = [0, 6, 0], sizes = [2, 1, 16], strides = [1, 1, 1]} : vector<2x8x16xf32> to vector<2x1x16xf32>
    %371 = arith.addf %369, %370 : vector<2x1x16xf32>
    %372 = vector.extract_strided_slice %358 {offsets = [0, 7, 0], sizes = [2, 1, 16], strides = [1, 1, 1]} : vector<2x8x16xf32> to vector<2x1x16xf32>
    %373 = arith.addf %371, %372 : vector<2x1x16xf32>
    %374 = vector.shape_cast %373 : vector<2x1x16xf32> to vector<2x16xf32>
    %cst_136 = arith.constant dense<0.000000e+00> : vector<2x16xf32>
    %375 = tpu.matmul %374, %18, %cst_136 {dimension_numbers = #tpu.dot_dimension_numbers<[1], [0], [0], [1], [0, 0, 1, 1], [], []>} : vector<2x16xf32>, vector<16x16xf32>, vector<2x16xf32> -> vector<2x16xf32>
    %376 = vector.broadcast %19 : vector<1x16xf32> to vector<2x16xf32>
    %377 = arith.addf %375, %376 : vector<2x16xf32>
    %378 = vector.shape_cast %377 : vector<2x16xf32> to vector<2x1x16xf32>
    %379 = arith.addf %35, %378 : vector<2x1x16xf32>
    %380 = vector.shape_cast %379 : vector<2x1x16xf32> to vector<2x16xf32>
    %cst_137 = arith.constant dense<0.000000e+00> : vector<2x16xf32>
    %381 = tpu.matmul %380, %20, %cst_137 {dimension_numbers = #tpu.dot_dimension_numbers<[1], [0], [0], [1], [0, 0, 1, 1], [], []>} : vector<2x16xf32>, vector<16x16xf32>, vector<2x16xf32> -> vector<2x16xf32>
    %382 = vector.broadcast %21 : vector<1x16xf32> to vector<2x16xf32>
    %383 = arith.addf %381, %382 : vector<2x16xf32>
    %384 = vector.shape_cast %383 : vector<2x16xf32> to vector<2x1x16xf32>
    %385 = vector.shape_cast %326 : vector<2x10x16xf32> to vector<20x16xf32>
    %cst_138 = arith.constant dense<0.000000e+00> : vector<20x16xf32>
    %386 = tpu.matmul %385, %22, %cst_138 {dimension_numbers = #tpu.dot_dimension_numbers<[1], [0], [0], [1], [0, 0, 1, 1], [], []>} : vector<20x16xf32>, vector<16x16xf32>, vector<20x16xf32> -> vector<20x16xf32>
    %387 = vector.broadcast %23 : vector<1x16xf32> to vector<20x16xf32>
    %388 = arith.addf %386, %387 : vector<20x16xf32>
    %389 = vector.shape_cast %388 : vector<20x16xf32> to vector<2x10x16xf32>
    %390 = vector.shape_cast %326 : vector<2x10x16xf32> to vector<20x16xf32>
    %cst_139 = arith.constant dense<0.000000e+00> : vector<20x16xf32>
    %391 = tpu.matmul %390, %24, %cst_139 {dimension_numbers = #tpu.dot_dimension_numbers<[1], [0], [0], [1], [0, 0, 1, 1], [], []>} : vector<20x16xf32>, vector<16x16xf32>, vector<20x16xf32> -> vector<20x16xf32>
    %392 = vector.broadcast %25 : vector<1x16xf32> to vector<20x16xf32>
    %393 = arith.addf %391, %392 : vector<20x16xf32>
    %394 = vector.shape_cast %393 : vector<20x16xf32> to vector<2x10x16xf32>
    %395 = tpu.concatenate %384, %384, %384, %384, %384, %384, %384, %384 in 1 : vector<2x1x16xf32>, vector<2x1x16xf32>, vector<2x1x16xf32>, vector<2x1x16xf32>, vector<2x1x16xf32>, vector<2x1x16xf32>, vector<2x1x16xf32>, vector<2x1x16xf32> -> vector<2x8x16xf32>
    %396 = vector.shape_cast %38 : vector<8x16xf32> to vector<1x8x16xf32>
    %397 = vector.broadcast %396 : vector<1x8x16xf32> to vector<2x8x16xf32>
    %398 = arith.mulf %395, %397 : vector<2x8x16xf32>
    "tpu.trace_start"() <{level = 10 : i32, message = "bnd,bkd->bnk"}> : () -> ()
    %cst_140 = arith.constant dense<0.000000e+00> : vector<2x8x10xf32>
    %399 = tpu.matmul %398, %389, %cst_140 {dimension_numbers = #tpu.dot_dimension_numbers<[2], [2], [1], [1], [0, 0, 0, 1, 1, 1], [0], [0]>} : vector<2x8x16xf32>, vector<2x10x16xf32>, vector<2x8x10xf32> -> vector<2x8x10xf32>
    "tpu.trace_stop"() : () -> ()
    %cst_141 = arith.constant dense<0xFF800000> : vector<2x8xf32>
    %400 = vector.multi_reduction <maximumf>, %399, %cst_141 [2] : vector<2x8x10xf32> to vector<2x8xf32>
    %401 = vector.shape_cast %400 : vector<2x8xf32> to vector<2x8x1xf32>
    %402 = vector.broadcast %401 : vector<2x8x1xf32> to vector<2x8x10xf32>
    %403 = arith.subf %399, %402 : vector<2x8x10xf32>
    %404 = math.exp %403 : vector<2x8x10xf32>
    %cst_142 = arith.constant dense<0.000000e+00> : vector<2x8xf32>
    %405 = vector.multi_reduction <add>, %404, %cst_142 [2] : vector<2x8x10xf32> to vector<2x8xf32>
    %406 = vector.shape_cast %405 : vector<2x8xf32> to vector<2x8x1xf32>
    %407 = tpu.reciprocal %406 {approx = true} : vector<2x8x1xf32> -> vector<2x8x1xf32>
    %408 = vector.broadcast %407 : vector<2x8x1xf32> to vector<2x8x10xf32>
    %409 = arith.mulf %404, %408 : vector<2x8x10xf32>
    "tpu.trace_start"() <{level = 10 : i32, message = "bnk,bkd->bnd"}> : () -> ()
    %cst_143 = arith.constant dense<0.000000e+00> : vector<2x8x16xf32>
    %410 = tpu.matmul %409, %394, %cst_143 {dimension_numbers = #tpu.dot_dimension_numbers<[2], [1], [1], [2], [0, 0, 0, 1, 1, 2], [0], [0]>} : vector<2x8x10xf32>, vector<2x10x16xf32>, vector<2x8x16xf32> -> vector<2x8x16xf32>
    "tpu.trace_stop"() : () -> ()
    %411 = vector.shape_cast %38 : vector<8x16xf32> to vector<1x8x16xf32>
    %412 = vector.broadcast %411 : vector<1x8x16xf32> to vector<2x8x16xf32>
    %413 = arith.mulf %410, %412 : vector<2x8x16xf32>
    %414 = vector.extract_strided_slice %413 {offsets = [0, 0, 0], sizes = [2, 1, 16], strides = [1, 1, 1]} : vector<2x8x16xf32> to vector<2x1x16xf32>
    %415 = vector.extract_strided_slice %413 {offsets = [0, 1, 0], sizes = [2, 1, 16], strides = [1, 1, 1]} : vector<2x8x16xf32> to vector<2x1x16xf32>
    %416 = arith.addf %414, %415 : vector<2x1x16xf32>
    %417 = vector.extract_strided_slice %413 {offsets = [0, 2, 0], sizes = [2, 1, 16], strides = [1, 1, 1]} : vector<2x8x16xf32> to vector<2x1x16xf32>
    %418 = arith.addf %416, %417 : vector<2x1x16xf32>
    %419 = vector.extract_strided_slice %413 {offsets = [0, 3, 0], sizes = [2, 1, 16], strides = [1, 1, 1]} : vector<2x8x16xf32> to vector<2x1x16xf32>
    %420 = arith.addf %418, %419 : vector<2x1x16xf32>
    %421 = vector.extract_strided_slice %413 {offsets = [0, 4, 0], sizes = [2, 1, 16], strides = [1, 1, 1]} : vector<2x8x16xf32> to vector<2x1x16xf32>
    %422 = arith.addf %420, %421 : vector<2x1x16xf32>
    %423 = vector.extract_strided_slice %413 {offsets = [0, 5, 0], sizes = [2, 1, 16], strides = [1, 1, 1]} : vector<2x8x16xf32> to vector<2x1x16xf32>
    %424 = arith.addf %422, %423 : vector<2x1x16xf32>
    %425 = vector.extract_strided_slice %413 {offsets = [0, 6, 0], sizes = [2, 1, 16], strides = [1, 1, 1]} : vector<2x8x16xf32> to vector<2x1x16xf32>
    %426 = arith.addf %424, %425 : vector<2x1x16xf32>
    %427 = vector.extract_strided_slice %413 {offsets = [0, 7, 0], sizes = [2, 1, 16], strides = [1, 1, 1]} : vector<2x8x16xf32> to vector<2x1x16xf32>
    %428 = arith.addf %426, %427 : vector<2x1x16xf32>
    %429 = vector.shape_cast %428 : vector<2x1x16xf32> to vector<2x16xf32>
    %cst_144 = arith.constant dense<0.000000e+00> : vector<2x16xf32>
    %430 = tpu.matmul %429, %26, %cst_144 {dimension_numbers = #tpu.dot_dimension_numbers<[1], [0], [0], [1], [0, 0, 1, 1], [], []>} : vector<2x16xf32>, vector<16x16xf32>, vector<2x16xf32> -> vector<2x16xf32>
    %431 = vector.broadcast %27 : vector<1x16xf32> to vector<2x16xf32>
    %432 = arith.addf %430, %431 : vector<2x16xf32>
    %433 = vector.shape_cast %432 : vector<2x16xf32> to vector<2x1x16xf32>
    %434 = arith.addf %379, %433 : vector<2x1x16xf32>
    %435 = vector.shape_cast %434 : vector<2x1x16xf32> to vector<2x16xf32>
    %cst_145 = arith.constant dense<0.000000e+00> : vector<2x16xf32>
    %436 = tpu.matmul %435, %28, %cst_145 {dimension_numbers = #tpu.dot_dimension_numbers<[1], [0], [0], [1], [0, 0, 1, 1], [], []>} : vector<2x16xf32>, vector<16x16xf32>, vector<2x16xf32> -> vector<2x16xf32>
    %437 = vector.broadcast %29 : vector<1x16xf32> to vector<2x16xf32>
    %438 = arith.addf %436, %437 : vector<2x16xf32>
    %cst_146 = arith.constant 0.000000e+00 : f32
    %439 = vector.broadcast %cst_146 : f32 to vector<2x16xf32>
    %440 = arith.cmpf oge, %438, %439 : vector<2x16xf32>
    %cst_147 = arith.constant 0.00999999977 : f32
    %441 = vector.broadcast %cst_147 : f32 to vector<2x16xf32>
    %442 = arith.mulf %441, %438 : vector<2x16xf32>
    %443 = arith.select %440, %438, %442 : vector<2x16xi1>, vector<2x16xf32>
    %cst_148 = arith.constant dense<0.000000e+00> : vector<2x16xf32>
    %444 = tpu.matmul %443, %30, %cst_148 {dimension_numbers = #tpu.dot_dimension_numbers<[1], [0], [0], [1], [0, 0, 1, 1], [], []>} : vector<2x16xf32>, vector<16x16xf32>, vector<2x16xf32> -> vector<2x16xf32>
    %445 = vector.broadcast %31 : vector<1x16xf32> to vector<2x16xf32>
    %446 = arith.addf %444, %445 : vector<2x16xf32>
    %447 = vector.shape_cast %446 : vector<2x16xf32> to vector<2x1x16xf32>
    %448 = arith.addf %434, %447 : vector<2x1x16xf32>
    %449 = vector.shape_cast %448 : vector<2x1x16xf32> to vector<2x16xf32>
    %cst_149 = arith.constant dense<0.000000e+00> : vector<2x8xf32>
    %450 = tpu.matmul %449, %32, %cst_149 {dimension_numbers = #tpu.dot_dimension_numbers<[1], [0], [0], [1], [0, 0, 1, 1], [], []>} : vector<2x16xf32>, vector<16x8xf32>, vector<2x8xf32> -> vector<2x8xf32>
    %451 = vector.broadcast %33 : vector<1x8xf32> to vector<2x8xf32>
    %452 = arith.addf %450, %451 : vector<2x8xf32>
    %cst_150 = arith.constant 0.000000e+00 : f32
    %453 = vector.broadcast %cst_150 : f32 to vector<2x8xf32>
    %454 = arith.subf %453, %452 : vector<2x8xf32>
    %455 = math.exp %454 : vector<2x8xf32>
    %cst_151 = arith.constant 1.000000e+00 : f32
    %456 = vector.broadcast %cst_151 : f32 to vector<2x8xf32>
    %457 = arith.addf %456, %455 : vector<2x8xf32>
    %cst_152 = arith.constant 1.000000e+00 : f32
    %458 = vector.broadcast %cst_152 : f32 to vector<2x8xf32>
    %459 = arith.divf %458, %457 : vector<2x8xf32>
    %460 = vector.shape_cast %459 : vector<2x8xf32> to vector<2x1x8xf32>
    %c0_153 = arith.constant 0 : index
    %c0_154 = arith.constant 0 : index
    %c0_155 = arith.constant 0 : index
    %461 = vector.load %arg39[%c0_153, %c0_154, %c0_155] : memref<2x1x8xf32, #tpu.memory_space<vmem>>, vector<2x1x8xf32>
    tpu.vector_store %arg39[%c0_153, %c0_154, %c0_155], %460 {strides = array<i32>} : memref<2x1x8xf32, #tpu.memory_space<vmem>>, vector<2x1x8xf32>,
    return
  }
}

</mosaic_0001>

<llo_original>
// kernel: tranad_adversarial_forward.1
$region0: #{tranad_adversarial_forward.1}
  #allocation0 [shape = 'u32[]', space=smem, size = 0x4, offset = 0x4, fixed_abs, tag = 'smem constant byte address 0x4 - core index']
  #allocation1 [shape = 'u32[72,128]{1,0:T(1,128)}', space=vmem, size = 0x9000, scoped, tag = 'internal scratch']
  %s0 = inlined_call_operand.smem [shape: u32[40], index: -1, kind: input, shape index: {}]
  %s1 = sld [smem:[%s0]]
  %s2 = scalar_lea.smem %s0, 1
  %s3 = sld [smem:[%s2]]
  %s4 = scalar_lea.smem %s0, 2
  %s5 = sld [smem:[%s4]]
  %s6 = scalar_lea.smem %s0, 3
  %s7 = sld [smem:[%s6]]
  %s8 = scalar_lea.smem %s0, 4
  %s9 = sld [smem:[%s8]]
  %s10 = scalar_lea.smem %s0, 5
  %s11 = sld [smem:[%s10]]
  %s12 = scalar_lea.smem %s0, 6
  %s13 = sld [smem:[%s12]]
  %s14 = scalar_lea.smem %s0, 7
  %s15 = sld [smem:[%s14]]
  %s16 = scalar_lea.smem %s0, 8
  %s17 = sld [smem:[%s16]]
  %s18 = scalar_lea.smem %s0, 9
  %s19 = sld [smem:[%s18]]
  %s20 = scalar_lea.smem %s0, 10
  %s21 = sld [smem:[%s20]]
  %s22 = scalar_lea.smem %s0, 11
  %s23 = sld [smem:[%s22]]
  %s24 = scalar_lea.smem %s0, 12
  %s25 = sld [smem:[%s24]]
  %s26 = scalar_lea.smem %s0, 13
  %s27 = sld [smem:[%s26]]
  %s28 = scalar_lea.smem %s0, 14
  %s29 = sld [smem:[%s28]]
  %s30 = scalar_lea.smem %s0, 15
  %s31 = sld [smem:[%s30]]
  %s32 = scalar_lea.smem %s0, 16
  %s33 = sld [smem:[%s32]]
  %s34 = scalar_lea.smem %s0, 17
  %s35 = sld [smem:[%s34]]
  %s36 = scalar_lea.smem %s0, 18
  %s37 = sld [smem:[%s36]]
  %s38 = scalar_lea.smem %s0, 19
  %s39 = sld [smem:[%s38]]
  %s40 = scalar_lea.smem %s0, 20
  %s41 = sld [smem:[%s40]]
  %s42 = scalar_lea.smem %s0, 21
  %s43 = sld [smem:[%s42]]
  %s44 = scalar_lea.smem %s0, 22
  %s45 = sld [smem:[%s44]]
  %s46 = scalar_lea.smem %s0, 23
  %s47 = sld [smem:[%s46]]
  %s48 = scalar_lea.smem %s0, 24
  %s49 = sld [smem:[%s48]]
  %s50 = scalar_lea.smem %s0, 25
  %s51 = sld [smem:[%s50]]
  %s52 = scalar_lea.smem %s0, 26
  %s53 = sld [smem:[%s52]]
  %s54 = scalar_lea.smem %s0, 27
  %s55 = sld [smem:[%s54]]
  %s56 = scalar_lea.smem %s0, 28
  %s57 = sld [smem:[%s56]]
  %s58 = scalar_lea.smem %s0, 29
  %s59 = sld [smem:[%s58]]
  %s60 = scalar_lea.smem %s0, 30
  %s61 = sld [smem:[%s60]]
  %s62 = scalar_lea.smem %s0, 31
  %s63 = sld [smem:[%s62]]
  %s64 = scalar_lea.smem %s0, 32
  %s65 = sld [smem:[%s64]]
  %s66 = scalar_lea.smem %s0, 33
  %s67 = sld [smem:[%s66]]
  %s68 = scalar_lea.smem %s0, 34
  %s69 = sld [smem:[%s68]]
  %s70 = scalar_lea.smem %s0, 35
  %s71 = sld [smem:[%s70]]
  %s72 = scalar_lea.smem %s0, 36
  %s73 = sld [smem:[%s72]]
  %s74 = scalar_lea.smem %s0, 37
  %s75 = sld [smem:[%s74]]
  %s76 = scalar_lea.smem %s0, 38
  %s77 = sld [smem:[%s76]]
  %s78 = scalar_lea.smem %s0, 39
  %s79 = sld [smem:[%s78]]
  %s80 = sld [smem:[#allocation0]]
  $region166: #{tranad_adversarial_forward.1} parent=0
    _
  %s82 = ssub.s32 1, %s80
  %s83 = scalar_select 0, %s82, %s80
  $region1: #{tranad_adversarial_forward.1} parent=0
    #allocation2 [shape = 'u8[1024]{0}', space=vmem, size = 0x400, scoped, tag = 'output window, operand 0, single buffered']
    #allocation3 [shape = 's32[1]{0}', space=sflag, size = 0x4, scoped, tag = 'scoped memory for tranad_adversarial_forward.1']
    %84 = vsyncpa [#allocation3], 0
    // Predicated region
    $region2: #{tranad_adversarial_forward.1} parent=1 // pred_check
      _
    $region3: #{tranad_adversarial_forward.1} parent=1 // pred_check_branch
      %86 = sbr.rel (0) target = $region5
    $region4: #{tranad_adversarial_forward.1} parent=1 // pred_region
      _
    $region5: #{tranad_adversarial_forward.1} parent=1 // pred_fallthru
      _
    // Predicated region
    $region6: #{tranad_adversarial_forward.1} parent=1 // pred_check
      _
    $region7: #{tranad_adversarial_forward.1} parent=1 // pred_check_branch
      %88 = sbr.rel (0) target = $region9
    $region8: #{tranad_adversarial_forward.1} parent=1 // pred_region
      _
    $region9: #{tranad_adversarial_forward.1} parent=1 // pred_fallthru
      _
    // Predicated region
    $region10: #{tranad_adversarial_forward.1} parent=1 // pred_check
      _
    $region11: #{tranad_adversarial_forward.1} parent=1 // pred_check_branch
      %90 = sbr.rel (0) target = $region13
    $region12: #{tranad_adversarial_forward.1} parent=1 // pred_region
      _
    $region13: #{tranad_adversarial_forward.1} parent=1 // pred_fallthru
      _
    // Predicated region
    $region14: #{tranad_adversarial_forward.1} parent=1 // pred_check
      _
    $region15: #{tranad_adversarial_forward.1} parent=1 // pred_check_branch
      %92 = sbr.rel (0) target = $region17
    $region16: #{tranad_adversarial_forward.1} parent=1 // pred_region
      _
    $region17: #{tranad_adversarial_forward.1} parent=1 // pred_fallthru
      _
    // Predicated region
    $region18: #{tranad_adversarial_forward.1} parent=1 // pred_check
      _
    $region19: #{tranad_adversarial_forward.1} parent=1 // pred_check_branch
      %94 = sbr.rel (0) target = $region21
    $region20: #{tranad_adversarial_forward.1} parent=1 // pred_region
      _
    $region21: #{tranad_adversarial_forward.1} parent=1 // pred_fallthru
      _
    // Predicated region
    $region22: #{tranad_adversarial_forward.1} parent=1 // pred_check
      _
    $region23: #{tranad_adversarial_forward.1} parent=1 // pred_check_branch
      %96 = sbr.rel (0) target = $region25
    $region24: #{tranad_adversarial_forward.1} parent=1 // pred_region
      _
    $region25: #{tranad_adversarial_forward.1} parent=1 // pred_fallthru
      _
    // Predicated region
    $region26: #{tranad_adversarial_forward.1} parent=1 // pred_check
      _
    $region27: #{tranad_adversarial_forward.1} parent=1 // pred_check_branch
      %98 = sbr.rel (0) target = $region29
    $region28: #{tranad_adversarial_forward.1} parent=1 // pred_region
      _
    $region29: #{tranad_adversarial_forward.1} parent=1 // pred_fallthru
      _
    // Predicated region
    $region30: #{tranad_adversarial_forward.1} parent=1 // pred_check
      _
    $region31: #{tranad_adversarial_forward.1} parent=1 // pred_check_branch
      %100 = sbr.rel (0) target = $region33
    $region32: #{tranad_adversarial_forward.1} parent=1 // pred_region
      _
    $region33: #{tranad_adversarial_forward.1} parent=1 // pred_fallthru
      _
    // Predicated region
    $region34: #{tranad_adversarial_forward.1} parent=1 // pred_check
      _
    $region35: #{tranad_adversarial_forward.1} parent=1 // pred_check_branch
      %102 = sbr.rel (0) target = $region37
    $region36: #{tranad_adversarial_forward.1} parent=1 // pred_region
      _
    $region37: #{tranad_adversarial_forward.1} parent=1 // pred_fallthru
      _
    // Predicated region
    $region38: #{tranad_adversarial_forward.1} parent=1 // pred_check
      _
    $region39: #{tranad_adversarial_forward.1} parent=1 // pred_check_branch
      %104 = sbr.rel (0) target = $region41
    $region40: #{tranad_adversarial_forward.1} parent=1 // pred_region
      _
    $region41: #{tranad_adversarial_forward.1} parent=1 // pred_fallthru
      _
    // Predicated region
    $region42: #{tranad_adversarial_forward.1} parent=1 // pred_check
      _
    $region43: #{tranad_adversarial_forward.1} parent=1 // pred_check_branch
      %106 = sbr.rel (0) target = $region45
    $region44: #{tranad_adversarial_forward.1} parent=1 // pred_region
      _
    $region45: #{tranad_adversarial_forward.1} parent=1 // pred_fallthru
      _
    // Predicated region
    $region46: #{tranad_adversarial_forward.1} parent=1 // pred_check
      _
    $region47: #{tranad_adversarial_forward.1} parent=1 // pred_check_branch
      %108 = sbr.rel (0) target = $region49
    $region48: #{tranad_adversarial_forward.1} parent=1 // pred_region
      _
    $region49: #{tranad_adversarial_forward.1} parent=1 // pred_fallthru
      _
    // Predicated region
    $region50: #{tranad_adversarial_forward.1} parent=1 // pred_check
      _
    $region51: #{tranad_adversarial_forward.1} parent=1 // pred_check_branch
      %110 = sbr.rel (0) target = $region53
    $region52: #{tranad_adversarial_forward.1} parent=1 // pred_region
      _
    $region53: #{tranad_adversarial_forward.1} parent=1 // pred_fallthru
      _
    // Predicated region
    $region54: #{tranad_adversarial_forward.1} parent=1 // pred_check
      _
    $region55: #{tranad_adversarial_forward.1} parent=1 // pred_check_branch
      %112 = sbr.rel (0) target = $region57
    $region56: #{tranad_adversarial_forward.1} parent=1 // pred_region
      _
    $region57: #{tranad_adversarial_forward.1} parent=1 // pred_fallthru
      _
    // Predicated region
    $region58: #{tranad_adversarial_forward.1} parent=1 // pred_check
      _
    $region59: #{tranad_adversarial_forward.1} parent=1 // pred_check_branch
      %114 = sbr.rel (0) target = $region61
    $region60: #{tranad_adversarial_forward.1} parent=1 // pred_region
      _
    $region61: #{tranad_adversarial_forward.1} parent=1 // pred_fallthru
      _
    // Predicated region
    $region62: #{tranad_adversarial_forward.1} parent=1 // pred_check
      _
    $region63: #{tranad_adversarial_forward.1} parent=1 // pred_check_branch
      %116 = sbr.rel (0) target = $region65
    $region64: #{tranad_adversarial_forward.1} parent=1 // pred_region
      _
    $region65: #{tranad_adversarial_forward.1} parent=1 // pred_fallthru
      _
    // Predicated region
    $region66: #{tranad_adversarial_forward.1} parent=1 // pred_check
      _
    $region67: #{tranad_adversarial_forward.1} parent=1 // pred_check_branch
      %118 = sbr.rel (0) target = $region69
    $region68: #{tranad_adversarial_forward.1} parent=1 // pred_region
      _
    $region69: #{tranad_adversarial_forward.1} parent=1 // pred_fallthru
      _
    // Predicated region
    $region70: #{tranad_adversarial_forward.1} parent=1 // pred_check
      _
    $region71: #{tranad_adversarial_forward.1} parent=1 // pred_check_branch
      %120 = sbr.rel (0) target = $region73
    $region72: #{tranad_adversarial_forward.1} parent=1 // pred_region
      _
    $region73: #{tranad_adversarial_forward.1} parent=1 // pred_fallthru
      _
    // Predicated region
    $region74: #{tranad_adversarial_forward.1} parent=1 // pred_check
      _
    $region75: #{tranad_adversarial_forward.1} parent=1 // pred_check_branch
      %122 = sbr.rel (0) target = $region77
    $region76: #{tranad_adversarial_forward.1} parent=1 // pred_region
      _
    $region77: #{tranad_adversarial_forward.1} parent=1 // pred_fallthru
      _
    // Predicated region
    $region78: #{tranad_adversarial_forward.1} parent=1 // pred_check
      _
    $region79: #{tranad_adversarial_forward.1} parent=1 // pred_check_branch
      %124 = sbr.rel (0) target = $region81
    $region80: #{tranad_adversarial_forward.1} parent=1 // pred_region
      _
    $region81: #{tranad_adversarial_forward.1} parent=1 // pred_fallthru
      _
    // Predicated region
    $region82: #{tranad_adversarial_forward.1} parent=1 // pred_check
      _
    $region83: #{tranad_adversarial_forward.1} parent=1 // pred_check_branch
      %126 = sbr.rel (0) target = $region85
    $region84: #{tranad_adversarial_forward.1} parent=1 // pred_region
      _
    $region85: #{tranad_adversarial_forward.1} parent=1 // pred_fallthru
      _
    // Predicated region
    $region86: #{tranad_adversarial_forward.1} parent=1 // pred_check
      _
    $region87: #{tranad_adversarial_forward.1} parent=1 // pred_check_branch
      %128 = sbr.rel (0) target = $region89
    $region88: #{tranad_adversarial_forward.1} parent=1 // pred_region
      _
    $region89: #{tranad_adversarial_forward.1} parent=1 // pred_fallthru
      _
    // Predicated region
    $region90: #{tranad_adversarial_forward.1} parent=1 // pred_check
      _
    $region91: #{tranad_adversarial_forward.1} parent=1 // pred_check_branch
      %130 = sbr.rel (0) target = $region93
    $region92: #{tranad_adversarial_forward.1} parent=1 // pred_region
      _
    $region93: #{tranad_adversarial_forward.1} parent=1 // pred_fallthru
      _
    // Predicated region
    $region94: #{tranad_adversarial_forward.1} parent=1 // pred_check
      _
    $region95: #{tranad_adversarial_forward.1} parent=1 // pred_check_branch
      %132 = sbr.rel (0) target = $region97
    $region96: #{tranad_adversarial_forward.1} parent=1 // pred_region
      _
    $region97: #{tranad_adversarial_forward.1} parent=1 // pred_fallthru
      _
    // Predicated region
    $region98: #{tranad_adversarial_forward.1} parent=1 // pred_check
      _
    $region99: #{tranad_adversarial_forward.1} parent=1 // pred_check_branch
      %134 = sbr.rel (0) target = $region101
    $region100: #{tranad_adversarial_forward.1} parent=1 // pred_region
      _
    $region101: #{tranad_adversarial_forward.1} parent=1 // pred_fallthru
      _
    // Predicated region
    $region102: #{tranad_adversarial_forward.1} parent=1 // pred_check
      _
    $region103: #{tranad_adversarial_forward.1} parent=1 // pred_check_branch
      %136 = sbr.rel (0) target = $region105
    $region104: #{tranad_adversarial_forward.1} parent=1 // pred_region
      _
    $region105: #{tranad_adversarial_forward.1} parent=1 // pred_fallthru
      _
    // Predicated region
    $region106: #{tranad_adversarial_forward.1} parent=1 // pred_check
      _
    $region107: #{tranad_adversarial_forward.1} parent=1 // pred_check_branch
      %138 = sbr.rel (0) target = $region109
    $region108: #{tranad_adversarial_forward.1} parent=1 // pred_region
      _
    $region109: #{tranad_adversarial_forward.1} parent=1 // pred_fallthru
      _
    // Predicated region
    $region110: #{tranad_adversarial_forward.1} parent=1 // pred_check
      _
    $region111: #{tranad_adversarial_forward.1} parent=1 // pred_check_branch
      %140 = sbr.rel (0) target = $region113
    $region112: #{tranad_adversarial_forward.1} parent=1 // pred_region
      _
    $region113: #{tranad_adversarial_forward.1} parent=1 // pred_fallthru
      _
    // Predicated region
    $region114: #{tranad_adversarial_forward.1} parent=1 // pred_check
      _
    $region115: #{tranad_adversarial_forward.1} parent=1 // pred_check_branch
      %142 = sbr.rel (0) target = $region117
    $region116: #{tranad_adversarial_forward.1} parent=1 // pred_region
      _
    $region117: #{tranad_adversarial_forward.1} parent=1 // pred_fallthru
      _
    // Predicated region
    $region118: #{tranad_adversarial_forward.1} parent=1 // pred_check
      _
    $region119: #{tranad_adversarial_forward.1} parent=1 // pred_check_branch
      %144 = sbr.rel (0) target = $region121
    $region120: #{tranad_adversarial_forward.1} parent=1 // pred_region
      _
    $region121: #{tranad_adversarial_forward.1} parent=1 // pred_fallthru
      _
    // Predicated region
    $region122: #{tranad_adversarial_forward.1} parent=1 // pred_check
      _
    $region123: #{tranad_adversarial_forward.1} parent=1 // pred_check_branch
      %146 = sbr.rel (0) target = $region125
    $region124: #{tranad_adversarial_forward.1} parent=1 // pred_region
      _
    $region125: #{tranad_adversarial_forward.1} parent=1 // pred_fallthru
      _
    // Predicated region
    $region126: #{tranad_adversarial_forward.1} parent=1 // pred_check
      _
    $region127: #{tranad_adversarial_forward.1} parent=1 // pred_check_branch
      %148 = sbr.rel (0) target = $region129
    $region128: #{tranad_adversarial_forward.1} parent=1 // pred_region
      _
    $region129: #{tranad_adversarial_forward.1} parent=1 // pred_fallthru
      _
    // Predicated region
    $region130: #{tranad_adversarial_forward.1} parent=1 // pred_check
      _
    $region131: #{tranad_adversarial_forward.1} parent=1 // pred_check_branch
      %150 = sbr.rel (0) target = $region133
    $region132: #{tranad_adversarial_forward.1} parent=1 // pred_region
      _
    $region133: #{tranad_adversarial_forward.1} parent=1 // pred_fallthru
      _
    // Predicated region
    $region134: #{tranad_adversarial_forward.1} parent=1 // pred_check
      _
    $region135: #{tranad_adversarial_forward.1} parent=1 // pred_check_branch
      %152 = sbr.rel (0) target = $region137
    $region136: #{tranad_adversarial_forward.1} parent=1 // pred_region
      _
    $region137: #{tranad_adversarial_forward.1} parent=1 // pred_fallthru
      _
    // Predicated region
    $region138: #{tranad_adversarial_forward.1} parent=1 // pred_check
      _
    $region139: #{tranad_adversarial_forward.1} parent=1 // pred_check_branch
      %154 = sbr.rel (0) target = $region141
    $region140: #{tranad_adversarial_forward.1} parent=1 // pred_region
      _
    $region141: #{tranad_adversarial_forward.1} parent=1 // pred_fallthru
      _
    // Predicated region
    $region142: #{tranad_adversarial_forward.1} parent=1 // pred_check
      _
    $region143: #{tranad_adversarial_forward.1} parent=1 // pred_check_branch
      %156 = sbr.rel (0) target = $region145
    $region144: #{tranad_adversarial_forward.1} parent=1 // pred_region
      _
    $region145: #{tranad_adversarial_forward.1} parent=1 // pred_fallthru
      _
    // Predicated region
    $region146: #{tranad_adversarial_forward.1} parent=1 // pred_check
      _
    $region147: #{tranad_adversarial_forward.1} parent=1 // pred_check_branch
      %158 = sbr.rel (0) target = $region149
    $region148: #{tranad_adversarial_forward.1} parent=1 // pred_region
      _
    $region149: #{tranad_adversarial_forward.1} parent=1 // pred_fallthru
      _
    // Predicated region
    $region150: #{tranad_adversarial_forward.1} parent=1 // pred_check
      _
    $region151: #{tranad_adversarial_forward.1} parent=1 // pred_check_branch
      %160 = sbr.rel (0) target = $region153
    $region152: #{tranad_adversarial_forward.1} parent=1 // pred_region
      _
    $region153: #{tranad_adversarial_forward.1} parent=1 // pred_fallthru
      _
    // Predicated region
    $region154: #{tranad_adversarial_forward.1} parent=1 // pred_check
      _
    $region155: #{tranad_adversarial_forward.1} parent=1 // pred_check_branch
      %162 = sbr.rel (0) target = $region157
    $region156: #{tranad_adversarial_forward.1} parent=1 // pred_region
      _
    $region157: #{tranad_adversarial_forward.1} parent=1 // pred_fallthru
      _
    %v163 = vld [vmem:[%s11] sm:$0xff]
    %v164 = vld [vmem:[%s11 + $0x8] sm:$0xff]
    %v165 = vld [vmem:[%s13] sm:$0x1]
    %v166 = vld [vmem:[%s15] sm:$0xff]
    %v167 = vld [vmem:[%s15 + $0x8] sm:$0xff]
    %v168 = vld [vmem:[%s17] sm:$0x1]
    %v169 = vld [vmem:[%s19] sm:$0xff]
    %v170 = vld [vmem:[%s19 + $0x8] sm:$0xff]
    %v171 = vld [vmem:[%s21] sm:$0x1]
    %v172 = vld [vmem:[%s23] sm:$0xff]
    %v173 = vld [vmem:[%s23 + $0x8] sm:$0xff]
    %v174 = vld [vmem:[%s25] sm:$0x1]
    %v175 = vld [vmem:[%s27] sm:$0xff]
    %v176 = vld [vmem:[%s27 + $0x8] sm:$0xff]
    %v177 = vld [vmem:[%s29] sm:$0x1]
    %v178 = vld [vmem:[%s31] sm:$0xff]
    %v179 = vld [vmem:[%s31 + $0x8] sm:$0xff]
    %v180 = vld [vmem:[%s33] sm:$0x1]
    %v181 = vld [vmem:[%s35] sm:$0xff]
    %v182 = vld [vmem:[%s35 + $0x8] sm:$0xff]
    %v183 = vld [vmem:[%s37] sm:$0x1]
    %v184 = vld [vmem:[%s39] sm:$0xff]
    %v185 = vld [vmem:[%s39 + $0x8] sm:$0xff]
    %v186 = vld [vmem:[%s41] sm:$0x1]
    %v187 = vld [vmem:[%s43] sm:$0xff]
    %v188 = vld [vmem:[%s43 + $0x8] sm:$0xff]
    %v189 = vld [vmem:[%s45] sm:$0x1]
    %v190 = vld [vmem:[%s47] sm:$0xff]
    %v191 = vld [vmem:[%s47 + $0x8] sm:$0xff]
    %v192 = vld [vmem:[%s49] sm:$0x1]
    %v193 = vld [vmem:[%s51] sm:$0xff]
    %v194 = vld [vmem:[%s51 + $0x8] sm:$0xff]
    %v195 = vld [vmem:[%s53] sm:$0x1]
    %v196 = vld [vmem:[%s55] sm:$0xff]
    %v197 = vld [vmem:[%s55 + $0x8] sm:$0xff]
    %v198 = vld [vmem:[%s57] sm:$0x1]
    %v199 = vld [vmem:[%s59] sm:$0xff]
    %v200 = vld [vmem:[%s59 + $0x8] sm:$0xff]
    %v201 = vld [vmem:[%s61] sm:$0x1]
    %v202 = vld [vmem:[%s63] sm:$0xff]
    %v203 = vld [vmem:[%s63 + $0x8] sm:$0xff]
    %v204 = vld [vmem:[%s65] sm:$0x1]
    %v205 = vld [vmem:[%s67] sm:$0xff]
    %v206 = vld [vmem:[%s67 + $0x8] sm:$0xff]
    %v207 = vld [vmem:[%s69] sm:$0x1]
    %v208 = vld [vmem:[%s71] sm:$0xff]
    %v209 = vld [vmem:[%s71 + $0x8] sm:$0xff]
    %v210 = vld [vmem:[%s73] sm:$0x1]
    %v211 = vld [vmem:[%s75] sm:$0xff]
    %v212 = vld [vmem:[%s75 + $0x8] sm:$0xff]
    %v213 = vld [vmem:[%s77] sm:$0x1]
    %v214 = vld [vmem:[%s1] sm:$0xff]
    %v215 = vld [vmem:[%s1 + $0x8] sm:$0x3]
    %v216 = vld [vmem:[%s1 + $0x10] sm:$0xff]
    %v217 = vld [vmem:[%s1 + $0x18] sm:$0x3]
    %v218 = vld [vmem:[%s3] sm:$0x1]
    %v219 = vld [vmem:[%s3 + $0x1] sm:$0x1]
    %v220 = vld [vmem:[%s5] sm:$0xff]
    %v221 = vld [vmem:[%s5 + $0x8] sm:$0x3]
    %v222 = vld [vmem:[%s7] sm:$0xff]
    %v223 = vld [vmem:[%s7 + $0x8] sm:$0xff]
    %v224 = vld [vmem:[%s7 + $0x10] sm:$0xff]
    %v225 = vld [vmem:[%s7 + $0x18] sm:$0xff]
    %v226 = vld [vmem:[%s7 + $0x20] sm:$0xff]
    %v227 = vld [vmem:[%s7 + $0x28] sm:$0xff]
    %v228 = vld [vmem:[%s7 + $0x30] sm:$0xff]
    %v229 = vld [vmem:[%s7 + $0x38] sm:$0xff]
    %v230 = vld [vmem:[%s7 + $0x40] sm:$0xff]
    %v231 = vld [vmem:[%s7 + $0x48] sm:$0xff]
    %v232 = vld [vmem:[%s9] sm:$0xff]
    %vm233 = vcmask 64512
    %v234 = vsel %vm233, %v214, 0.0
    %v235 = vsel %vm233, %v215, 0.0
    %v236 = vsel %vm233, %v216, 0.0
    %v237 = vsel %vm233, %v217, 0.0
    %v238 = vmul.f32 %v234, 2.828427
    %v239 = vmul.f32 %v235, 2.828427
    %v240 = vmul.f32 %v236, 2.828427
    %v241 = vmul.f32 %v237, 2.828427
    %v242 = vadd.f32 %v238, %v220
    %v243 = vadd.f32 %v239, %v221
    %v244 = vadd.f32 %v240, %v220
    %v245 = vadd.f32 %v241, %v221
    %v250 = vrot.slane %v242, 2
    %v251 = vrot.slane %v242, 4
    %v252 = vrot.slane %v242, 6
    %v253 = vrot.slane %v244, 2
    %v254 = vrot.slane %v244, 4
    %v255 = vrot.slane %v244, 6
    %v257 = vperm.slane %v165, 0
    %259 = vst [vmem:[#allocation1] ss:$4 sm:$0xff] %v242
    %s260 = scalar_lea.vmem [#allocation1], 1
    %261 = vst [vmem:[%s260] ss:$4 sm:$0xff] %v250
    %s262 = scalar_lea.vmem [#allocation1], 2
    %263 = vst [vmem:[%s262] ss:$4 sm:$0xff] %v251
    %s264 = scalar_lea.vmem [#allocation1], 3
    %265 = vst [vmem:[%s264] ss:$4 sm:$0xff] %v252
    %s266 = scalar_lea.vmem [#allocation1], 32
    %267 = vst [vmem:[%s266] ss:$4 sm:$0xff] %v243
    %s268 = scalar_lea.vmem [#allocation1], 33
    %269 = vst [vmem:[%s268] ss:$4 sm:$0xff] %v244
    %s270 = scalar_lea.vmem [#allocation1], 34
    %271 = vst [vmem:[%s270] ss:$4 sm:$0xff] %v253
    %s272 = scalar_lea.vmem [#allocation1], 35
    %273 = vst [vmem:[%s272] ss:$4 sm:$0xff] %v254
    %v274 = vld.sshfl [vmem:[#allocation1] sm:$0xff pattern:$0x73625140]
    %v275 = vld.sshfl [vmem:[#allocation1 + $0x20] sm:$0xff pattern:$0x73625140]
    %276 = vst [vmem:[#allocation1] ss:$4 sm:$0xff] %v255
    %277 = vst [vmem:[%s260] ss:$4 sm:$0xff] %v245
    %v278 = vld.sshfl [vmem:[#allocation1] sm:$0xff pattern:$0x73625140]
    %vm279 = vcmask 130048
    %v280 = vsel %vm279, %v274, 0
    %v282 = vsel %vm279, %v275, 0
    %v284 = vsel %vm279, %v278, 0
    %286 = vmatpush.msra.mxu0 0.0
    %287 = vmatpush.msra.mxu0 0.0
    %288 = vmatpush.msra.mxu0 0.0
    %289 = vmatpush.msra.mxu0 0.0
    %290 = vmatpush.msra.mxu0 0.0
    %291 = vmatpush.msra.mxu0 0.0
    %292 = vmatpush.msra.mxu0 0.0
    %293 = vmatpush.msra.mxu0 0.0
    %294 = vmatpush.msra.mxu0 0.0
    %295 = vmatpush.msra.mxu0 0.0
    %296 = vmatpush.msra.mxu0 0.0
    %297 = vmatpush.msra.mxu0 0.0
    %298 = vmatpush.msra.mxu0 0.0
    %299 = vmatpush.msra.mxu0 0.0
    %300 = vmatpush.msra.mxu0 %v164
    %301 = vmatpush.msra.mxu0 %v163
    %302 = vmatmul.f32.gmra.mxu0 %v280
    %v303 = vpop.f32.mrf.mxu0
    %v304 = vadd.f32 %v257, %v303
    %305 = vmatmul.f32.gmra.mxu0 %v282
    %v306 = vpop.f32.mrf.mxu0
    %v307 = vadd.f32 %v257, %v306
    %308 = vmatmul.f32.gmra.mxu0 %v284
    %v309 = vpop.f32.mrf.mxu0
    %v310 = vadd.f32 %v257, %v309
    %311 = vdwg.mxu0
    %v315 = vrot.slane %v304, 2
    %v316 = vrot.slane %v304, 4
    %v317 = vrot.slane %v304, 6
    %v318 = vrot.slane %v307, 2
    %v319 = vrot.slane %v307, 4
    %v320 = vrot.slane %v307, 6
    %v321 = vrot.slane %v310, 2
    %v323 = vperm.slane %v168, 0
    %325 = vst [vmem:[#allocation1] ss:$4 sm:$0xff] %v242
    %s326 = scalar_lea.vmem [#allocation1], 1
    %327 = vst [vmem:[%s326] ss:$4 sm:$0xff] %v250
    %s328 = scalar_lea.vmem [#allocation1], 2
    %329 = vst [vmem:[%s328] ss:$4 sm:$0xff] %v251
    %s330 = scalar_lea.vmem [#allocation1], 3
    %331 = vst [vmem:[%s330] ss:$4 sm:$0xff] %v252
    %s332 = scalar_lea.vmem [#allocation1], 32
    %333 = vst [vmem:[%s332] ss:$4 sm:$0xff] %v243
    %s334 = scalar_lea.vmem [#allocation1], 33
    %335 = vst [vmem:[%s334] ss:$4 sm:$0xff] %v244
    %s336 = scalar_lea.vmem [#allocation1], 34
    %337 = vst [vmem:[%s336] ss:$4 sm:$0xff] %v253
    %s338 = scalar_lea.vmem [#allocation1], 35
    %339 = vst [vmem:[%s338] ss:$4 sm:$0xff] %v254
    %v340 = vld.sshfl [vmem:[#allocation1] sm:$0xff pattern:$0x73625140]
    %v341 = vld.sshfl [vmem:[#allocation1 + $0x20] sm:$0xff pattern:$0x73625140]
    %342 = vst [vmem:[#allocation1] ss:$4 sm:$0xff] %v255
    %343 = vst [vmem:[%s326] ss:$4 sm:$0xff] %v245
    %v344 = vld.sshfl [vmem:[#allocation1] sm:$0xff pattern:$0x73625140]
    %v345 = vsel %vm279, %v340, 0
    %v347 = vsel %vm279, %v341, 0
    %v349 = vsel %vm279, %v344, 0
    %351 = vmatpush.msra.mxu0 0.0
    %352 = vmatpush.msra.mxu0 0.0
    %353 = vmatpush.msra.mxu0 0.0
    %354 = vmatpush.msra.mxu0 0.0
    %355 = vmatpush.msra.mxu0 0.0
    %356 = vmatpush.msra.mxu0 0.0
    %357 = vmatpush.msra.mxu0 0.0
    %358 = vmatpush.msra.mxu0 0.0
    %359 = vmatpush.msra.mxu0 0.0
    %360 = vmatpush.msra.mxu0 0.0
    %361 = vmatpush.msra.mxu0 0.0
    %362 = vmatpush.msra.mxu0 0.0
    %363 = vmatpush.msra.mxu0 0.0
    %364 = vmatpush.msra.mxu0 0.0
    %365 = vmatpush.msra.mxu0 %v167
    %366 = vmatpush.msra.mxu0 %v166
    %367 = vmatmul.f32.gmra.mxu0 %v345
    %v368 = vpop.f32.mrf.mxu0
    %v369 = vadd.f32 %v323, %v368
    %370 = vmatmul.f32.gmra.mxu0 %v347
    %v371 = vpop.f32.mrf.mxu0
    %v372 = vadd.f32 %v323, %v371
    %373 = vmatmul.f32.gmra.mxu0 %v349
    %v374 = vpop.f32.mrf.mxu0
    %v375 = vadd.f32 %v323, %v374
    %376 = vdwg.mxu0
    %v380 = vrot.slane %v369, 2
    %v381 = vrot.slane %v369, 4
    %v382 = vrot.slane %v369, 6
    %v383 = vrot.slane %v372, 2
    %v384 = vrot.slane %v372, 4
    %v385 = vrot.slane %v372, 6
    %v386 = vrot.slane %v375, 2
    %v388 = vperm.slane %v171, 0
    %390 = vst [vmem:[#allocation1] ss:$4 sm:$0xff] %v242
    %s391 = scalar_lea.vmem [#allocation1], 1
    %392 = vst [vmem:[%s391] ss:$4 sm:$0xff] %v250
    %s393 = scalar_lea.vmem [#allocation1], 2
    %394 = vst [vmem:[%s393] ss:$4 sm:$0xff] %v251
    %s395 = scalar_lea.vmem [#allocation1], 3
    %396 = vst [vmem:[%s395] ss:$4 sm:$0xff] %v252
    %s397 = scalar_lea.vmem [#allocation1], 32
    %398 = vst [vmem:[%s397] ss:$4 sm:$0xff] %v243
    %s399 = scalar_lea.vmem [#allocation1], 33
    %400 = vst [vmem:[%s399] ss:$4 sm:$0xff] %v244
    %s401 = scalar_lea.vmem [#allocation1], 34
    %402 = vst [vmem:[%s401] ss:$4 sm:$0xff] %v253
    %s403 = scalar_lea.vmem [#allocation1], 35
    %404 = vst [vmem:[%s403] ss:$4 sm:$0xff] %v254
    %v405 = vld.sshfl [vmem:[#allocation1] sm:$0xff pattern:$0x73625140]
    %v406 = vld.sshfl [vmem:[#allocation1 + $0x20] sm:$0xff pattern:$0x73625140]
    %407 = vst [vmem:[#allocation1] ss:$4 sm:$0xff] %v255
    %408 = vst [vmem:[%s391] ss:$4 sm:$0xff] %v245
    %v409 = vld.sshfl [vmem:[#allocation1] sm:$0xff pattern:$0x73625140]
    %v410 = vsel %vm279, %v405, 0
    %v412 = vsel %vm279, %v406, 0
    %v414 = vsel %vm279, %v409, 0
    %416 = vmatpush.msra.mxu0 0.0
    %417 = vmatpush.msra.mxu0 0.0
    %418 = vmatpush.msra.mxu0 0.0
    %419 = vmatpush.msra.mxu0 0.0
    %420 = vmatpush.msra.mxu0 0.0
    %421 = vmatpush.msra.mxu0 0.0
    %422 = vmatpush.msra.mxu0 0.0
    %423 = vmatpush.msra.mxu0 0.0
    %424 = vmatpush.msra.mxu0 0.0
    %425 = vmatpush.msra.mxu0 0.0
    %426 = vmatpush.msra.mxu0 0.0
    %427 = vmatpush.msra.mxu0 0.0
    %428 = vmatpush.msra.mxu0 0.0
    %429 = vmatpush.msra.mxu0 0.0
    %430 = vmatpush.msra.mxu0 %v170
    %431 = vmatpush.msra.mxu0 %v169
    %432 = vmatmul.f32.gmra.mxu0 %v410
    %v433 = vpop.f32.mrf.mxu0
    %v434 = vadd.f32 %v388, %v433
    %435 = vmatmul.f32.gmra.mxu0 %v412
    %v436 = vpop.f32.mrf.mxu0
    %v437 = vadd.f32 %v388, %v436
    %438 = vmatmul.f32.gmra.mxu0 %v414
    %v439 = vpop.f32.mrf.mxu0
    %v440 = vadd.f32 %v388, %v439
    %441 = vdwg.mxu0
    %v445 = vrot.slane %v434, 2
    %v446 = vrot.slane %v434, 4
    %v447 = vrot.slane %v434, 6
    %v448 = vrot.slane %v437, 2
    %v449 = vrot.slane %v437, 4
    %v450 = vrot.slane %v437, 6
    %v451 = vrot.slane %v440, 2
    %452 = vst [vmem:[#allocation1] ss:$4 sm:$0xff] %v304
    %s453 = scalar_lea.vmem [#allocation1], 1
    %454 = vst [vmem:[%s453] ss:$4 sm:$0xff] %v315
    %s455 = scalar_lea.vmem [#allocation1], 2
    %456 = vst [vmem:[%s455] ss:$4 sm:$0xff] %v316
    %s457 = scalar_lea.vmem [#allocation1], 3
    %458 = vst [vmem:[%s457] ss:$4 sm:$0xff] %v317
    %s459 = scalar_lea.vmem [#allocation1], 32
    %460 = vst [vmem:[%s459] ss:$4 sm:$0xff] %v307
    %v461 = vld.sshfl [vmem:[#allocation1] sm:$0xff pattern:$0x73625140]
    %v462 = vld.sshfl [vmem:[#allocation1 + $0x20] sm:$0xff pattern:$0x73625140]
    %463 = vst [vmem:[#allocation1] ss:$4 sm:$0xff] %v318
    %464 = vst [vmem:[%s453] ss:$4 sm:$0xff] %v319
    %465 = vst [vmem:[%s455] ss:$4 sm:$0xff] %v320
    %466 = vst [vmem:[%s457] ss:$4 sm:$0xff] %v310
    %467 = vst [vmem:[%s459] ss:$4 sm:$0xff] %v321
    %v468 = vld.sshfl [vmem:[#allocation1] sm:$0xff pattern:$0x73625140]
    %v469 = vld.sshfl [vmem:[#allocation1 + $0x20] sm:$0xff pattern:$0x73625140]
    %s474 = scalar_lea.vmem [#allocation1], 1
    %475 = vst [vmem:[%s474] ss:$4 sm:$0xff] %v304
    %s476 = scalar_lea.vmem [#allocation1], 2
    %477 = vst [vmem:[%s476] ss:$4 sm:$0xff] %v315
    %s478 = scalar_lea.vmem [#allocation1], 3
    %479 = vst [vmem:[%s478] ss:$4 sm:$0xff] %v316
    %s480 = scalar_lea.vmem [#allocation1], 32
    %481 = vst [vmem:[%s480] ss:$4 sm:$0xff] %v317
    %s482 = scalar_lea.vmem [#allocation1], 33
    %483 = vst [vmem:[%s482] ss:$4 sm:$0xff] %v307
    %v484 = vld.sshfl [vmem:[#allocation1] sm:$0xff pattern:$0x73625140]
    %v485 = vld.sshfl [vmem:[#allocation1 + $0x20] sm:$0xff pattern:$0x73625140]
    %486 = vst [vmem:[%s474] ss:$4 sm:$0xff] %v318
    %487 = vst [vmem:[%s476] ss:$4 sm:$0xff] %v319
    %488 = vst [vmem:[%s478] ss:$4 sm:$0xff] %v320
    %489 = vst [vmem:[%s480] ss:$4 sm:$0xff] %v310
    %490 = vst [vmem:[%s482] ss:$4 sm:$0xff] %v321
    %v491 = vld.sshfl [vmem:[#allocation1] sm:$0xff pattern:$0x73625140]
    %v492 = vld.sshfl [vmem:[#allocation1 + $0x20] sm:$0xff pattern:$0x73625140]
    %s497 = scalar_lea.vmem [#allocation1], 2
    %498 = vst [vmem:[%s497] ss:$4 sm:$0xff] %v304
    %s499 = scalar_lea.vmem [#allocation1], 3
    %500 = vst [vmem:[%s499] ss:$4 sm:$0xff] %v315
    %s501 = scalar_lea.vmem [#allocation1], 32
    %502 = vst [vmem:[%s501] ss:$4 sm:$0xff] %v316
    %s503 = scalar_lea.vmem [#allocation1], 33
    %504 = vst [vmem:[%s503] ss:$4 sm:$0xff] %v317
    %s505 = scalar_lea.vmem [#allocation1], 34
    %506 = vst [vmem:[%s505] ss:$4 sm:$0xff] %v307
    %v507 = vld.sshfl [vmem:[#allocation1] sm:$0xff pattern:$0x73625140]
    %v508 = vld.sshfl [vmem:[#allocation1 + $0x20] sm:$0xff pattern:$0x73625140]
    %509 = vst [vmem:[%s497] ss:$4 sm:$0xff] %v318
    %510 = vst [vmem:[%s499] ss:$4 sm:$0xff] %v319
    %511 = vst [vmem:[%s501] ss:$4 sm:$0xff] %v320
    %512 = vst [vmem:[%s503] ss:$4 sm:$0xff] %v310
    %513 = vst [vmem:[%s505] ss:$4 sm:$0xff] %v321
    %v514 = vld.sshfl [vmem:[#allocation1] sm:$0xff pattern:$0x73625140]
    %v515 = vld.sshfl [vmem:[#allocation1 + $0x20] sm:$0xff pattern:$0x73625140]
    %s520 = scalar_lea.vmem [#allocation1], 3
    %521 = vst [vmem:[%s520] ss:$4 sm:$0xff] %v304
    %s522 = scalar_lea.vmem [#allocation1], 32
    %523 = vst [vmem:[%s522] ss:$4 sm:$0xff] %v315
    %s524 = scalar_lea.vmem [#allocation1], 33
    %525 = vst [vmem:[%s524] ss:$4 sm:$0xff] %v316
    %s526 = scalar_lea.vmem [#allocation1], 34
    %527 = vst [vmem:[%s526] ss:$4 sm:$0xff] %v317
    %s528 = scalar_lea.vmem [#allocation1], 35
    %529 = vst [vmem:[%s528] ss:$4 sm:$0xff] %v307
    %v530 = vld.sshfl [vmem:[#allocation1] sm:$0xff pattern:$0x73625140]
    %v531 = vld.sshfl [vmem:[#allocation1 + $0x20] sm:$0xff pattern:$0x73625140]
    %532 = vst [vmem:[%s520] ss:$4 sm:$0xff] %v318
    %533 = vst [vmem:[%s522] ss:$4 sm:$0xff] %v319
    %534 = vst [vmem:[%s524] ss:$4 sm:$0xff] %v320
    %535 = vst [vmem:[%s526] ss:$4 sm:$0xff] %v310
    %536 = vst [vmem:[%s528] ss:$4 sm:$0xff] %v321
    %v537 = vld.sshfl [vmem:[#allocation1] sm:$0xff pattern:$0x73625140]
    %v538 = vld.sshfl [vmem:[#allocation1 + $0x20] sm:$0xff pattern:$0x73625140]
    %543 = vst [vmem:[#allocation1] ss:$4 sm:$0xff] %v304
    %s544 = scalar_lea.vmem [#allocation1], 1
    %545 = vst [vmem:[%s544] ss:$4 sm:$0xff] %v315
    %s546 = scalar_lea.vmem [#allocation1], 2
    %547 = vst [vmem:[%s546] ss:$4 sm:$0xff] %v316
    %s548 = scalar_lea.vmem [#allocation1], 3
    %549 = vst [vmem:[%s548] ss:$4 sm:$0xff] %v317
    %s550 = scalar_lea.vmem [#allocation1], 32
    %551 = vst [vmem:[%s550] ss:$4 sm:$0xff] %v307
    %v552 = vld.sshfl [vmem:[#allocation1] sm:$0xff pattern:$0x73625140]
    %v553 = vld.sshfl [vmem:[#allocation1 + $0x20] sm:$0xff pattern:$0x73625140]
    %554 = vst [vmem:[#allocation1] ss:$4 sm:$0xff] %v318
    %555 = vst [vmem:[%s544] ss:$4 sm:$0xff] %v319
    %556 = vst [vmem:[%s546] ss:$4 sm:$0xff] %v320
    %557 = vst [vmem:[%s548] ss:$4 sm:$0xff] %v310
    %558 = vst [vmem:[%s550] ss:$4 sm:$0xff] %v321
    %v559 = vld.sshfl [vmem:[#allocation1] sm:$0xff pattern:$0x73625140]
    %v560 = vld.sshfl [vmem:[#allocation1 + $0x20] sm:$0xff pattern:$0x73625140]
    %s565 = scalar_lea.vmem [#allocation1], 1
    %566 = vst [vmem:[%s565] ss:$4 sm:$0xff] %v304
    %s567 = scalar_lea.vmem [#allocation1], 2
    %568 = vst [vmem:[%s567] ss:$4 sm:$0xff] %v315
    %s569 = scalar_lea.vmem [#allocation1], 3
    %570 = vst [vmem:[%s569] ss:$4 sm:$0xff] %v316
    %s571 = scalar_lea.vmem [#allocation1], 32
    %572 = vst [vmem:[%s571] ss:$4 sm:$0xff] %v317
    %s573 = scalar_lea.vmem [#allocation1], 33
    %574 = vst [vmem:[%s573] ss:$4 sm:$0xff] %v307
    %v575 = vld.sshfl [vmem:[#allocation1] sm:$0xff pattern:$0x73625140]
    %v576 = vld.sshfl [vmem:[#allocation1 + $0x20] sm:$0xff pattern:$0x73625140]
    %577 = vst [vmem:[%s565] ss:$4 sm:$0xff] %v318
    %578 = vst [vmem:[%s567] ss:$4 sm:$0xff] %v319
    %579 = vst [vmem:[%s569] ss:$4 sm:$0xff] %v320
    %580 = vst [vmem:[%s571] ss:$4 sm:$0xff] %v310
    %581 = vst [vmem:[%s573] ss:$4 sm:$0xff] %v321
    %v582 = vld.sshfl [vmem:[#allocation1] sm:$0xff pattern:$0x73625140]
    %v583 = vld.sshfl [vmem:[#allocation1 + $0x20] sm:$0xff pattern:$0x73625140]
    %s588 = scalar_lea.vmem [#allocation1], 2
    %589 = vst [vmem:[%s588] ss:$4 sm:$0xff] %v304
    %s590 = scalar_lea.vmem [#allocation1], 3
    %591 = vst [vmem:[%s590] ss:$4 sm:$0xff] %v315
    %s592 = scalar_lea.vmem [#allocation1], 32
    %593 = vst [vmem:[%s592] ss:$4 sm:$0xff] %v316
    %s594 = scalar_lea.vmem [#allocation1], 33
    %595 = vst [vmem:[%s594] ss:$4 sm:$0xff] %v317
    %s596 = scalar_lea.vmem [#allocation1], 34
    %597 = vst [vmem:[%s596] ss:$4 sm:$0xff] %v307
    %v598 = vld.sshfl [vmem:[#allocation1] sm:$0xff pattern:$0x73625140]
    %v599 = vld.sshfl [vmem:[#allocation1 + $0x20] sm:$0xff pattern:$0x73625140]
    %600 = vst [vmem:[%s588] ss:$4 sm:$0xff] %v318
    %601 = vst [vmem:[%s590] ss:$4 sm:$0xff] %v319
    %602 = vst [vmem:[%s592] ss:$4 sm:$0xff] %v320
    %603 = vst [vmem:[%s594] ss:$4 sm:$0xff] %v310
    %604 = vst [vmem:[%s596] ss:$4 sm:$0xff] %v321
    %v605 = vld.sshfl [vmem:[#allocation1] sm:$0xff pattern:$0x73625140]
    %v606 = vld.sshfl [vmem:[#allocation1 + $0x20] sm:$0xff pattern:$0x73625140]
    %s611 = scalar_lea.vmem [#allocation1], 3
    %612 = vst [vmem:[%s611] ss:$4 sm:$0xff] %v304
    %s613 = scalar_lea.vmem [#allocation1], 32
    %614 = vst [vmem:[%s613] ss:$4 sm:$0xff] %v315
    %s615 = scalar_lea.vmem [#allocation1], 33
    %616 = vst [vmem:[%s615] ss:$4 sm:$0xff] %v316
    %s617 = scalar_lea.vmem [#allocation1], 34
    %618 = vst [vmem:[%s617] ss:$4 sm:$0xff] %v317
    %s619 = scalar_lea.vmem [#allocation1], 35
    %620 = vst [vmem:[%s619] ss:$4 sm:$0xff] %v307
    %v621 = vld.sshfl [vmem:[#allocation1] sm:$0xff pattern:$0x73625140]
    %v622 = vld.sshfl [vmem:[#allocation1 + $0x20] sm:$0xff pattern:$0x73625140]
    %623 = vst [vmem:[%s611] ss:$4 sm:$0xff] %v318
    %624 = vst [vmem:[%s613] ss:$4 sm:$0xff] %v319
    %625 = vst [vmem:[%s615] ss:$4 sm:$0xff] %v320
    %626 = vst [vmem:[%s617] ss:$4 sm:$0xff] %v310
    %627 = vst [vmem:[%s619] ss:$4 sm:$0xff] %v321
    %v628 = vld.sshfl [vmem:[#allocation1] sm:$0xff pattern:$0x73625140]
    %v629 = vld.sshfl [vmem:[#allocation1 + $0x20] sm:$0xff pattern:$0x73625140]
    %vm634 = vcmask 1041408
    %v635 = vsel %vm634, %v462, %v484
    %v636 = vsel %vm634, %v469, %v491
    %vm637 = vcmask 1043456
    %v638 = vsel %vm637, %v485, %v507
    %v639 = vsel %vm637, %v492, %v514
    %vm640 = vcmask 1045504
    %v641 = vsel %vm640, %v508, %v530
    %v642 = vsel %vm640, %v515, %v537
    %v643 = vsel %vm634, %v553, %v575
    %v644 = vsel %vm634, %v560, %v582
    %v645 = vsel %vm637, %v576, %v598
    %v646 = vsel %vm637, %v583, %v605
    %v647 = vsel %vm640, %v599, %v621
    %v648 = vsel %vm640, %v606, %v628
    %v649 = vmul.f32 %v461, %v222
    %v650 = vmul.f32 %v635, %v223
    %v651 = vmul.f32 %v638, %v224
    %v652 = vmul.f32 %v641, %v225
    %v653 = vmul.f32 %v531, %v226
    %v654 = vmul.f32 %v552, %v227
    %v655 = vmul.f32 %v643, %v228
    %v656 = vmul.f32 %v645, %v229
    %v657 = vmul.f32 %v647, %v230
    %v658 = vmul.f32 %v622, %v231
    %v659 = vmul.f32 %v468, %v222
    %v660 = vmul.f32 %v636, %v223
    %v661 = vmul.f32 %v639, %v224
    %v662 = vmul.f32 %v642, %v225
    %v663 = vmul.f32 %v538, %v226
    %v664 = vmul.f32 %v559, %v227
    %v665 = vmul.f32 %v644, %v228
    %v666 = vmul.f32 %v646, %v229
    %v667 = vmul.f32 %v648, %v230
    %v668 = vmul.f32 %v629, %v231
    %669 = vst [vmem:[#allocation1] ss:$4 sm:$0xff] %v369
    %s670 = scalar_lea.vmem [#allocation1], 1
    %671 = vst [vmem:[%s670] ss:$4 sm:$0xff] %v380
    %s672 = scalar_lea.vmem [#allocation1], 2
    %673 = vst [vmem:[%s672] ss:$4 sm:$0xff] %v381
    %s674 = scalar_lea.vmem [#allocation1], 3
    %675 = vst [vmem:[%s674] ss:$4 sm:$0xff] %v382
    %s676 = scalar_lea.vmem [#allocation1], 32
    %677 = vst [vmem:[%s676] ss:$4 sm:$0xff] %v372
    %v678 = vld.sshfl [vmem:[#allocation1] sm:$0xff pattern:$0x73625140]
    %v679 = vld.sshfl [vmem:[#allocation1 + $0x20] sm:$0xff pattern:$0x73625140]
    %v681 = vsel %vm279, %v649, 0
    %v684 = vsel %vm279, %v650, 0
    %v687 = vsel %vm279, %v651, 0
    %v690 = vsel %vm279, %v652, 0
    %v693 = vsel %vm279, %v653, 0
    %v696 = vsel %vm279, %v654, 0
    %v699 = vsel %vm279, %v655, 0
    %v702 = vsel %vm279, %v656, 0
    %v705 = vsel %vm279, %v657, 0
    %v708 = vsel %vm279, %v658, 0
    %v710 = vsel %vm279, %v678, 0
    %v712 = vsel %vm279, %v679, 0
    %714 = vmatpush.xpose.msra.mxu0 0.0
    %715 = vmatpush.xpose.msra.mxu0 0.0
    %716 = vmatpush.xpose.msra.mxu0 0.0
    %717 = vmatpush.xpose.msra.mxu0 0.0
    %718 = vmatpush.xpose.msra.mxu0 0.0
    %719 = vmatpush.xpose.msra.mxu0 0.0
    %720 = vmatpush.xpose.msra.mxu0 0.0
    %721 = vmatpush.xpose.msra.mxu0 0.0
    %722 = vmatpush.xpose.msra.mxu0 0.0
    %723 = vmatpush.xpose.msra.mxu0 0.0
    %724 = vmatpush.xpose.msra.mxu0 0.0
    %725 = vmatpush.xpose.msra.mxu0 0.0
    %726 = vmatpush.xpose.msra.mxu0 0.0
    %727 = vmatpush.xpose.msra.mxu0 0.0
    %728 = vmatpush.xpose.msra.mxu0 %v712
    %729 = vmatpush.xpose.msra.mxu0 %v710
    %730 = vmatmul.f32.gmra.mxu0 %v681
    %v731 = vpop.f32.mrf.mxu0
    %v732 = vadd.f32 0.0, %v731
    %733 = vmatmul.f32.gmra.mxu0 %v684
    %v734 = vpop.f32.mrf.mxu0
    %v735 = vadd.f32 0.0, %v734
    %736 = vmatmul.f32.gmra.mxu0 %v687
    %v737 = vpop.f32.mrf.mxu0
    %v738 = vadd.f32 0.0, %v737
    %739 = vmatmul.f32.gmra.mxu0 %v690
    %v740 = vpop.f32.mrf.mxu0
    %v741 = vadd.f32 0.0, %v740
    %742 = vmatmul.f32.gmra.mxu0 %v693
    %v743 = vpop.f32.mrf.mxu0
    %v744 = vadd.f32 0.0, %v743
    %745 = vmatmul.f32.gmra.mxu0 %v696
    %v746 = vpop.f32.mrf.mxu0
    %v747 = vadd.f32 0.0, %v746
    %748 = vmatmul.f32.gmra.mxu0 %v699
    %v749 = vpop.f32.mrf.mxu0
    %v750 = vadd.f32 0.0, %v749
    %751 = vmatmul.f32.gmra.mxu0 %v702
    %v752 = vpop.f32.mrf.mxu0
    %v753 = vadd.f32 0.0, %v752
    %754 = vmatmul.f32.gmra.mxu0 %v705
    %v755 = vpop.f32.mrf.mxu0
    %v756 = vadd.f32 0.0, %v755
    %757 = vmatmul.f32.gmra.mxu0 %v708
    %v758 = vpop.f32.mrf.mxu0
    %v759 = vadd.f32 0.0, %v758
    %760 = vdwg.mxu0
    %761 = vst [vmem:[#allocation1] ss:$4 sm:$0xff] %v383
    %s762 = scalar_lea.vmem [#allocation1], 1
    %763 = vst [vmem:[%s762] ss:$4 sm:$0xff] %v384
    %s764 = scalar_lea.vmem [#allocation1], 2
    %765 = vst [vmem:[%s764] ss:$4 sm:$0xff] %v385
    %s766 = scalar_lea.vmem [#allocation1], 3
    %767 = vst [vmem:[%s766] ss:$4 sm:$0xff] %v375
    %s768 = scalar_lea.vmem [#allocation1], 32
    %769 = vst [vmem:[%s768] ss:$4 sm:$0xff] %v386
    %v770 = vld.sshfl [vmem:[#allocation1] sm:$0xff pattern:$0x73625140]
    %v771 = vld.sshfl [vmem:[#allocation1 + $0x20] sm:$0xff pattern:$0x73625140]
    %v773 = vsel %vm279, %v659, 0
    %v776 = vsel %vm279, %v660, 0
    %v779 = vsel %vm279, %v661, 0
    %v782 = vsel %vm279, %v662, 0
    %v785 = vsel %vm279, %v663, 0
    %v788 = vsel %vm279, %v664, 0
    %v791 = vsel %vm279, %v665, 0
    %v794 = vsel %vm279, %v666, 0
    %v797 = vsel %vm279, %v667, 0
    %v800 = vsel %vm279, %v668, 0
    %v802 = vsel %vm279, %v770, 0
    %v804 = vsel %vm279, %v771, 0
    %806 = vmatpush.xpose.msra.mxu0 0.0
    %807 = vmatpush.xpose.msra.mxu0 0.0
    %808 = vmatpush.xpose.msra.mxu0 0.0
    %809 = vmatpush.xpose.msra.mxu0 0.0
    %810 = vmatpush.xpose.msra.mxu0 0.0
    %811 = vmatpush.xpose.msra.mxu0 0.0
    %812 = vmatpush.xpose.msra.mxu0 0.0
    %813 = vmatpush.xpose.msra.mxu0 0.0
    %814 = vmatpush.xpose.msra.mxu0 0.0
    %815 = vmatpush.xpose.msra.mxu0 0.0
    %816 = vmatpush.xpose.msra.mxu0 0.0
    %817 = vmatpush.xpose.msra.mxu0 0.0
    %818 = vmatpush.xpose.msra.mxu0 0.0
    %819 = vmatpush.xpose.msra.mxu0 0.0
    %820 = vmatpush.xpose.msra.mxu0 %v804
    %821 = vmatpush.xpose.msra.mxu0 %v802
    %822 = vmatmul.f32.gmra.mxu0 %v773
    %v823 = vpop.f32.mrf.mxu0
    %v824 = vadd.f32 0.0, %v823
    %825 = vmatmul.f32.gmra.mxu0 %v776
    %v826 = vpop.f32.mrf.mxu0
    %v827 = vadd.f32 0.0, %v826
    %828 = vmatmul.f32.gmra.mxu0 %v779
    %v829 = vpop.f32.mrf.mxu0
    %v830 = vadd.f32 0.0, %v829
    %831 = vmatmul.f32.gmra.mxu0 %v782
    %v832 = vpop.f32.mrf.mxu0
    %v833 = vadd.f32 0.0, %v832
    %834 = vmatmul.f32.gmra.mxu0 %v785
    %v835 = vpop.f32.mrf.mxu0
    %v836 = vadd.f32 0.0, %v835
    %837 = vmatmul.f32.gmra.mxu0 %v788
    %v838 = vpop.f32.mrf.mxu0
    %v839 = vadd.f32 0.0, %v838
    %840 = vmatmul.f32.gmra.mxu0 %v791
    %v841 = vpop.f32.mrf.mxu0
    %v842 = vadd.f32 0.0, %v841
    %843 = vmatmul.f32.gmra.mxu0 %v794
    %v844 = vpop.f32.mrf.mxu0
    %v845 = vadd.f32 0.0, %v844
    %846 = vmatmul.f32.gmra.mxu0 %v797
    %v847 = vpop.f32.mrf.mxu0
    %v848 = vadd.f32 0.0, %v847
    %849 = vmatmul.f32.gmra.mxu0 %v800
    %v850 = vpop.f32.mrf.mxu0
    %v851 = vadd.f32 0.0, %v850
    %852 = vdwg.mxu0
    %vm853 = vcmask 80896
    %v854 = vsel %vm853, %v732, -inf
    %855 = vmax.xlane.f32.xlu0 %v854
    %v856 = vpop.xlane.xlu0 %855
    %v857 = vsel %vm853, %v735, -inf
    %858 = vmax.xlane.f32.xlu0 %v857
    %v859 = vpop.xlane.xlu0 %858
    %v860 = vsel %vm853, %v738, -inf
    %861 = vmax.xlane.f32.xlu0 %v860
    %v862 = vpop.xlane.xlu0 %861
    %v863 = vsel %vm853, %v741, -inf
    %864 = vmax.xlane.f32.xlu0 %v863
    %v865 = vpop.xlane.xlu0 %864
    %v866 = vsel %vm853, %v744, -inf
    %867 = vmax.xlane.f32.xlu0 %v866
    %v868 = vpop.xlane.xlu0 %867
    %v869 = vsel %vm853, %v747, -inf
    %870 = vmax.xlane.f32.xlu0 %v869
    %v871 = vpop.xlane.xlu0 %870
    %v872 = vsel %vm853, %v750, -inf
    %873 = vmax.xlane.f32.xlu0 %v872
    %v874 = vpop.xlane.xlu0 %873
    %v875 = vsel %vm853, %v753, -inf
    %876 = vmax.xlane.f32.xlu0 %v875
    %v877 = vpop.xlane.xlu0 %876
    %v878 = vsel %vm853, %v756, -inf
    %879 = vmax.xlane.f32.xlu0 %v878
    %v880 = vpop.xlane.xlu0 %879
    %v881 = vsel %vm853, %v759, -inf
    %882 = vmax.xlane.f32.xlu0 %v881
    %v883 = vpop.xlane.xlu0 %882
    %v884 = vsel %vm853, %v824, -inf
    %885 = vmax.xlane.f32.xlu0 %v884
    %v886 = vpop.xlane.xlu0 %885
    %v887 = vsel %vm853, %v827, -inf
    %888 = vmax.xlane.f32.xlu0 %v887
    %v889 = vpop.xlane.xlu0 %888
    %v890 = vsel %vm853, %v830, -inf
    %891 = vmax.xlane.f32.xlu0 %v890
    %v892 = vpop.xlane.xlu0 %891
    %v893 = vsel %vm853, %v833, -inf
    %894 = vmax.xlane.f32.xlu0 %v893
    %v895 = vpop.xlane.xlu0 %894
    %v896 = vsel %vm853, %v836, -inf
    %897 = vmax.xlane.f32.xlu0 %v896
    %v898 = vpop.xlane.xlu0 %897
    %v899 = vsel %vm853, %v839, -inf
    %900 = vmax.xlane.f32.xlu0 %v899
    %v901 = vpop.xlane.xlu0 %900
    %v902 = vsel %vm853, %v842, -inf
    %903 = vmax.xlane.f32.xlu0 %v902
    %v904 = vpop.xlane.xlu0 %903
    %v905 = vsel %vm853, %v845, -inf
    %906 = vmax.xlane.f32.xlu0 %v905
    %v907 = vpop.xlane.xlu0 %906
    %v908 = vsel %vm853, %v848, -inf
    %909 = vmax.xlane.f32.xlu0 %v908
    %v910 = vpop.xlane.xlu0 %909
    %v911 = vsel %vm853, %v851, -inf
    %912 = vmax.xlane.f32.xlu0 %v911
    %v913 = vpop.xlane.xlu0 %912
    %v914 = vsub.f32 %v732, %v856
    %v915 = vsub.f32 %v735, %v859
    %v916 = vsub.f32 %v738, %v862
    %v917 = vsub.f32 %v741, %v865
    %v918 = vsub.f32 %v744, %v868
    %v919 = vsub.f32 %v747, %v871
    %v920 = vsub.f32 %v750, %v874
    %v921 = vsub.f32 %v753, %v877
    %v922 = vsub.f32 %v756, %v880
    %v923 = vsub.f32 %v759, %v883
    %v924 = vsub.f32 %v824, %v886
    %v925 = vsub.f32 %v827, %v889
    %v926 = vsub.f32 %v830, %v892
    %v927 = vsub.f32 %v833, %v895
    %v928 = vsub.f32 %v836, %v898
    %v929 = vsub.f32 %v839, %v901
    %v930 = vsub.f32 %v842, %v904
    %v931 = vsub.f32 %v845, %v907
    %v932 = vsub.f32 %v848, %v910
    %v933 = vsub.f32 %v851, %v913
    %v934 = vmul.f32 %v914, 1.442695
    %v935 = vpow.pop %v934
    %v936 = vmul.f32 %v915, 1.442695
    %v937 = vpow.pop %v936
    %v938 = vmul.f32 %v916, 1.442695
    %v939 = vpow.pop %v938
    %v940 = vmul.f32 %v917, 1.442695
    %v941 = vpow.pop %v940
    %v942 = vmul.f32 %v918, 1.442695
    %v943 = vpow.pop %v942
    %v944 = vmul.f32 %v919, 1.442695
    %v945 = vpow.pop %v944
    %v946 = vmul.f32 %v920, 1.442695
    %v947 = vpow.pop %v946
    %v948 = vmul.f32 %v921, 1.442695
    %v949 = vpow.pop %v948
    %v950 = vmul.f32 %v922, 1.442695
    %v951 = vpow.pop %v950
    %v952 = vmul.f32 %v923, 1.442695
    %v953 = vpow.pop %v952
    %v954 = vmul.f32 %v924, 1.442695
    %v955 = vpow.pop %v954
    %v956 = vmul.f32 %v925, 1.442695
    %v957 = vpow.pop %v956
    %v958 = vmul.f32 %v926, 1.442695
    %v959 = vpow.pop %v958
    %v960 = vmul.f32 %v927, 1.442695
    %v961 = vpow.pop %v960
    %v962 = vmul.f32 %v928, 1.442695
    %v963 = vpow.pop %v962
    %v964 = vmul.f32 %v929, 1.442695
    %v965 = vpow.pop %v964
    %v966 = vmul.f32 %v930, 1.442695
    %v967 = vpow.pop %v966
    %v968 = vmul.f32 %v931, 1.442695
    %v969 = vpow.pop %v968
    %v970 = vmul.f32 %v932, 1.442695
    %v971 = vpow.pop %v970
    %v972 = vmul.f32 %v933, 1.442695
    %v973 = vpow.pop %v972
    %v974 = vsel %vm853, %v935, 0.0
    %975 = vadd.xlane.f32.xlu0 %v974
    %v976 = vpop.xlane.xlu0 %975
    %v977 = vsel %vm853, %v937, 0.0
    %978 = vadd.xlane.f32.xlu0 %v977
    %v979 = vpop.xlane.xlu0 %978
    %v980 = vsel %vm853, %v939, 0.0
    %981 = vadd.xlane.f32.xlu0 %v980
    %v982 = vpop.xlane.xlu0 %981
    %v983 = vsel %vm853, %v941, 0.0
    %984 = vadd.xlane.f32.xlu0 %v983
    %v985 = vpop.xlane.xlu0 %984
    %v986 = vsel %vm853, %v943, 0.0
    %987 = vadd.xlane.f32.xlu0 %v986
    %v988 = vpop.xlane.xlu0 %987
    %v989 = vsel %vm853, %v945, 0.0
    %990 = vadd.xlane.f32.xlu0 %v989
    %v991 = vpop.xlane.xlu0 %990
    %v992 = vsel %vm853, %v947, 0.0
    %993 = vadd.xlane.f32.xlu0 %v992
    %v994 = vpop.xlane.xlu0 %993
    %v995 = vsel %vm853, %v949, 0.0
    %996 = vadd.xlane.f32.xlu0 %v995
    %v997 = vpop.xlane.xlu0 %996
    %v998 = vsel %vm853, %v951, 0.0
    %999 = vadd.xlane.f32.xlu0 %v998
    %v1000 = vpop.xlane.xlu0 %999
    %v1001 = vsel %vm853, %v953, 0.0
    %1002 = vadd.xlane.f32.xlu0 %v1001
    %v1003 = vpop.xlane.xlu0 %1002
    %v1004 = vsel %vm853, %v955, 0.0
    %1005 = vadd.xlane.f32.xlu0 %v1004
    %v1006 = vpop.xlane.xlu0 %1005
    %v1007 = vsel %vm853, %v957, 0.0
    %1008 = vadd.xlane.f32.xlu0 %v1007
    %v1009 = vpop.xlane.xlu0 %1008
    %v1010 = vsel %vm853, %v959, 0.0
    %1011 = vadd.xlane.f32.xlu0 %v1010
    %v1012 = vpop.xlane.xlu0 %1011
    %v1013 = vsel %vm853, %v961, 0.0
    %1014 = vadd.xlane.f32.xlu0 %v1013
    %v1015 = vpop.xlane.xlu0 %1014
    %v1016 = vsel %vm853, %v963, 0.0
    %1017 = vadd.xlane.f32.xlu0 %v1016
    %v1018 = vpop.xlane.xlu0 %1017
    %v1019 = vsel %vm853, %v965, 0.0
    %1020 = vadd.xlane.f32.xlu0 %v1019
    %v1021 = vpop.xlane.xlu0 %1020
    %v1022 = vsel %vm853, %v967, 0.0
    %1023 = vadd.xlane.f32.xlu0 %v1022
    %v1024 = vpop.xlane.xlu0 %1023
    %v1025 = vsel %vm853, %v969, 0.0
    %1026 = vadd.xlane.f32.xlu0 %v1025
    %v1027 = vpop.xlane.xlu0 %1026
    %v1028 = vsel %vm853, %v971, 0.0
    %1029 = vadd.xlane.f32.xlu0 %v1028
    %v1030 = vpop.xlane.xlu0 %1029
    %v1031 = vsel %vm853, %v973, 0.0
    %1032 = vadd.xlane.f32.xlu0 %v1031
    %v1033 = vpop.xlane.xlu0 %1032
    %v1034 = vrcp.pop %v976
    %v1035 = vrcp.pop %v979
    %v1036 = vrcp.pop %v982
    %v1037 = vrcp.pop %v985
    %v1038 = vrcp.pop %v988
    %v1039 = vrcp.pop %v991
    %v1040 = vrcp.pop %v994
    %v1041 = vrcp.pop %v997
    %v1042 = vrcp.pop %v1000
    %v1043 = vrcp.pop %v1003
    %v1044 = vrcp.pop %v1006
    %v1045 = vrcp.pop %v1009
    %v1046 = vrcp.pop %v1012
    %v1047 = vrcp.pop %v1015
    %v1048 = vrcp.pop %v1018
    %v1049 = vrcp.pop %v1021
    %v1050 = vrcp.pop %v1024
    %v1051 = vrcp.pop %v1027
    %v1052 = vrcp.pop %v1030
    %v1053 = vrcp.pop %v1033
    %v1054 = vmul.f32 %v935, %v1034
    %v1055 = vmul.f32 %v937, %v1035
    %v1056 = vmul.f32 %v939, %v1036
    %v1057 = vmul.f32 %v941, %v1037
    %v1058 = vmul.f32 %v943, %v1038
    %v1059 = vmul.f32 %v945, %v1039
    %v1060 = vmul.f32 %v947, %v1040
    %v1061 = vmul.f32 %v949, %v1041
    %v1062 = vmul.f32 %v951, %v1042
    %v1063 = vmul.f32 %v953, %v1043
    %v1064 = vmul.f32 %v955, %v1044
    %v1065 = vmul.f32 %v957, %v1045
    %v1066 = vmul.f32 %v959, %v1046
    %v1067 = vmul.f32 %v961, %v1047
    %v1068 = vmul.f32 %v963, %v1048
    %v1069 = vmul.f32 %v965, %v1049
    %v1070 = vmul.f32 %v967, %v1050
    %v1071 = vmul.f32 %v969, %v1051
    %v1072 = vmul.f32 %v971, %v1052
    %v1073 = vmul.f32 %v973, %v1053
    %1074 = vst [vmem:[#allocation1] ss:$4 sm:$0xff] %v434
    %s1075 = scalar_lea.vmem [#allocation1], 1
    %1076 = vst [vmem:[%s1075] ss:$4 sm:$0xff] %v445
    %s1077 = scalar_lea.vmem [#allocation1], 2
    %1078 = vst [vmem:[%s1077] ss:$4 sm:$0xff] %v446
    %s1079 = scalar_lea.vmem [#allocation1], 3
    %1080 = vst [vmem:[%s1079] ss:$4 sm:$0xff] %v447
    %s1081 = scalar_lea.vmem [#allocation1], 32
    %1082 = vst [vmem:[%s1081] ss:$4 sm:$0xff] %v437
    %v1083 = vld.sshfl [vmem:[#allocation1] sm:$0xff pattern:$0x73625140]
    %v1084 = vld.sshfl [vmem:[#allocation1 + $0x20] sm:$0xff pattern:$0x73625140]
    %v1087 = vsel %vm853, %v1054, 0
    %v1090 = vsel %vm853, %v1055, 0
    %v1093 = vsel %vm853, %v1056, 0
    %v1096 = vsel %vm853, %v1057, 0
    %v1099 = vsel %vm853, %v1058, 0
    %v1102 = vsel %vm853, %v1059, 0
    %v1105 = vsel %vm853, %v1060, 0
    %v1108 = vsel %vm853, %v1061, 0
    %v1111 = vsel %vm853, %v1062, 0
    %v1114 = vsel %vm853, %v1063, 0
    %v1116 = vsel %vm634, %v1084, 0
    %1118 = vmatpush.msra.mxu0 0.0
    %1119 = vmatpush.msra.mxu0 0.0
    %1120 = vmatpush.msra.mxu0 0.0
    %1121 = vmatpush.msra.mxu0 0.0
    %1122 = vmatpush.msra.mxu0 0.0
    %1123 = vmatpush.msra.mxu0 0.0
    %1124 = vmatpush.msra.mxu0 0.0
    %1125 = vmatpush.msra.mxu0 0.0
    %1126 = vmatpush.msra.mxu0 0.0
    %1127 = vmatpush.msra.mxu0 0.0
    %1128 = vmatpush.msra.mxu0 0.0
    %1129 = vmatpush.msra.mxu0 0.0
    %1130 = vmatpush.msra.mxu0 0.0
    %1131 = vmatpush.msra.mxu0 0.0
    %1132 = vmatpush.msra.mxu0 %v1116
    %1133 = vmatpush.msra.mxu0 %v1083
    %1134 = vmatmul.f32.gmra.mxu0 %v1087
    %v1135 = vpop.f32.mrf.mxu0
    %v1136 = vadd.f32 0.0, %v1135
    %1137 = vmatmul.f32.gmra.mxu0 %v1090
    %v1138 = vpop.f32.mrf.mxu0
    %v1139 = vadd.f32 0.0, %v1138
    %1140 = vmatmul.f32.gmra.mxu0 %v1093
    %v1141 = vpop.f32.mrf.mxu0
    %v1142 = vadd.f32 0.0, %v1141
    %1143 = vmatmul.f32.gmra.mxu0 %v1096
    %v1144 = vpop.f32.mrf.mxu0
    %v1145 = vadd.f32 0.0, %v1144
    %1146 = vmatmul.f32.gmra.mxu0 %v1099
    %v1147 = vpop.f32.mrf.mxu0
    %v1148 = vadd.f32 0.0, %v1147
    %1149 = vmatmul.f32.gmra.mxu0 %v1102
    %v1150 = vpop.f32.mrf.mxu0
    %v1151 = vadd.f32 0.0, %v1150
    %1152 = vmatmul.f32.gmra.mxu0 %v1105
    %v1153 = vpop.f32.mrf.mxu0
    %v1154 = vadd.f32 0.0, %v1153
    %1155 = vmatmul.f32.gmra.mxu0 %v1108
    %v1156 = vpop.f32.mrf.mxu0
    %v1157 = vadd.f32 0.0, %v1156
    %1158 = vmatmul.f32.gmra.mxu0 %v1111
    %v1159 = vpop.f32.mrf.mxu0
    %v1160 = vadd.f32 0.0, %v1159
    %1161 = vmatmul.f32.gmra.mxu0 %v1114
    %v1162 = vpop.f32.mrf.mxu0
    %v1163 = vadd.f32 0.0, %v1162
    %1164 = vdwg.mxu0
    %1165 = vst [vmem:[#allocation1] ss:$4 sm:$0xff] %v448
    %s1166 = scalar_lea.vmem [#allocation1], 1
    %1167 = vst [vmem:[%s1166] ss:$4 sm:$0xff] %v449
    %s1168 = scalar_lea.vmem [#allocation1], 2
    %1169 = vst [vmem:[%s1168] ss:$4 sm:$0xff] %v450
    %s1170 = scalar_lea.vmem [#allocation1], 3
    %1171 = vst [vmem:[%s1170] ss:$4 sm:$0xff] %v440
    %s1172 = scalar_lea.vmem [#allocation1], 32
    %1173 = vst [vmem:[%s1172] ss:$4 sm:$0xff] %v451
    %v1174 = vld.sshfl [vmem:[#allocation1] sm:$0xff pattern:$0x73625140]
    %v1175 = vld.sshfl [vmem:[#allocation1 + $0x20] sm:$0xff pattern:$0x73625140]
    %v1178 = vsel %vm853, %v1064, 0
    %v1181 = vsel %vm853, %v1065, 0
    %v1184 = vsel %vm853, %v1066, 0
    %v1187 = vsel %vm853, %v1067, 0
    %v1190 = vsel %vm853, %v1068, 0
    %v1193 = vsel %vm853, %v1069, 0
    %v1196 = vsel %vm853, %v1070, 0
    %v1199 = vsel %vm853, %v1071, 0
    %v1202 = vsel %vm853, %v1072, 0
    %v1205 = vsel %vm853, %v1073, 0
    %v1207 = vsel %vm634, %v1175, 0
    %1209 = vmatpush.msra.mxu0 0.0
    %1210 = vmatpush.msra.mxu0 0.0
    %1211 = vmatpush.msra.mxu0 0.0
    %1212 = vmatpush.msra.mxu0 0.0
    %1213 = vmatpush.msra.mxu0 0.0
    %1214 = vmatpush.msra.mxu0 0.0
    %1215 = vmatpush.msra.mxu0 0.0
    %1216 = vmatpush.msra.mxu0 0.0
    %1217 = vmatpush.msra.mxu0 0.0
    %1218 = vmatpush.msra.mxu0 0.0
    %1219 = vmatpush.msra.mxu0 0.0
    %1220 = vmatpush.msra.mxu0 0.0
    %1221 = vmatpush.msra.mxu0 0.0
    %1222 = vmatpush.msra.mxu0 0.0
    %1223 = vmatpush.msra.mxu0 %v1207
    %1224 = vmatpush.msra.mxu0 %v1174
    %1225 = vmatmul.f32.gmra.mxu0 %v1178
    %v1226 = vpop.f32.mrf.mxu0
    %v1227 = vadd.f32 0.0, %v1226
    %1228 = vmatmul.f32.gmra.mxu0 %v1181
    %v1229 = vpop.f32.mrf.mxu0
    %v1230 = vadd.f32 0.0, %v1229
    %1231 = vmatmul.f32.gmra.mxu0 %v1184
    %v1232 = vpop.f32.mrf.mxu0
    %v1233 = vadd.f32 0.0, %v1232
    %1234 = vmatmul.f32.gmra.mxu0 %v1187
    %v1235 = vpop.f32.mrf.mxu0
    %v1236 = vadd.f32 0.0, %v1235
    %1237 = vmatmul.f32.gmra.mxu0 %v1190
    %v1238 = vpop.f32.mrf.mxu0
    %v1239 = vadd.f32 0.0, %v1238
    %1240 = vmatmul.f32.gmra.mxu0 %v1193
    %v1241 = vpop.f32.mrf.mxu0
    %v1242 = vadd.f32 0.0, %v1241
    %1243 = vmatmul.f32.gmra.mxu0 %v1196
    %v1244 = vpop.f32.mrf.mxu0
    %v1245 = vadd.f32 0.0, %v1244
    %1246 = vmatmul.f32.gmra.mxu0 %v1199
    %v1247 = vpop.f32.mrf.mxu0
    %v1248 = vadd.f32 0.0, %v1247
    %1249 = vmatmul.f32.gmra.mxu0 %v1202
    %v1250 = vpop.f32.mrf.mxu0
    %v1251 = vadd.f32 0.0, %v1250
    %1252 = vmatmul.f32.gmra.mxu0 %v1205
    %v1253 = vpop.f32.mrf.mxu0
    %v1254 = vadd.f32 0.0, %v1253
    %1255 = vdwg.mxu0
    %v1256 = vmul.f32 %v1136, %v222
    %v1257 = vmul.f32 %v1139, %v223
    %v1258 = vmul.f32 %v1142, %v224
    %v1259 = vmul.f32 %v1145, %v225
    %v1260 = vmul.f32 %v1148, %v226
    %v1261 = vmul.f32 %v1151, %v227
    %v1262 = vmul.f32 %v1154, %v228
    %v1263 = vmul.f32 %v1157, %v229
    %v1264 = vmul.f32 %v1160, %v230
    %v1265 = vmul.f32 %v1163, %v231
    %v1266 = vmul.f32 %v1227, %v222
    %v1267 = vmul.f32 %v1230, %v223
    %v1268 = vmul.f32 %v1233, %v224
    %v1269 = vmul.f32 %v1236, %v225
    %v1270 = vmul.f32 %v1239, %v226
    %v1271 = vmul.f32 %v1242, %v227
    %v1272 = vmul.f32 %v1245, %v228
    %v1273 = vmul.f32 %v1248, %v229
    %v1274 = vmul.f32 %v1251, %v230
    %v1275 = vmul.f32 %v1254, %v231
    %v1280 = vrot.slane %v1257, 2
    %v1281 = vrot.slane %v1258, 2
    %v1282 = vsel %vm640, %v1280, %v1281
    %v1283 = vrot.slane %v1267, 2
    %v1284 = vrot.slane %v1268, 2
    %v1285 = vsel %vm640, %v1283, %v1284
    %v1290 = vadd.f32 %v1256, %v1282
    %v1291 = vadd.f32 %v1257, %v1281
    %v1292 = vadd.f32 %v1266, %v1285
    %v1293 = vadd.f32 %v1267, %v1284
    %v1296 = vrot.slane %v1258, 4
    %v1297 = vrot.slane %v1259, 4
    %v1298 = vsel %vm637, %v1296, %v1297
    %v1299 = vrot.slane %v1268, 4
    %v1300 = vrot.slane %v1269, 4
    %v1301 = vsel %vm637, %v1299, %v1300
    %v1306 = vadd.f32 %v1290, %v1298
    %v1307 = vadd.f32 %v1291, %v1297
    %v1308 = vadd.f32 %v1292, %v1301
    %v1309 = vadd.f32 %v1293, %v1300
    %v1312 = vrot.slane %v1259, 6
    %v1313 = vrot.slane %v1260, 6
    %v1314 = vsel %vm634, %v1312, %v1313
    %v1315 = vrot.slane %v1269, 6
    %v1316 = vrot.slane %v1270, 6
    %v1317 = vsel %vm634, %v1315, %v1316
    %v1322 = vadd.f32 %v1306, %v1314
    %v1323 = vadd.f32 %v1307, %v1313
    %v1324 = vadd.f32 %v1308, %v1317
    %v1325 = vadd.f32 %v1309, %v1316
    %v1326 = vadd.f32 %v1322, %v1261
    %v1327 = vadd.f32 %v1323, %v1262
    %v1328 = vadd.f32 %v1324, %v1271
    %v1329 = vadd.f32 %v1325, %v1272
    %v1334 = vrot.slane %v1262, 2
    %v1335 = vrot.slane %v1263, 2
    %v1336 = vsel %vm640, %v1334, %v1335
    %v1337 = vrot.slane %v1272, 2
    %v1338 = vrot.slane %v1273, 2
    %v1339 = vsel %vm640, %v1337, %v1338
    %v1344 = vadd.f32 %v1326, %v1336
    %v1345 = vadd.f32 %v1327, %v1335
    %v1346 = vadd.f32 %v1328, %v1339
    %v1347 = vadd.f32 %v1329, %v1338
    %v1350 = vrot.slane %v1263, 4
    %v1351 = vrot.slane %v1264, 4
    %v1352 = vsel %vm637, %v1350, %v1351
    %v1353 = vrot.slane %v1273, 4
    %v1354 = vrot.slane %v1274, 4
    %v1355 = vsel %vm637, %v1353, %v1354
    %v1360 = vadd.f32 %v1344, %v1352
    %v1361 = vadd.f32 %v1345, %v1351
    %v1362 = vadd.f32 %v1346, %v1355
    %v1363 = vadd.f32 %v1347, %v1354
    %v1366 = vrot.slane %v1264, 6
    %v1367 = vrot.slane %v1265, 6
    %v1368 = vsel %vm634, %v1366, %v1367
    %v1369 = vrot.slane %v1274, 6
    %v1370 = vrot.slane %v1275, 6
    %v1371 = vsel %vm634, %v1369, %v1370
    %v1376 = vadd.f32 %v1360, %v1368
    %v1377 = vadd.f32 %v1361, %v1367
    %v1378 = vadd.f32 %v1362, %v1371
    %v1379 = vadd.f32 %v1363, %v1370
    %v1384 = vrot.slane %v1376, 2
    %v1385 = vrot.slane %v1376, 4
    %v1386 = vrot.slane %v1376, 6
    %v1387 = vrot.slane %v1378, 2
    %v1388 = vrot.slane %v1378, 4
    %v1389 = vrot.slane %v1378, 6
    %v1391 = vperm.slane %v174, 0
    %1393 = vst [vmem:[#allocation1] ss:$4 sm:$0xff] %v1376
    %s1394 = scalar_lea.vmem [#allocation1], 1
    %1395 = vst [vmem:[%s1394] ss:$4 sm:$0xff] %v1384
    %s1396 = scalar_lea.vmem [#allocation1], 2
    %1397 = vst [vmem:[%s1396] ss:$4 sm:$0xff] %v1385
    %s1398 = scalar_lea.vmem [#allocation1], 3
    %1399 = vst [vmem:[%s1398] ss:$4 sm:$0xff] %v1386
    %s1400 = scalar_lea.vmem [#allocation1], 32
    %1401 = vst [vmem:[%s1400] ss:$4 sm:$0xff] %v1377
    %s1402 = scalar_lea.vmem [#allocation1], 33
    %1403 = vst [vmem:[%s1402] ss:$4 sm:$0xff] %v1378
    %s1404 = scalar_lea.vmem [#allocation1], 34
    %1405 = vst [vmem:[%s1404] ss:$4 sm:$0xff] %v1387
    %s1406 = scalar_lea.vmem [#allocation1], 35
    %1407 = vst [vmem:[%s1406] ss:$4 sm:$0xff] %v1388
    %v1408 = vld.sshfl [vmem:[#allocation1] sm:$0xff pattern:$0x73625140]
    %v1409 = vld.sshfl [vmem:[#allocation1 + $0x20] sm:$0xff pattern:$0x73625140]
    %1410 = vst [vmem:[#allocation1] ss:$4 sm:$0xff] %v1389
    %1411 = vst [vmem:[%s1394] ss:$4 sm:$0xff] %v1379
    %v1412 = vld.sshfl [vmem:[#allocation1] sm:$0xff pattern:$0x73625140]
    %v1413 = vsel %vm279, %v1408, 0
    %v1415 = vsel %vm279, %v1409, 0
    %v1417 = vsel %vm279, %v1412, 0
    %1419 = vmatpush.msra.mxu0 0.0
    %1420 = vmatpush.msra.mxu0 0.0
    %1421 = vmatpush.msra.mxu0 0.0
    %1422 = vmatpush.msra.mxu0 0.0
    %1423 = vmatpush.msra.mxu0 0.0
    %1424 = vmatpush.msra.mxu0 0.0
    %1425 = vmatpush.msra.mxu0 0.0
    %1426 = vmatpush.msra.mxu0 0.0
    %1427 = vmatpush.msra.mxu0 0.0
    %1428 = vmatpush.msra.mxu0 0.0
    %1429 = vmatpush.msra.mxu0 0.0
    %1430 = vmatpush.msra.mxu0 0.0
    %1431 = vmatpush.msra.mxu0 0.0
    %1432 = vmatpush.msra.mxu0 0.0
    %1433 = vmatpush.msra.mxu0 %v173
    %1434 = vmatpush.msra.mxu0 %v172
    %1435 = vmatmul.f32.gmra.mxu0 %v1413
    %v1436 = vpop.f32.mrf.mxu0
    %v1437 = vadd.f32 %v1391, %v1436
    %1438 = vmatmul.f32.gmra.mxu0 %v1415
    %v1439 = vpop.f32.mrf.mxu0
    %v1440 = vadd.f32 %v1391, %v1439
    %1441 = vmatmul.f32.gmra.mxu0 %v1417
    %v1442 = vpop.f32.mrf.mxu0
    %v1443 = vadd.f32 %v1391, %v1442
    %1444 = vdwg.mxu0
    %v1448 = vrot.slane %v1437, 2
    %v1449 = vrot.slane %v1437, 4
    %v1450 = vrot.slane %v1437, 6
    %v1451 = vrot.slane %v1440, 2
    %v1452 = vrot.slane %v1440, 4
    %v1453 = vrot.slane %v1440, 6
    %v1454 = vrot.slane %v1443, 2
    %1455 = vst [vmem:[#allocation1] ss:$4 sm:$0xff] %v1437
    %s1456 = scalar_lea.vmem [#allocation1], 1
    %1457 = vst [vmem:[%s1456] ss:$4 sm:$0xff] %v1448
    %s1458 = scalar_lea.vmem [#allocation1], 2
    %1459 = vst [vmem:[%s1458] ss:$4 sm:$0xff] %v1449
    %s1460 = scalar_lea.vmem [#allocation1], 3
    %1461 = vst [vmem:[%s1460] ss:$4 sm:$0xff] %v1450
    %s1462 = scalar_lea.vmem [#allocation1], 32
    %1463 = vst [vmem:[%s1462] ss:$4 sm:$0xff] %v1440
    %v1464 = vld.sshfl [vmem:[#allocation1] sm:$0xff pattern:$0x73625140]
    %v1465 = vld.sshfl [vmem:[#allocation1 + $0x20] sm:$0xff pattern:$0x73625140]
    %1466 = vst [vmem:[#allocation1] ss:$4 sm:$0xff] %v1451
    %1467 = vst [vmem:[%s1456] ss:$4 sm:$0xff] %v1452
    %1468 = vst [vmem:[%s1458] ss:$4 sm:$0xff] %v1453
    %1469 = vst [vmem:[%s1460] ss:$4 sm:$0xff] %v1443
    %1470 = vst [vmem:[%s1462] ss:$4 sm:$0xff] %v1454
    %v1471 = vld.sshfl [vmem:[#allocation1] sm:$0xff pattern:$0x73625140]
    %v1472 = vld.sshfl [vmem:[#allocation1 + $0x20] sm:$0xff pattern:$0x73625140]
    %v1477 = vadd.f32 %v242, %v1464
    %v1478 = vadd.f32 %v243, %v1465
    %v1479 = vadd.f32 %v244, %v1471
    %v1480 = vadd.f32 %v245, %v1472
    %v1485 = vrot.slane %v1477, 2
    %v1486 = vrot.slane %v1477, 4
    %v1487 = vrot.slane %v1477, 6
    %v1488 = vrot.slane %v1479, 2
    %v1489 = vrot.slane %v1479, 4
    %v1490 = vrot.slane %v1479, 6
    %v1492 = vperm.slane %v177, 0
    %1494 = vst [vmem:[#allocation1] ss:$4 sm:$0xff] %v1477
    %s1495 = scalar_lea.vmem [#allocation1], 1
    %1496 = vst [vmem:[%s1495] ss:$4 sm:$0xff] %v1485
    %s1497 = scalar_lea.vmem [#allocation1], 2
    %1498 = vst [vmem:[%s1497] ss:$4 sm:$0xff] %v1486
    %s1499 = scalar_lea.vmem [#allocation1], 3
    %1500 = vst [vmem:[%s1499] ss:$4 sm:$0xff] %v1487
    %s1501 = scalar_lea.vmem [#allocation1], 32
    %1502 = vst [vmem:[%s1501] ss:$4 sm:$0xff] %v1478
    %s1503 = scalar_lea.vmem [#allocation1], 33
    %1504 = vst [vmem:[%s1503] ss:$4 sm:$0xff] %v1479
    %s1505 = scalar_lea.vmem [#allocation1], 34
    %1506 = vst [vmem:[%s1505] ss:$4 sm:$0xff] %v1488
    %s1507 = scalar_lea.vmem [#allocation1], 35
    %1508 = vst [vmem:[%s1507] ss:$4 sm:$0xff] %v1489
    %v1509 = vld.sshfl [vmem:[#allocation1] sm:$0xff pattern:$0x73625140]
    %v1510 = vld.sshfl [vmem:[#allocation1 + $0x20] sm:$0xff pattern:$0x73625140]
    %1511 = vst [vmem:[#allocation1] ss:$4 sm:$0xff] %v1490
    %1512 = vst [vmem:[%s1495] ss:$4 sm:$0xff] %v1480
    %v1513 = vld.sshfl [vmem:[#allocation1] sm:$0xff pattern:$0x73625140]
    %v1514 = vsel %vm279, %v1509, 0
    %v1516 = vsel %vm279, %v1510, 0
    %v1518 = vsel %vm279, %v1513, 0
    %1520 = vmatpush.msra.mxu0 0.0
    %1521 = vmatpush.msra.mxu0 0.0
    %1522 = vmatpush.msra.mxu0 0.0
    %1523 = vmatpush.msra.mxu0 0.0
    %1524 = vmatpush.msra.mxu0 0.0
    %1525 = vmatpush.msra.mxu0 0.0
    %1526 = vmatpush.msra.mxu0 0.0
    %1527 = vmatpush.msra.mxu0 0.0
    %1528 = vmatpush.msra.mxu0 0.0
    %1529 = vmatpush.msra.mxu0 0.0
    %1530 = vmatpush.msra.mxu0 0.0
    %1531 = vmatpush.msra.mxu0 0.0
    %1532 = vmatpush.msra.mxu0 0.0
    %1533 = vmatpush.msra.mxu0 0.0
    %1534 = vmatpush.msra.mxu0 %v176
    %1535 = vmatpush.msra.mxu0 %v175
    %1536 = vmatmul.f32.gmra.mxu0 %v1514
    %v1537 = vpop.f32.mrf.mxu0
    %v1538 = vadd.f32 %v1492, %v1537
    %1539 = vmatmul.f32.gmra.mxu0 %v1516
    %v1540 = vpop.f32.mrf.mxu0
    %v1541 = vadd.f32 %v1492, %v1540
    %1542 = vmatmul.f32.gmra.mxu0 %v1518
    %v1543 = vpop.f32.mrf.mxu0
    %v1544 = vadd.f32 %v1492, %v1543
    %1545 = vdwg.mxu0
    %vm1546 = vcmp.ge.f32.partialorder %v1538, 0.0
    %vm1547 = vcmp.ge.f32.partialorder %v1541, 0.0
    %vm1548 = vcmp.ge.f32.partialorder %v1544, 0.0
    %v1549 = vmul.f32 %v1538, 0.01
    %v1550 = vmul.f32 %v1541, 0.01
    %v1551 = vmul.f32 %v1544, 0.01
    %v1552 = vsel %vm1546, %v1538, %v1549
    %v1553 = vsel %vm1547, %v1541, %v1550
    %v1554 = vsel %vm1548, %v1544, %v1551
    %v1556 = vperm.slane %v180, 0
    %v1559 = vsel %vm279, %v1552, 0
    %v1562 = vsel %vm279, %v1553, 0
    %v1565 = vsel %vm279, %v1554, 0
    %1567 = vmatpush.msra.mxu0 0.0
    %1568 = vmatpush.msra.mxu0 0.0
    %1569 = vmatpush.msra.mxu0 0.0
    %1570 = vmatpush.msra.mxu0 0.0
    %1571 = vmatpush.msra.mxu0 0.0
    %1572 = vmatpush.msra.mxu0 0.0
    %1573 = vmatpush.msra.mxu0 0.0
    %1574 = vmatpush.msra.mxu0 0.0
    %1575 = vmatpush.msra.mxu0 0.0
    %1576 = vmatpush.msra.mxu0 0.0
    %1577 = vmatpush.msra.mxu0 0.0
    %1578 = vmatpush.msra.mxu0 0.0
    %1579 = vmatpush.msra.mxu0 0.0
    %1580 = vmatpush.msra.mxu0 0.0
    %1581 = vmatpush.msra.mxu0 %v179
    %1582 = vmatpush.msra.mxu0 %v178
    %1583 = vmatmul.f32.gmra.mxu0 %v1559
    %v1584 = vpop.f32.mrf.mxu0
    %v1585 = vadd.f32 %v1556, %v1584
    %1586 = vmatmul.f32.gmra.mxu0 %v1562
    %v1587 = vpop.f32.mrf.mxu0
    %v1588 = vadd.f32 %v1556, %v1587
    %1589 = vmatmul.f32.gmra.mxu0 %v1565
    %v1590 = vpop.f32.mrf.mxu0
    %v1591 = vadd.f32 %v1556, %v1590
    %1592 = vdwg.mxu0
    %v1596 = vrot.slane %v1585, 2
    %v1597 = vrot.slane %v1585, 4
    %v1598 = vrot.slane %v1585, 6
    %v1599 = vrot.slane %v1588, 2
    %v1600 = vrot.slane %v1588, 4
    %v1601 = vrot.slane %v1588, 6
    %v1602 = vrot.slane %v1591, 2
    %1603 = vst [vmem:[#allocation1] ss:$4 sm:$0xff] %v1585
    %s1604 = scalar_lea.vmem [#allocation1], 1
    %1605 = vst [vmem:[%s1604] ss:$4 sm:$0xff] %v1596
    %s1606 = scalar_lea.vmem [#allocation1], 2
    %1607 = vst [vmem:[%s1606] ss:$4 sm:$0xff] %v1597
    %s1608 = scalar_lea.vmem [#allocation1], 3
    %1609 = vst [vmem:[%s1608] ss:$4 sm:$0xff] %v1598
    %s1610 = scalar_lea.vmem [#allocation1], 32
    %1611 = vst [vmem:[%s1610] ss:$4 sm:$0xff] %v1588
    %v1612 = vld.sshfl [vmem:[#allocation1] sm:$0xff pattern:$0x73625140]
    %v1613 = vld.sshfl [vmem:[#allocation1 + $0x20] sm:$0xff pattern:$0x73625140]
    %1614 = vst [vmem:[#allocation1] ss:$4 sm:$0xff] %v1599
    %1615 = vst [vmem:[%s1604] ss:$4 sm:$0xff] %v1600
    %1616 = vst [vmem:[%s1606] ss:$4 sm:$0xff] %v1601
    %1617 = vst [vmem:[%s1608] ss:$4 sm:$0xff] %v1591
    %1618 = vst [vmem:[%s1610] ss:$4 sm:$0xff] %v1602
    %v1619 = vld.sshfl [vmem:[#allocation1] sm:$0xff pattern:$0x73625140]
    %v1620 = vld.sshfl [vmem:[#allocation1 + $0x20] sm:$0xff pattern:$0x73625140]
    %v1625 = vadd.f32 %v1477, %v1612
    %v1626 = vadd.f32 %v1478, %v1613
    %v1627 = vadd.f32 %v1479, %v1619
    %v1628 = vadd.f32 %v1480, %v1620
    %v1630 = vperm.slane %v183, 0
    %1634 = vst [vmem:[#allocation1] ss:$9 sm:$0xff] %v218
    %s1635 = scalar_lea.vmem [#allocation1], 1
    %1636 = vst [vmem:[%s1635] ss:$9 sm:$0xff] %v219
    %v1637 = vld [vmem:[#allocation1] sm:$0xff]
    %v1638 = vsel %vm279, %v1637, 0
    %1640 = vmatpush.msra.mxu0 0.0
    %1641 = vmatpush.msra.mxu0 0.0
    %1642 = vmatpush.msra.mxu0 0.0
    %1643 = vmatpush.msra.mxu0 0.0
    %1644 = vmatpush.msra.mxu0 0.0
    %1645 = vmatpush.msra.mxu0 0.0
    %1646 = vmatpush.msra.mxu0 0.0
    %1647 = vmatpush.msra.mxu0 0.0
    %1648 = vmatpush.msra.mxu0 0.0
    %1649 = vmatpush.msra.mxu0 0.0
    %1650 = vmatpush.msra.mxu0 0.0
    %1651 = vmatpush.msra.mxu0 0.0
    %1652 = vmatpush.msra.mxu0 0.0
    %1653 = vmatpush.msra.mxu0 0.0
    %1654 = vmatpush.msra.mxu0 %v182
    %1655 = vmatpush.msra.mxu0 %v181
    %1656 = vmatmul.f32.gmra.mxu0 %v1638
    %v1657 = vpop.f32.mrf.mxu0
    %v1658 = vadd.f32 %v1630, %v1657
    %1659 = vdwg.mxu0
    %v1661 = vrot.slane %v1658, 1
    %v1664 = vperm.slane %v186, 0
    %1666 = vst [vmem:[#allocation1] ss:$9 sm:$0xff] %v218
    %s1667 = scalar_lea.vmem [#allocation1], 1
    %1668 = vst [vmem:[%s1667] ss:$9 sm:$0xff] %v219
    %v1669 = vld [vmem:[#allocation1] sm:$0xff]
    %v1670 = vsel %vm279, %v1669, 0
    %1672 = vmatpush.msra.mxu0 0.0
    %1673 = vmatpush.msra.mxu0 0.0
    %1674 = vmatpush.msra.mxu0 0.0
    %1675 = vmatpush.msra.mxu0 0.0
    %1676 = vmatpush.msra.mxu0 0.0
    %1677 = vmatpush.msra.mxu0 0.0
    %1678 = vmatpush.msra.mxu0 0.0
    %1679 = vmatpush.msra.mxu0 0.0
    %1680 = vmatpush.msra.mxu0 0.0
    %1681 = vmatpush.msra.mxu0 0.0
    %1682 = vmatpush.msra.mxu0 0.0
    %1683 = vmatpush.msra.mxu0 0.0
    %1684 = vmatpush.msra.mxu0 0.0
    %1685 = vmatpush.msra.mxu0 0.0
    %1686 = vmatpush.msra.mxu0 %v185
    %1687 = vmatpush.msra.mxu0 %v184
    %1688 = vmatmul.f32.gmra.mxu0 %v1670
    %v1689 = vpop.f32.mrf.mxu0
    %v1690 = vadd.f32 %v1664, %v1689
    %1691 = vdwg.mxu0
    %v1693 = vrot.slane %v1690, 1
    %v1695 = vperm.slane %v189, 0
    %1697 = vst [vmem:[#allocation1] ss:$9 sm:$0xff] %v218
    %s1698 = scalar_lea.vmem [#allocation1], 1
    %1699 = vst [vmem:[%s1698] ss:$9 sm:$0xff] %v219
    %v1700 = vld [vmem:[#allocation1] sm:$0xff]
    %v1701 = vsel %vm279, %v1700, 0
    %1703 = vmatpush.msra.mxu0 0.0
    %1704 = vmatpush.msra.mxu0 0.0
    %1705 = vmatpush.msra.mxu0 0.0
    %1706 = vmatpush.msra.mxu0 0.0
    %1707 = vmatpush.msra.mxu0 0.0
    %1708 = vmatpush.msra.mxu0 0.0
    %1709 = vmatpush.msra.mxu0 0.0
    %1710 = vmatpush.msra.mxu0 0.0
    %1711 = vmatpush.msra.mxu0 0.0
    %1712 = vmatpush.msra.mxu0 0.0
    %1713 = vmatpush.msra.mxu0 0.0
    %1714 = vmatpush.msra.mxu0 0.0
    %1715 = vmatpush.msra.mxu0 0.0
    %1716 = vmatpush.msra.mxu0 0.0
    %1717 = vmatpush.msra.mxu0 %v188
    %1718 = vmatpush.msra.mxu0 %v187
    %1719 = vmatmul.f32.gmra.mxu0 %v1701
    %v1720 = vpop.f32.mrf.mxu0
    %v1721 = vadd.f32 %v1695, %v1720
    %1722 = vdwg.mxu0
    %v1724 = vrot.slane %v1721, 1
    %v1725 = vperm.slane %v1658, 0
    %v1726 = vperm.slane %v1661, 0
    %vm1729 = vcmask 1040384
    %v1730 = vsel %vm1729, %v1658, %v1725
    %v1731 = vsel %vm1729, %v1661, %v1726
    %v1732 = vsel %vm634, %v1730, %v1725
    %v1733 = vsel %vm634, %v1731, %v1726
    %vm1734 = vcmask 1042432
    %v1735 = vsel %vm1734, %v1732, %v1725
    %v1736 = vsel %vm1734, %v1733, %v1726
    %v1737 = vsel %vm637, %v1735, %v1725
    %v1738 = vsel %vm637, %v1736, %v1726
    %vm1739 = vcmask 1044480
    %v1740 = vsel %vm1739, %v1737, %v1725
    %v1741 = vsel %vm1739, %v1738, %v1726
    %v1742 = vsel %vm640, %v1740, %v1725
    %v1743 = vsel %vm640, %v1741, %v1726
    %vm1744 = vcmask 1046528
    %v1745 = vsel %vm1744, %v1742, %v1725
    %v1746 = vsel %vm1744, %v1743, %v1726
    %v1747 = vmul.f32 %v1745, %v232
    %v1748 = vmul.f32 %v1746, %v232
    %v1749 = vperm.slane %v1690, 0
    %v1751 = vmul.f32 %v1747, %v1749
    %v1752 = vsel %vm279, %v1751, 0.0
    %1753 = vadd.xlane.f32.xlu0 %v1752
    %v1754 = vpop.xlane.xlu0 %1753
    %v1755 = vperm.slane %v1693, 0
    %v1757 = vmul.f32 %v1748, %v1755
    %v1758 = vsel %vm279, %v1757, 0.0
    %1759 = vadd.xlane.f32.xlu0 %v1758
    %v1760 = vpop.xlane.xlu0 %1759
    %v1761 = vsub.f32 %v1754, %v1754
    %v1762 = vsub.f32 %v1760, %v1760
    %v1763 = vmul.f32 %v1761, 1.442695
    %v1764 = vpow.pop %v1763
    %v1765 = vmul.f32 %v1762, 1.442695
    %v1766 = vpow.pop %v1765
    %v1767 = vadd.f32 %v1764, 0.0
    %v1768 = vadd.f32 %v1766, 0.0
    %v1769 = vrcp.pop %v1767
    %v1770 = vrcp.pop %v1768
    %v1771 = vmul.f32 %v1764, %v1769
    %v1772 = vmul.f32 %v1766, %v1770
    %vm1773 = vcmask 7168
    %v1775 = vsel %vm1773, %v1771, 0
    %v1777 = vsel %vm1729, %v1721, 0
    %1779 = vmatpush.msra.mxu0 0.0
    %1780 = vmatpush.msra.mxu0 0.0
    %1781 = vmatpush.msra.mxu0 0.0
    %1782 = vmatpush.msra.mxu0 0.0
    %1783 = vmatpush.msra.mxu0 0.0
    %1784 = vmatpush.msra.mxu0 0.0
    %1785 = vmatpush.msra.mxu0 0.0
    %1786 = vmatpush.msra.mxu0 0.0
    %1787 = vmatpush.msra.mxu0 0.0
    %1788 = vmatpush.msra.mxu0 0.0
    %1789 = vmatpush.msra.mxu0 0.0
    %1790 = vmatpush.msra.mxu0 0.0
    %1791 = vmatpush.msra.mxu0 0.0
    %1792 = vmatpush.msra.mxu0 0.0
    %1793 = vmatpush.msra.mxu0 0.0
    %1794 = vmatpush.msra.mxu0 %v1777
    %1795 = vmatmul.f32.gmra.mxu0 %v1775
    %v1796 = vpop.f32.mrf.mxu0
    %v1797 = vadd.f32 0.0, %v1796
    %1798 = vdwg.mxu0
    %v1800 = vsel %vm1773, %v1772, 0
    %v1802 = vsel %vm1729, %v1724, 0
    %1804 = vmatpush.msra.mxu0 0.0
    %1805 = vmatpush.msra.mxu0 0.0
    %1806 = vmatpush.msra.mxu0 0.0
    %1807 = vmatpush.msra.mxu0 0.0
    %1808 = vmatpush.msra.mxu0 0.0
    %1809 = vmatpush.msra.mxu0 0.0
    %1810 = vmatpush.msra.mxu0 0.0
    %1811 = vmatpush.msra.mxu0 0.0
    %1812 = vmatpush.msra.mxu0 0.0
    %1813 = vmatpush.msra.mxu0 0.0
    %1814 = vmatpush.msra.mxu0 0.0
    %1815 = vmatpush.msra.mxu0 0.0
    %1816 = vmatpush.msra.mxu0 0.0
    %1817 = vmatpush.msra.mxu0 0.0
    %1818 = vmatpush.msra.mxu0 0.0
    %1819 = vmatpush.msra.mxu0 %v1802
    %1820 = vmatmul.f32.gmra.mxu0 %v1800
    %v1821 = vpop.f32.mrf.mxu0
    %v1822 = vadd.f32 0.0, %v1821
    %1823 = vdwg.mxu0
    %v1824 = vmul.f32 %v1797, %v232
    %v1825 = vmul.f32 %v1822, %v232
    %v1828 = vrot.slane %v1824, 1
    %v1829 = vrot.slane %v1825, 1
    %v1832 = vadd.f32 %v1824, %v1828
    %v1833 = vadd.f32 %v1825, %v1829
    %v1834 = vrot.slane %v1824, 2
    %v1835 = vrot.slane %v1825, 2
    %v1838 = vadd.f32 %v1832, %v1834
    %v1839 = vadd.f32 %v1833, %v1835
    %v1840 = vrot.slane %v1824, 3
    %v1841 = vrot.slane %v1825, 3
    %v1844 = vadd.f32 %v1838, %v1840
    %v1845 = vadd.f32 %v1839, %v1841
    %v1846 = vrot.slane %v1824, 4
    %v1847 = vrot.slane %v1825, 4
    %v1850 = vadd.f32 %v1844, %v1846
    %v1851 = vadd.f32 %v1845, %v1847
    %v1852 = vrot.slane %v1824, 5
    %v1853 = vrot.slane %v1825, 5
    %v1856 = vadd.f32 %v1850, %v1852
    %v1857 = vadd.f32 %v1851, %v1853
    %v1858 = vrot.slane %v1824, 6
    %v1859 = vrot.slane %v1825, 6
    %v1862 = vadd.f32 %v1856, %v1858
    %v1863 = vadd.f32 %v1857, %v1859
    %v1864 = vrot.slane %v1824, 7
    %v1865 = vrot.slane %v1825, 7
    %v1868 = vadd.f32 %v1862, %v1864
    %v1869 = vadd.f32 %v1863, %v1865
    %v1871 = vperm.slane %v192, 0
    %v1875 = vrot.slane %v1869, 7
    %vm1876 = vcmask 1041409
    %v1877 = vsel %vm1876, %v1875, %v1868
    %v1878 = vsel %vm279, %v1877, 0
    %1880 = vmatpush.msra.mxu0 0.0
    %1881 = vmatpush.msra.mxu0 0.0
    %1882 = vmatpush.msra.mxu0 0.0
    %1883 = vmatpush.msra.mxu0 0.0
    %1884 = vmatpush.msra.mxu0 0.0
    %1885 = vmatpush.msra.mxu0 0.0
    %1886 = vmatpush.msra.mxu0 0.0
    %1887 = vmatpush.msra.mxu0 0.0
    %1888 = vmatpush.msra.mxu0 0.0
    %1889 = vmatpush.msra.mxu0 0.0
    %1890 = vmatpush.msra.mxu0 0.0
    %1891 = vmatpush.msra.mxu0 0.0
    %1892 = vmatpush.msra.mxu0 0.0
    %1893 = vmatpush.msra.mxu0 0.0
    %1894 = vmatpush.msra.mxu0 %v191
    %1895 = vmatpush.msra.mxu0 %v190
    %1896 = vmatmul.f32.gmra.mxu0 %v1878
    %v1897 = vpop.f32.mrf.mxu0
    %v1898 = vadd.f32 %v1871, %v1897
    %1899 = vdwg.mxu0
    %v1901 = vrot.slane %v1898, 1
    %v1903 = vadd.f32 %v218, %v1898
    %v1904 = vadd.f32 %v219, %v1901
    %v1906 = vperm.slane %v195, 0
    %1910 = vst [vmem:[#allocation1] ss:$9 sm:$0xff] %v1903
    %s1911 = scalar_lea.vmem [#allocation1], 1
    %1912 = vst [vmem:[%s1911] ss:$9 sm:$0xff] %v1904
    %v1913 = vld [vmem:[#allocation1] sm:$0xff]
    %v1914 = vsel %vm279, %v1913, 0
    %1916 = vmatpush.msra.mxu0 0.0
    %1917 = vmatpush.msra.mxu0 0.0
    %1918 = vmatpush.msra.mxu0 0.0
    %1919 = vmatpush.msra.mxu0 0.0
    %1920 = vmatpush.msra.mxu0 0.0
    %1921 = vmatpush.msra.mxu0 0.0
    %1922 = vmatpush.msra.mxu0 0.0
    %1923 = vmatpush.msra.mxu0 0.0
    %1924 = vmatpush.msra.mxu0 0.0
    %1925 = vmatpush.msra.mxu0 0.0
    %1926 = vmatpush.msra.mxu0 0.0
    %1927 = vmatpush.msra.mxu0 0.0
    %1928 = vmatpush.msra.mxu0 0.0
    %1929 = vmatpush.msra.mxu0 0.0
    %1930 = vmatpush.msra.mxu0 %v194
    %1931 = vmatpush.msra.mxu0 %v193
    %1932 = vmatmul.f32.gmra.mxu0 %v1914
    %v1933 = vpop.f32.mrf.mxu0
    %v1934 = vadd.f32 %v1906, %v1933
    %1935 = vdwg.mxu0
    %v1937 = vrot.slane %v1934, 1
    %v1943 = vrot.slane %v1625, 2
    %v1944 = vrot.slane %v1625, 4
    %v1945 = vrot.slane %v1625, 6
    %v1946 = vrot.slane %v1627, 2
    %v1947 = vrot.slane %v1627, 4
    %v1948 = vrot.slane %v1627, 6
    %v1950 = vperm.slane %v198, 0
    %1952 = vst [vmem:[#allocation1] ss:$4 sm:$0xff] %v1625
    %s1953 = scalar_lea.vmem [#allocation1], 1
    %1954 = vst [vmem:[%s1953] ss:$4 sm:$0xff] %v1943
    %s1955 = scalar_lea.vmem [#allocation1], 2
    %1956 = vst [vmem:[%s1955] ss:$4 sm:$0xff] %v1944
    %s1957 = scalar_lea.vmem [#allocation1], 3
    %1958 = vst [vmem:[%s1957] ss:$4 sm:$0xff] %v1945
    %s1959 = scalar_lea.vmem [#allocation1], 32
    %1960 = vst [vmem:[%s1959] ss:$4 sm:$0xff] %v1626
    %s1961 = scalar_lea.vmem [#allocation1], 33
    %1962 = vst [vmem:[%s1961] ss:$4 sm:$0xff] %v1627
    %s1963 = scalar_lea.vmem [#allocation1], 34
    %1964 = vst [vmem:[%s1963] ss:$4 sm:$0xff] %v1946
    %s1965 = scalar_lea.vmem [#allocation1], 35
    %1966 = vst [vmem:[%s1965] ss:$4 sm:$0xff] %v1947
    %v1967 = vld.sshfl [vmem:[#allocation1] sm:$0xff pattern:$0x73625140]
    %v1968 = vld.sshfl [vmem:[#allocation1 + $0x20] sm:$0xff pattern:$0x73625140]
    %1969 = vst [vmem:[#allocation1] ss:$4 sm:$0xff] %v1948
    %1970 = vst [vmem:[%s1953] ss:$4 sm:$0xff] %v1628
    %v1971 = vld.sshfl [vmem:[#allocation1] sm:$0xff pattern:$0x73625140]
    %v1972 = vsel %vm279, %v1967, 0
    %v1974 = vsel %vm279, %v1968, 0
    %v1976 = vsel %vm279, %v1971, 0
    %1978 = vmatpush.msra.mxu0 0.0
    %1979 = vmatpush.msra.mxu0 0.0
    %1980 = vmatpush.msra.mxu0 0.0
    %1981 = vmatpush.msra.mxu0 0.0
    %1982 = vmatpush.msra.mxu0 0.0
    %1983 = vmatpush.msra.mxu0 0.0
    %1984 = vmatpush.msra.mxu0 0.0
    %1985 = vmatpush.msra.mxu0 0.0
    %1986 = vmatpush.msra.mxu0 0.0
    %1987 = vmatpush.msra.mxu0 0.0
    %1988 = vmatpush.msra.mxu0 0.0
    %1989 = vmatpush.msra.mxu0 0.0
    %1990 = vmatpush.msra.mxu0 0.0
    %1991 = vmatpush.msra.mxu0 0.0
    %1992 = vmatpush.msra.mxu0 %v197
    %1993 = vmatpush.msra.mxu0 %v196
    %1994 = vmatmul.f32.gmra.mxu0 %v1972
    %v1995 = vpop.f32.mrf.mxu0
    %v1996 = vadd.f32 %v1950, %v1995
    %1997 = vmatmul.f32.gmra.mxu0 %v1974
    %v1998 = vpop.f32.mrf.mxu0
    %v1999 = vadd.f32 %v1950, %v1998
    %2000 = vmatmul.f32.gmra.mxu0 %v1976
    %v2001 = vpop.f32.mrf.mxu0
    %v2002 = vadd.f32 %v1950, %v2001
    %2003 = vdwg.mxu0
    %v2007 = vrot.slane %v1996, 2
    %v2008 = vrot.slane %v1996, 4
    %v2009 = vrot.slane %v1996, 6
    %v2010 = vrot.slane %v1999, 2
    %v2011 = vrot.slane %v1999, 4
    %v2012 = vrot.slane %v1999, 6
    %v2013 = vrot.slane %v2002, 2
    %v2015 = vperm.slane %v201, 0
    %2017 = vst [vmem:[#allocation1] ss:$4 sm:$0xff] %v1625
    %s2018 = scalar_lea.vmem [#allocation1], 1
    %2019 = vst [vmem:[%s2018] ss:$4 sm:$0xff] %v1943
    %s2020 = scalar_lea.vmem [#allocation1], 2
    %2021 = vst [vmem:[%s2020] ss:$4 sm:$0xff] %v1944
    %s2022 = scalar_lea.vmem [#allocation1], 3
    %2023 = vst [vmem:[%s2022] ss:$4 sm:$0xff] %v1945
    %s2024 = scalar_lea.vmem [#allocation1], 32
    %2025 = vst [vmem:[%s2024] ss:$4 sm:$0xff] %v1626
    %s2026 = scalar_lea.vmem [#allocation1], 33
    %2027 = vst [vmem:[%s2026] ss:$4 sm:$0xff] %v1627
    %s2028 = scalar_lea.vmem [#allocation1], 34
    %2029 = vst [vmem:[%s2028] ss:$4 sm:$0xff] %v1946
    %s2030 = scalar_lea.vmem [#allocation1], 35
    %2031 = vst [vmem:[%s2030] ss:$4 sm:$0xff] %v1947
    %v2032 = vld.sshfl [vmem:[#allocation1] sm:$0xff pattern:$0x73625140]
    %v2033 = vld.sshfl [vmem:[#allocation1 + $0x20] sm:$0xff pattern:$0x73625140]
    %2034 = vst [vmem:[#allocation1] ss:$4 sm:$0xff] %v1948
    %2035 = vst [vmem:[%s2018] ss:$4 sm:$0xff] %v1628
    %v2036 = vld.sshfl [vmem:[#allocation1] sm:$0xff pattern:$0x73625140]
    %v2037 = vsel %vm279, %v2032, 0
    %v2039 = vsel %vm279, %v2033, 0
    %v2041 = vsel %vm279, %v2036, 0
    %2043 = vmatpush.msra.mxu0 0.0
    %2044 = vmatpush.msra.mxu0 0.0
    %2045 = vmatpush.msra.mxu0 0.0
    %2046 = vmatpush.msra.mxu0 0.0
    %2047 = vmatpush.msra.mxu0 0.0
    %2048 = vmatpush.msra.mxu0 0.0
    %2049 = vmatpush.msra.mxu0 0.0
    %2050 = vmatpush.msra.mxu0 0.0
    %2051 = vmatpush.msra.mxu0 0.0
    %2052 = vmatpush.msra.mxu0 0.0
    %2053 = vmatpush.msra.mxu0 0.0
    %2054 = vmatpush.msra.mxu0 0.0
    %2055 = vmatpush.msra.mxu0 0.0
    %2056 = vmatpush.msra.mxu0 0.0
    %2057 = vmatpush.msra.mxu0 %v200
    %2058 = vmatpush.msra.mxu0 %v199
    %2059 = vmatmul.f32.gmra.mxu0 %v2037
    %v2060 = vpop.f32.mrf.mxu0
    %v2061 = vadd.f32 %v2015, %v2060
    %2062 = vmatmul.f32.gmra.mxu0 %v2039
    %v2063 = vpop.f32.mrf.mxu0
    %v2064 = vadd.f32 %v2015, %v2063
    %2065 = vmatmul.f32.gmra.mxu0 %v2041
    %v2066 = vpop.f32.mrf.mxu0
    %v2067 = vadd.f32 %v2015, %v2066
    %2068 = vdwg.mxu0
    %v2072 = vrot.slane %v2061, 2
    %v2073 = vrot.slane %v2061, 4
    %v2074 = vrot.slane %v2061, 6
    %v2075 = vrot.slane %v2064, 2
    %v2076 = vrot.slane %v2064, 4
    %v2077 = vrot.slane %v2064, 6
    %v2078 = vrot.slane %v2067, 2
    %v2079 = vperm.slane %v1934, 0
    %v2080 = vperm.slane %v1937, 0
    %v2083 = vsel %vm1729, %v1934, %v2079
    %v2084 = vsel %vm1729, %v1937, %v2080
    %v2085 = vsel %vm634, %v2083, %v2079
    %v2086 = vsel %vm634, %v2084, %v2080
    %v2087 = vsel %vm1734, %v2085, %v2079
    %v2088 = vsel %vm1734, %v2086, %v2080
    %v2089 = vsel %vm637, %v2087, %v2079
    %v2090 = vsel %vm637, %v2088, %v2080
    %v2091 = vsel %vm1739, %v2089, %v2079
    %v2092 = vsel %vm1739, %v2090, %v2080
    %v2093 = vsel %vm640, %v2091, %v2079
    %v2094 = vsel %vm640, %v2092, %v2080
    %v2095 = vsel %vm1744, %v2093, %v2079
    %v2096 = vsel %vm1744, %v2094, %v2080
    %v2097 = vmul.f32 %v2095, %v232
    %v2098 = vmul.f32 %v2096, %v232
    %2099 = vst [vmem:[#allocation1] ss:$4 sm:$0xff] %v1996
    %s2100 = scalar_lea.vmem [#allocation1], 1
    %2101 = vst [vmem:[%s2100] ss:$4 sm:$0xff] %v2007
    %s2102 = scalar_lea.vmem [#allocation1], 2
    %2103 = vst [vmem:[%s2102] ss:$4 sm:$0xff] %v2008
    %s2104 = scalar_lea.vmem [#allocation1], 3
    %2105 = vst [vmem:[%s2104] ss:$4 sm:$0xff] %v2009
    %s2106 = scalar_lea.vmem [#allocation1], 32
    %2107 = vst [vmem:[%s2106] ss:$4 sm:$0xff] %v1999
    %v2108 = vld.sshfl [vmem:[#allocation1] sm:$0xff pattern:$0x73625140]
    %v2109 = vld.sshfl [vmem:[#allocation1 + $0x20] sm:$0xff pattern:$0x73625140]
    %v2111 = vsel %vm279, %v2097, 0
    %v2113 = vsel %vm279, %v2108, 0
    %v2115 = vsel %vm279, %v2109, 0
    %2117 = vmatpush.xpose.msra.mxu0 0.0
    %2118 = vmatpush.xpose.msra.mxu0 0.0
    %2119 = vmatpush.xpose.msra.mxu0 0.0
    %2120 = vmatpush.xpose.msra.mxu0 0.0
    %2121 = vmatpush.xpose.msra.mxu0 0.0
    %2122 = vmatpush.xpose.msra.mxu0 0.0
    %2123 = vmatpush.xpose.msra.mxu0 0.0
    %2124 = vmatpush.xpose.msra.mxu0 0.0
    %2125 = vmatpush.xpose.msra.mxu0 0.0
    %2126 = vmatpush.xpose.msra.mxu0 0.0
    %2127 = vmatpush.xpose.msra.mxu0 0.0
    %2128 = vmatpush.xpose.msra.mxu0 0.0
    %2129 = vmatpush.xpose.msra.mxu0 0.0
    %2130 = vmatpush.xpose.msra.mxu0 0.0
    %2131 = vmatpush.xpose.msra.mxu0 %v2115
    %2132 = vmatpush.xpose.msra.mxu0 %v2113
    %2133 = vmatmul.f32.gmra.mxu0 %v2111
    %v2134 = vpop.f32.mrf.mxu0
    %v2135 = vadd.f32 0.0, %v2134
    %2136 = vdwg.mxu0
    %2137 = vst [vmem:[#allocation1] ss:$4 sm:$0xff] %v2010
    %s2138 = scalar_lea.vmem [#allocation1], 1
    %2139 = vst [vmem:[%s2138] ss:$4 sm:$0xff] %v2011
    %s2140 = scalar_lea.vmem [#allocation1], 2
    %2141 = vst [vmem:[%s2140] ss:$4 sm:$0xff] %v2012
    %s2142 = scalar_lea.vmem [#allocation1], 3
    %2143 = vst [vmem:[%s2142] ss:$4 sm:$0xff] %v2002
    %s2144 = scalar_lea.vmem [#allocation1], 32
    %2145 = vst [vmem:[%s2144] ss:$4 sm:$0xff] %v2013
    %v2146 = vld.sshfl [vmem:[#allocation1] sm:$0xff pattern:$0x73625140]
    %v2147 = vld.sshfl [vmem:[#allocation1 + $0x20] sm:$0xff pattern:$0x73625140]
    %v2149 = vsel %vm279, %v2098, 0
    %v2151 = vsel %vm279, %v2146, 0
    %v2153 = vsel %vm279, %v2147, 0
    %2155 = vmatpush.xpose.msra.mxu0 0.0
    %2156 = vmatpush.xpose.msra.mxu0 0.0
    %2157 = vmatpush.xpose.msra.mxu0 0.0
    %2158 = vmatpush.xpose.msra.mxu0 0.0
    %2159 = vmatpush.xpose.msra.mxu0 0.0
    %2160 = vmatpush.xpose.msra.mxu0 0.0
    %2161 = vmatpush.xpose.msra.mxu0 0.0
    %2162 = vmatpush.xpose.msra.mxu0 0.0
    %2163 = vmatpush.xpose.msra.mxu0 0.0
    %2164 = vmatpush.xpose.msra.mxu0 0.0
    %2165 = vmatpush.xpose.msra.mxu0 0.0
    %2166 = vmatpush.xpose.msra.mxu0 0.0
    %2167 = vmatpush.xpose.msra.mxu0 0.0
    %2168 = vmatpush.xpose.msra.mxu0 0.0
    %2169 = vmatpush.xpose.msra.mxu0 %v2153
    %2170 = vmatpush.xpose.msra.mxu0 %v2151
    %2171 = vmatmul.f32.gmra.mxu0 %v2149
    %v2172 = vpop.f32.mrf.mxu0
    %v2173 = vadd.f32 0.0, %v2172
    %2174 = vdwg.mxu0
    %v2175 = vsel %vm853, %v2135, -inf
    %2176 = vmax.xlane.f32.xlu0 %v2175
    %v2177 = vpop.xlane.xlu0 %2176
    %v2178 = vsel %vm853, %v2173, -inf
    %2179 = vmax.xlane.f32.xlu0 %v2178
    %v2180 = vpop.xlane.xlu0 %2179
    %v2181 = vsub.f32 %v2135, %v2177
    %v2182 = vsub.f32 %v2173, %v2180
    %v2183 = vmul.f32 %v2181, 1.442695
    %v2184 = vpow.pop %v2183
    %v2185 = vmul.f32 %v2182, 1.442695
    %v2186 = vpow.pop %v2185
    %v2187 = vsel %vm853, %v2184, 0.0
    %2188 = vadd.xlane.f32.xlu0 %v2187
    %v2189 = vpop.xlane.xlu0 %2188
    %v2190 = vsel %vm853, %v2186, 0.0
    %2191 = vadd.xlane.f32.xlu0 %v2190
    %v2192 = vpop.xlane.xlu0 %2191
    %v2193 = vrcp.pop %v2189
    %v2194 = vrcp.pop %v2192
    %v2195 = vmul.f32 %v2184, %v2193
    %v2196 = vmul.f32 %v2186, %v2194
    %2197 = vst [vmem:[#allocation1] ss:$4 sm:$0xff] %v2061
    %s2198 = scalar_lea.vmem [#allocation1], 1
    %2199 = vst [vmem:[%s2198] ss:$4 sm:$0xff] %v2072
    %s2200 = scalar_lea.vmem [#allocation1], 2
    %2201 = vst [vmem:[%s2200] ss:$4 sm:$0xff] %v2073
    %s2202 = scalar_lea.vmem [#allocation1], 3
    %2203 = vst [vmem:[%s2202] ss:$4 sm:$0xff] %v2074
    %s2204 = scalar_lea.vmem [#allocation1], 32
    %2205 = vst [vmem:[%s2204] ss:$4 sm:$0xff] %v2064
    %v2206 = vld.sshfl [vmem:[#allocation1] sm:$0xff pattern:$0x73625140]
    %v2207 = vld.sshfl [vmem:[#allocation1 + $0x20] sm:$0xff pattern:$0x73625140]
    %v2210 = vsel %vm853, %v2195, 0
    %v2212 = vsel %vm634, %v2207, 0
    %2214 = vmatpush.msra.mxu0 0.0
    %2215 = vmatpush.msra.mxu0 0.0
    %2216 = vmatpush.msra.mxu0 0.0
    %2217 = vmatpush.msra.mxu0 0.0
    %2218 = vmatpush.msra.mxu0 0.0
    %2219 = vmatpush.msra.mxu0 0.0
    %2220 = vmatpush.msra.mxu0 0.0
    %2221 = vmatpush.msra.mxu0 0.0
    %2222 = vmatpush.msra.mxu0 0.0
    %2223 = vmatpush.msra.mxu0 0.0
    %2224 = vmatpush.msra.mxu0 0.0
    %2225 = vmatpush.msra.mxu0 0.0
    %2226 = vmatpush.msra.mxu0 0.0
    %2227 = vmatpush.msra.mxu0 0.0
    %2228 = vmatpush.msra.mxu0 %v2212
    %2229 = vmatpush.msra.mxu0 %v2206
    %2230 = vmatmul.f32.gmra.mxu0 %v2210
    %v2231 = vpop.f32.mrf.mxu0
    %v2232 = vadd.f32 0.0, %v2231
    %2233 = vdwg.mxu0
    %2234 = vst [vmem:[#allocation1] ss:$4 sm:$0xff] %v2075
    %s2235 = scalar_lea.vmem [#allocation1], 1
    %2236 = vst [vmem:[%s2235] ss:$4 sm:$0xff] %v2076
    %s2237 = scalar_lea.vmem [#allocation1], 2
    %2238 = vst [vmem:[%s2237] ss:$4 sm:$0xff] %v2077
    %s2239 = scalar_lea.vmem [#allocation1], 3
    %2240 = vst [vmem:[%s2239] ss:$4 sm:$0xff] %v2067
    %s2241 = scalar_lea.vmem [#allocation1], 32
    %2242 = vst [vmem:[%s2241] ss:$4 sm:$0xff] %v2078
    %v2243 = vld.sshfl [vmem:[#allocation1] sm:$0xff pattern:$0x73625140]
    %v2244 = vld.sshfl [vmem:[#allocation1 + $0x20] sm:$0xff pattern:$0x73625140]
    %v2247 = vsel %vm853, %v2196, 0
    %v2249 = vsel %vm634, %v2244, 0
    %2251 = vmatpush.msra.mxu0 0.0
    %2252 = vmatpush.msra.mxu0 0.0
    %2253 = vmatpush.msra.mxu0 0.0
    %2254 = vmatpush.msra.mxu0 0.0
    %2255 = vmatpush.msra.mxu0 0.0
    %2256 = vmatpush.msra.mxu0 0.0
    %2257 = vmatpush.msra.mxu0 0.0
    %2258 = vmatpush.msra.mxu0 0.0
    %2259 = vmatpush.msra.mxu0 0.0
    %2260 = vmatpush.msra.mxu0 0.0
    %2261 = vmatpush.msra.mxu0 0.0
    %2262 = vmatpush.msra.mxu0 0.0
    %2263 = vmatpush.msra.mxu0 0.0
    %2264 = vmatpush.msra.mxu0 0.0
    %2265 = vmatpush.msra.mxu0 %v2249
    %2266 = vmatpush.msra.mxu0 %v2243
    %2267 = vmatmul.f32.gmra.mxu0 %v2247
    %v2268 = vpop.f32.mrf.mxu0
    %v2269 = vadd.f32 0.0, %v2268
    %2270 = vdwg.mxu0
    %v2271 = vmul.f32 %v2232, %v232
    %v2272 = vmul.f32 %v2269, %v232
    %v2275 = vrot.slane %v2271, 1
    %v2276 = vrot.slane %v2272, 1
    %v2279 = vadd.f32 %v2271, %v2275
    %v2280 = vadd.f32 %v2272, %v2276
    %v2281 = vrot.slane %v2271, 2
    %v2282 = vrot.slane %v2272, 2
    %v2285 = vadd.f32 %v2279, %v2281
    %v2286 = vadd.f32 %v2280, %v2282
    %v2287 = vrot.slane %v2271, 3
    %v2288 = vrot.slane %v2272, 3
    %v2291 = vadd.f32 %v2285, %v2287
    %v2292 = vadd.f32 %v2286, %v2288
    %v2293 = vrot.slane %v2271, 4
    %v2294 = vrot.slane %v2272, 4
    %v2297 = vadd.f32 %v2291, %v2293
    %v2298 = vadd.f32 %v2292, %v2294
    %v2299 = vrot.slane %v2271, 5
    %v2300 = vrot.slane %v2272, 5
    %v2303 = vadd.f32 %v2297, %v2299
    %v2304 = vadd.f32 %v2298, %v2300
    %v2305 = vrot.slane %v2271, 6
    %v2306 = vrot.slane %v2272, 6
    %v2309 = vadd.f32 %v2303, %v2305
    %v2310 = vadd.f32 %v2304, %v2306
    %v2311 = vrot.slane %v2271, 7
    %v2312 = vrot.slane %v2272, 7
    %v2315 = vadd.f32 %v2309, %v2311
    %v2316 = vadd.f32 %v2310, %v2312
    %v2318 = vperm.slane %v204, 0
    %v2322 = vrot.slane %v2316, 7
    %v2323 = vsel %vm1876, %v2322, %v2315
    %v2324 = vsel %vm279, %v2323, 0
    %2326 = vmatpush.msra.mxu0 0.0
    %2327 = vmatpush.msra.mxu0 0.0
    %2328 = vmatpush.msra.mxu0 0.0
    %2329 = vmatpush.msra.mxu0 0.0
    %2330 = vmatpush.msra.mxu0 0.0
    %2331 = vmatpush.msra.mxu0 0.0
    %2332 = vmatpush.msra.mxu0 0.0
    %2333 = vmatpush.msra.mxu0 0.0
    %2334 = vmatpush.msra.mxu0 0.0
    %2335 = vmatpush.msra.mxu0 0.0
    %2336 = vmatpush.msra.mxu0 0.0
    %2337 = vmatpush.msra.mxu0 0.0
    %2338 = vmatpush.msra.mxu0 0.0
    %2339 = vmatpush.msra.mxu0 0.0
    %2340 = vmatpush.msra.mxu0 %v203
    %2341 = vmatpush.msra.mxu0 %v202
    %2342 = vmatmul.f32.gmra.mxu0 %v2324
    %v2343 = vpop.f32.mrf.mxu0
    %v2344 = vadd.f32 %v2318, %v2343
    %2345 = vdwg.mxu0
    %v2347 = vrot.slane %v2344, 1
    %v2349 = vadd.f32 %v1903, %v2344
    %v2350 = vadd.f32 %v1904, %v2347
    %v2352 = vperm.slane %v207, 0
    %2356 = vst [vmem:[#allocation1] ss:$9 sm:$0xff] %v2349
    %s2357 = scalar_lea.vmem [#allocation1], 1
    %2358 = vst [vmem:[%s2357] ss:$9 sm:$0xff] %v2350
    %v2359 = vld [vmem:[#allocation1] sm:$0xff]
    %v2360 = vsel %vm279, %v2359, 0
    %2362 = vmatpush.msra.mxu0 0.0
    %2363 = vmatpush.msra.mxu0 0.0
    %2364 = vmatpush.msra.mxu0 0.0
    %2365 = vmatpush.msra.mxu0 0.0
    %2366 = vmatpush.msra.mxu0 0.0
    %2367 = vmatpush.msra.mxu0 0.0
    %2368 = vmatpush.msra.mxu0 0.0
    %2369 = vmatpush.msra.mxu0 0.0
    %2370 = vmatpush.msra.mxu0 0.0
    %2371 = vmatpush.msra.mxu0 0.0
    %2372 = vmatpush.msra.mxu0 0.0
    %2373 = vmatpush.msra.mxu0 0.0
    %2374 = vmatpush.msra.mxu0 0.0
    %2375 = vmatpush.msra.mxu0 0.0
    %2376 = vmatpush.msra.mxu0 %v206
    %2377 = vmatpush.msra.mxu0 %v205
    %2378 = vmatmul.f32.gmra.mxu0 %v2360
    %v2379 = vpop.f32.mrf.mxu0
    %v2380 = vadd.f32 %v2352, %v2379
    %2381 = vdwg.mxu0
    %vm2382 = vcmp.ge.f32.partialorder %v2380, 0.0
    %v2383 = vmul.f32 %v2380, 0.01
    %v2384 = vsel %vm2382, %v2380, %v2383
    %v2386 = vperm.slane %v210, 0
    %v2389 = vsel %vm279, %v2384, 0
    %2391 = vmatpush.msra.mxu0 0.0
    %2392 = vmatpush.msra.mxu0 0.0
    %2393 = vmatpush.msra.mxu0 0.0
    %2394 = vmatpush.msra.mxu0 0.0
    %2395 = vmatpush.msra.mxu0 0.0
    %2396 = vmatpush.msra.mxu0 0.0
    %2397 = vmatpush.msra.mxu0 0.0
    %2398 = vmatpush.msra.mxu0 0.0
    %2399 = vmatpush.msra.mxu0 0.0
    %2400 = vmatpush.msra.mxu0 0.0
    %2401 = vmatpush.msra.mxu0 0.0
    %2402 = vmatpush.msra.mxu0 0.0
    %2403 = vmatpush.msra.mxu0 0.0
    %2404 = vmatpush.msra.mxu0 0.0
    %2405 = vmatpush.msra.mxu0 %v209
    %2406 = vmatpush.msra.mxu0 %v208
    %2407 = vmatmul.f32.gmra.mxu0 %v2389
    %v2408 = vpop.f32.mrf.mxu0
    %v2409 = vadd.f32 %v2386, %v2408
    %2410 = vdwg.mxu0
    %v2412 = vrot.slane %v2409, 1
    %v2414 = vadd.f32 %v2349, %v2409
    %v2415 = vadd.f32 %v2350, %v2412
    %v2417 = vperm.slane %v213, 0
    %2421 = vst [vmem:[#allocation1] ss:$9 sm:$0xff] %v2414
    %s2422 = scalar_lea.vmem [#allocation1], 1
    %2423 = vst [vmem:[%s2422] ss:$9 sm:$0xff] %v2415
    %v2424 = vld [vmem:[#allocation1] sm:$0xff]
    %v2425 = vsel %vm279, %v2424, 0
    %2427 = vmatpush.msra.mxu0 0.0
    %2428 = vmatpush.msra.mxu0 0.0
    %2429 = vmatpush.msra.mxu0 0.0
    %2430 = vmatpush.msra.mxu0 0.0
    %2431 = vmatpush.msra.mxu0 0.0
    %2432 = vmatpush.msra.mxu0 0.0
    %2433 = vmatpush.msra.mxu0 0.0
    %2434 = vmatpush.msra.mxu0 0.0
    %2435 = vmatpush.msra.mxu0 0.0
    %2436 = vmatpush.msra.mxu0 0.0
    %2437 = vmatpush.msra.mxu0 0.0
    %2438 = vmatpush.msra.mxu0 0.0
    %2439 = vmatpush.msra.mxu0 0.0
    %2440 = vmatpush.msra.mxu0 0.0
    %2441 = vmatpush.msra.mxu0 %v212
    %2442 = vmatpush.msra.mxu0 %v211
    %2443 = vmatmul.f32.gmra.mxu0 %v2425
    %v2444 = vpop.f32.mrf.mxu0
    %v2445 = vadd.f32 %v2417, %v2444
    %2446 = vdwg.mxu0
    %v2447 = vsub.f32 0.0, %v2445
    %v2448 = vmul.f32 %v2447, 1.442695
    %v2449 = vpow.pop %v2448
    %v2450 = vadd.f32 %v2449, 1.0
    %v2451 = vrcp.pop %v2450
    %v2452 = vmul.f32 %v2450, %v2451
    %v2453 = vsub.f32 1.0, %v2452
    %v2454 = vmul.f32 %v2451, %v2453
    %v2455 = vadd.f32 %v2451, %v2454
    %vm2456 = vweird.f32 %v2450
    %vm2457 = vweird.f32 %v2451
    %vm2458 = vmor %vm2456, %vm2457
    %v2459 = vsel %vm2458, %v2451, %v2455
    %v2460 = vand.u32 2147483647, %v2450
    %vm2461 = vcmp.eq.f32.partialorder %v2460, 8.507059e+37
    %v2462 = vand.u32 %v2450, 2147483648
    %v2463 = vor.u32 1.1754944e-38, %v2462
    %v2464 = vsel %vm2461, %v2463, %v2459
    %v2465 = vmul.f32 1.0, %v2464
    %v2467 = vrot.slane %v2465, 1
    %v2468 = vperm.slane %v2465, 0
    %v2469 = vperm.slane %v2467, 0
    %v2472 = vsub.f32 %v2468, %v214
    %v2473 = vsub.f32 %v2468, %v215
    %v2474 = vsub.f32 %v2469, %v216
    %v2475 = vsub.f32 %v2469, %v217
    %v2476 = vmul.f32 %v2472, %v2472
    %v2477 = vmul.f32 %v2473, %v2473
    %v2478 = vmul.f32 %v2474, %v2474
    %v2479 = vmul.f32 %v2475, %v2475
    %2484 = vrot.lane.b32.xlu0 %v2476, 8
    %v2485 = vpop.permute.xlu0 %2484
    %2486 = vrot.lane.b32.xlu0 %v2477, 8
    %v2487 = vpop.permute.xlu0 %2486
    %2488 = vrot.lane.b32.xlu0 %v2478, 8
    %v2489 = vpop.permute.xlu0 %2488
    %2490 = vrot.lane.b32.xlu0 %v2479, 8
    %v2491 = vpop.permute.xlu0 %2490
    %v2496 = vsel %vm233, %v214, %v2485
    %v2497 = vsel %vm233, %v215, %v2487
    %v2498 = vsel %vm233, %v216, %v2489
    %v2499 = vsel %vm233, %v217, %v2491
    %v2500 = vmul.f32 %v2496, 2.828427
    %v2501 = vmul.f32 %v2497, 2.828427
    %v2502 = vmul.f32 %v2498, 2.828427
    %v2503 = vmul.f32 %v2499, 2.828427
    %v2504 = vadd.f32 %v2500, %v220
    %v2505 = vadd.f32 %v2501, %v221
    %v2506 = vadd.f32 %v2502, %v220
    %v2507 = vadd.f32 %v2503, %v221
    %v2512 = vrot.slane %v2504, 2
    %v2513 = vrot.slane %v2504, 4
    %v2514 = vrot.slane %v2504, 6
    %v2515 = vrot.slane %v2506, 2
    %v2516 = vrot.slane %v2506, 4
    %v2517 = vrot.slane %v2506, 6
    %2518 = vst [vmem:[#allocation1] ss:$4 sm:$0xff] %v2504
    %s2519 = scalar_lea.vmem [#allocation1], 1
    %2520 = vst [vmem:[%s2519] ss:$4 sm:$0xff] %v2512
    %s2521 = scalar_lea.vmem [#allocation1], 2
    %2522 = vst [vmem:[%s2521] ss:$4 sm:$0xff] %v2513
    %s2523 = scalar_lea.vmem [#allocation1], 3
    %2524 = vst [vmem:[%s2523] ss:$4 sm:$0xff] %v2514
    %s2525 = scalar_lea.vmem [#allocation1], 32
    %2526 = vst [vmem:[%s2525] ss:$4 sm:$0xff] %v2505
    %s2527 = scalar_lea.vmem [#allocation1], 33
    %2528 = vst [vmem:[%s2527] ss:$4 sm:$0xff] %v2506
    %s2529 = scalar_lea.vmem [#allocation1], 34
    %2530 = vst [vmem:[%s2529] ss:$4 sm:$0xff] %v2515
    %s2531 = scalar_lea.vmem [#allocation1], 35
    %2532 = vst [vmem:[%s2531] ss:$4 sm:$0xff] %v2516
    %v2533 = vld.sshfl [vmem:[#allocation1] sm:$0xff pattern:$0x73625140]
    %v2534 = vld.sshfl [vmem:[#allocation1 + $0x20] sm:$0xff pattern:$0x73625140]
    %2535 = vst [vmem:[#allocation1] ss:$4 sm:$0xff] %v2517
    %2536 = vst [vmem:[%s2519] ss:$4 sm:$0xff] %v2507
    %v2537 = vld.sshfl [vmem:[#allocation1] sm:$0xff pattern:$0x73625140]
    %v2538 = vsel %vm279, %v2533, 0
    %v2540 = vsel %vm279, %v2534, 0
    %v2542 = vsel %vm279, %v2537, 0
    %2544 = vmatpush.msra.mxu0 0.0
    %2545 = vmatpush.msra.mxu0 0.0
    %2546 = vmatpush.msra.mxu0 0.0
    %2547 = vmatpush.msra.mxu0 0.0
    %2548 = vmatpush.msra.mxu0 0.0
    %2549 = vmatpush.msra.mxu0 0.0
    %2550 = vmatpush.msra.mxu0 0.0
    %2551 = vmatpush.msra.mxu0 0.0
    %2552 = vmatpush.msra.mxu0 0.0
    %2553 = vmatpush.msra.mxu0 0.0
    %2554 = vmatpush.msra.mxu0 0.0
    %2555 = vmatpush.msra.mxu0 0.0
    %2556 = vmatpush.msra.mxu0 0.0
    %2557 = vmatpush.msra.mxu0 0.0
    %2558 = vmatpush.msra.mxu0 %v164
    %2559 = vmatpush.msra.mxu0 %v163
    %2560 = vmatmul.f32.gmra.mxu0 %v2538
    %v2561 = vpop.f32.mrf.mxu0
    %v2562 = vadd.f32 %v257, %v2561
    %2563 = vmatmul.f32.gmra.mxu0 %v2540
    %v2564 = vpop.f32.mrf.mxu0
    %v2565 = vadd.f32 %v257, %v2564
    %2566 = vmatmul.f32.gmra.mxu0 %v2542
    %v2567 = vpop.f32.mrf.mxu0
    %v2568 = vadd.f32 %v257, %v2567
    %2569 = vdwg.mxu0
    %v2573 = vrot.slane %v2562, 2
    %v2574 = vrot.slane %v2562, 4
    %v2575 = vrot.slane %v2562, 6
    %v2576 = vrot.slane %v2565, 2
    %v2577 = vrot.slane %v2565, 4
    %v2578 = vrot.slane %v2565, 6
    %v2579 = vrot.slane %v2568, 2
    %2580 = vst [vmem:[#allocation1] ss:$4 sm:$0xff] %v2504
    %s2581 = scalar_lea.vmem [#allocation1], 1
    %2582 = vst [vmem:[%s2581] ss:$4 sm:$0xff] %v2512
    %s2583 = scalar_lea.vmem [#allocation1], 2
    %2584 = vst [vmem:[%s2583] ss:$4 sm:$0xff] %v2513
    %s2585 = scalar_lea.vmem [#allocation1], 3
    %2586 = vst [vmem:[%s2585] ss:$4 sm:$0xff] %v2514
    %s2587 = scalar_lea.vmem [#allocation1], 32
    %2588 = vst [vmem:[%s2587] ss:$4 sm:$0xff] %v2505
    %s2589 = scalar_lea.vmem [#allocation1], 33
    %2590 = vst [vmem:[%s2589] ss:$4 sm:$0xff] %v2506
    %s2591 = scalar_lea.vmem [#allocation1], 34
    %2592 = vst [vmem:[%s2591] ss:$4 sm:$0xff] %v2515
    %s2593 = scalar_lea.vmem [#allocation1], 35
    %2594 = vst [vmem:[%s2593] ss:$4 sm:$0xff] %v2516
    %v2595 = vld.sshfl [vmem:[#allocation1] sm:$0xff pattern:$0x73625140]
    %v2596 = vld.sshfl [vmem:[#allocation1 + $0x20] sm:$0xff pattern:$0x73625140]
    %2597 = vst [vmem:[#allocation1] ss:$4 sm:$0xff] %v2517
    %2598 = vst [vmem:[%s2581] ss:$4 sm:$0xff] %v2507
    %v2599 = vld.sshfl [vmem:[#allocation1] sm:$0xff pattern:$0x73625140]
    %v2600 = vsel %vm279, %v2595, 0
    %v2602 = vsel %vm279, %v2596, 0
    %v2604 = vsel %vm279, %v2599, 0
    %2606 = vmatpush.msra.mxu0 0.0
    %2607 = vmatpush.msra.mxu0 0.0
    %2608 = vmatpush.msra.mxu0 0.0
    %2609 = vmatpush.msra.mxu0 0.0
    %2610 = vmatpush.msra.mxu0 0.0
    %2611 = vmatpush.msra.mxu0 0.0
    %2612 = vmatpush.msra.mxu0 0.0
    %2613 = vmatpush.msra.mxu0 0.0
    %2614 = vmatpush.msra.mxu0 0.0
    %2615 = vmatpush.msra.mxu0 0.0
    %2616 = vmatpush.msra.mxu0 0.0
    %2617 = vmatpush.msra.mxu0 0.0
    %2618 = vmatpush.msra.mxu0 0.0
    %2619 = vmatpush.msra.mxu0 0.0
    %2620 = vmatpush.msra.mxu0 %v167
    %2621 = vmatpush.msra.mxu0 %v166
    %2622 = vmatmul.f32.gmra.mxu0 %v2600
    %v2623 = vpop.f32.mrf.mxu0
    %v2624 = vadd.f32 %v323, %v2623
    %2625 = vmatmul.f32.gmra.mxu0 %v2602
    %v2626 = vpop.f32.mrf.mxu0
    %v2627 = vadd.f32 %v323, %v2626
    %2628 = vmatmul.f32.gmra.mxu0 %v2604
    %v2629 = vpop.f32.mrf.mxu0
    %v2630 = vadd.f32 %v323, %v2629
    %2631 = vdwg.mxu0
    %v2635 = vrot.slane %v2624, 2
    %v2636 = vrot.slane %v2624, 4
    %v2637 = vrot.slane %v2624, 6
    %v2638 = vrot.slane %v2627, 2
    %v2639 = vrot.slane %v2627, 4
    %v2640 = vrot.slane %v2627, 6
    %v2641 = vrot.slane %v2630, 2
    %2642 = vst [vmem:[#allocation1] ss:$4 sm:$0xff] %v2504
    %s2643 = scalar_lea.vmem [#allocation1], 1
    %2644 = vst [vmem:[%s2643] ss:$4 sm:$0xff] %v2512
    %s2645 = scalar_lea.vmem [#allocation1], 2
    %2646 = vst [vmem:[%s2645] ss:$4 sm:$0xff] %v2513
    %s2647 = scalar_lea.vmem [#allocation1], 3
    %2648 = vst [vmem:[%s2647] ss:$4 sm:$0xff] %v2514
    %s2649 = scalar_lea.vmem [#allocation1], 32
    %2650 = vst [vmem:[%s2649] ss:$4 sm:$0xff] %v2505
    %s2651 = scalar_lea.vmem [#allocation1], 33
    %2652 = vst [vmem:[%s2651] ss:$4 sm:$0xff] %v2506
    %s2653 = scalar_lea.vmem [#allocation1], 34
    %2654 = vst [vmem:[%s2653] ss:$4 sm:$0xff] %v2515
    %s2655 = scalar_lea.vmem [#allocation1], 35
    %2656 = vst [vmem:[%s2655] ss:$4 sm:$0xff] %v2516
    %v2657 = vld.sshfl [vmem:[#allocation1] sm:$0xff pattern:$0x73625140]
    %v2658 = vld.sshfl [vmem:[#allocation1 + $0x20] sm:$0xff pattern:$0x73625140]
    %2659 = vst [vmem:[#allocation1] ss:$4 sm:$0xff] %v2517
    %2660 = vst [vmem:[%s2643] ss:$4 sm:$0xff] %v2507
    %v2661 = vld.sshfl [vmem:[#allocation1] sm:$0xff pattern:$0x73625140]
    %v2662 = vsel %vm279, %v2657, 0
    %v2664 = vsel %vm279, %v2658, 0
    %v2666 = vsel %vm279, %v2661, 0
    %2668 = vmatpush.msra.mxu0 0.0
    %2669 = vmatpush.msra.mxu0 0.0
    %2670 = vmatpush.msra.mxu0 0.0
    %2671 = vmatpush.msra.mxu0 0.0
    %2672 = vmatpush.msra.mxu0 0.0
    %2673 = vmatpush.msra.mxu0 0.0
    %2674 = vmatpush.msra.mxu0 0.0
    %2675 = vmatpush.msra.mxu0 0.0
    %2676 = vmatpush.msra.mxu0 0.0
    %2677 = vmatpush.msra.mxu0 0.0
    %2678 = vmatpush.msra.mxu0 0.0
    %2679 = vmatpush.msra.mxu0 0.0
    %2680 = vmatpush.msra.mxu0 0.0
    %2681 = vmatpush.msra.mxu0 0.0
    %2682 = vmatpush.msra.mxu0 %v170
    %2683 = vmatpush.msra.mxu0 %v169
    %2684 = vmatmul.f32.gmra.mxu0 %v2662
    %v2685 = vpop.f32.mrf.mxu0
    %v2686 = vadd.f32 %v388, %v2685
    %2687 = vmatmul.f32.gmra.mxu0 %v2664
    %v2688 = vpop.f32.mrf.mxu0
    %v2689 = vadd.f32 %v388, %v2688
    %2690 = vmatmul.f32.gmra.mxu0 %v2666
    %v2691 = vpop.f32.mrf.mxu0
    %v2692 = vadd.f32 %v388, %v2691
    %2693 = vdwg.mxu0
    %v2697 = vrot.slane %v2686, 2
    %v2698 = vrot.slane %v2686, 4
    %v2699 = vrot.slane %v2686, 6
    %v2700 = vrot.slane %v2689, 2
    %v2701 = vrot.slane %v2689, 4
    %v2702 = vrot.slane %v2689, 6
    %v2703 = vrot.slane %v2692, 2
    %2704 = vst [vmem:[#allocation1] ss:$4 sm:$0xff] %v2562
    %s2705 = scalar_lea.vmem [#allocation1], 1
    %2706 = vst [vmem:[%s2705] ss:$4 sm:$0xff] %v2573
    %s2707 = scalar_lea.vmem [#allocation1], 2
    %2708 = vst [vmem:[%s2707] ss:$4 sm:$0xff] %v2574
    %s2709 = scalar_lea.vmem [#allocation1], 3
    %2710 = vst [vmem:[%s2709] ss:$4 sm:$0xff] %v2575
    %s2711 = scalar_lea.vmem [#allocation1], 32
    %2712 = vst [vmem:[%s2711] ss:$4 sm:$0xff] %v2565
    %v2713 = vld.sshfl [vmem:[#allocation1] sm:$0xff pattern:$0x73625140]
    %v2714 = vld.sshfl [vmem:[#allocation1 + $0x20] sm:$0xff pattern:$0x73625140]
    %2715 = vst [vmem:[#allocation1] ss:$4 sm:$0xff] %v2576
    %2716 = vst [vmem:[%s2705] ss:$4 sm:$0xff] %v2577
    %2717 = vst [vmem:[%s2707] ss:$4 sm:$0xff] %v2578
    %2718 = vst [vmem:[%s2709] ss:$4 sm:$0xff] %v2568
    %2719 = vst [vmem:[%s2711] ss:$4 sm:$0xff] %v2579
    %v2720 = vld.sshfl [vmem:[#allocation1] sm:$0xff pattern:$0x73625140]
    %v2721 = vld.sshfl [vmem:[#allocation1 + $0x20] sm:$0xff pattern:$0x73625140]
    %s2726 = scalar_lea.vmem [#allocation1], 1
    %2727 = vst [vmem:[%s2726] ss:$4 sm:$0xff] %v2562
    %s2728 = scalar_lea.vmem [#allocation1], 2
    %2729 = vst [vmem:[%s2728] ss:$4 sm:$0xff] %v2573
    %s2730 = scalar_lea.vmem [#allocation1], 3
    %2731 = vst [vmem:[%s2730] ss:$4 sm:$0xff] %v2574
    %s2732 = scalar_lea.vmem [#allocation1], 32
    %2733 = vst [vmem:[%s2732] ss:$4 sm:$0xff] %v2575
    %s2734 = scalar_lea.vmem [#allocation1], 33
    %2735 = vst [vmem:[%s2734] ss:$4 sm:$0xff] %v2565
    %v2736 = vld.sshfl [vmem:[#allocation1] sm:$0xff pattern:$0x73625140]
    %v2737 = vld.sshfl [vmem:[#allocation1 + $0x20] sm:$0xff pattern:$0x73625140]
    %2738 = vst [vmem:[%s2726] ss:$4 sm:$0xff] %v2576
    %2739 = vst [vmem:[%s2728] ss:$4 sm:$0xff] %v2577
    %2740 = vst [vmem:[%s2730] ss:$4 sm:$0xff] %v2578
    %2741 = vst [vmem:[%s2732] ss:$4 sm:$0xff] %v2568
    %2742 = vst [vmem:[%s2734] ss:$4 sm:$0xff] %v2579
    %v2743 = vld.sshfl [vmem:[#allocation1] sm:$0xff pattern:$0x73625140]
    %v2744 = vld.sshfl [vmem:[#allocation1 + $0x20] sm:$0xff pattern:$0x73625140]
    %s2749 = scalar_lea.vmem [#allocation1], 2
    %2750 = vst [vmem:[%s2749] ss:$4 sm:$0xff] %v2562
    %s2751 = scalar_lea.vmem [#allocation1], 3
    %2752 = vst [vmem:[%s2751] ss:$4 sm:$0xff] %v2573
    %s2753 = scalar_lea.vmem [#allocation1], 32
    %2754 = vst [vmem:[%s2753] ss:$4 sm:$0xff] %v2574
    %s2755 = scalar_lea.vmem [#allocation1], 33
    %2756 = vst [vmem:[%s2755] ss:$4 sm:$0xff] %v2575
    %s2757 = scalar_lea.vmem [#allocation1], 34
    %2758 = vst [vmem:[%s2757] ss:$4 sm:$0xff] %v2565
    %v2759 = vld.sshfl [vmem:[#allocation1] sm:$0xff pattern:$0x73625140]
    %v2760 = vld.sshfl [vmem:[#allocation1 + $0x20] sm:$0xff pattern:$0x73625140]
    %2761 = vst [vmem:[%s2749] ss:$4 sm:$0xff] %v2576
    %2762 = vst [vmem:[%s2751] ss:$4 sm:$0xff] %v2577
    %2763 = vst [vmem:[%s2753] ss:$4 sm:$0xff] %v2578
    %2764 = vst [vmem:[%s2755] ss:$4 sm:$0xff] %v2568
    %2765 = vst [vmem:[%s2757] ss:$4 sm:$0xff] %v2579
    %v2766 = vld.sshfl [vmem:[#allocation1] sm:$0xff pattern:$0x73625140]
    %v2767 = vld.sshfl [vmem:[#allocation1 + $0x20] sm:$0xff pattern:$0x73625140]
    %s2772 = scalar_lea.vmem [#allocation1], 3
    %2773 = vst [vmem:[%s2772] ss:$4 sm:$0xff] %v2562
    %s2774 = scalar_lea.vmem [#allocation1], 32
    %2775 = vst [vmem:[%s2774] ss:$4 sm:$0xff] %v2573
    %s2776 = scalar_lea.vmem [#allocation1], 33
    %2777 = vst [vmem:[%s2776] ss:$4 sm:$0xff] %v2574
    %s2778 = scalar_lea.vmem [#allocation1], 34
    %2779 = vst [vmem:[%s2778] ss:$4 sm:$0xff] %v2575
    %s2780 = scalar_lea.vmem [#allocation1], 35
    %2781 = vst [vmem:[%s2780] ss:$4 sm:$0xff] %v2565
    %v2782 = vld.sshfl [vmem:[#allocation1] sm:$0xff pattern:$0x73625140]
    %v2783 = vld.sshfl [vmem:[#allocation1 + $0x20] sm:$0xff pattern:$0x73625140]
    %2784 = vst [vmem:[%s2772] ss:$4 sm:$0xff] %v2576
    %2785 = vst [vmem:[%s2774] ss:$4 sm:$0xff] %v2577
    %2786 = vst [vmem:[%s2776] ss:$4 sm:$0xff] %v2578
    %2787 = vst [vmem:[%s2778] ss:$4 sm:$0xff] %v2568
    %2788 = vst [vmem:[%s2780] ss:$4 sm:$0xff] %v2579
    %v2789 = vld.sshfl [vmem:[#allocation1] sm:$0xff pattern:$0x73625140]
    %v2790 = vld.sshfl [vmem:[#allocation1 + $0x20] sm:$0xff pattern:$0x73625140]
    %2795 = vst [vmem:[#allocation1] ss:$4 sm:$0xff] %v2562
    %s2796 = scalar_lea.vmem [#allocation1], 1
    %2797 = vst [vmem:[%s2796] ss:$4 sm:$0xff] %v2573
    %s2798 = scalar_lea.vmem [#allocation1], 2
    %2799 = vst [vmem:[%s2798] ss:$4 sm:$0xff] %v2574
    %s2800 = scalar_lea.vmem [#allocation1], 3
    %2801 = vst [vmem:[%s2800] ss:$4 sm:$0xff] %v2575
    %s2802 = scalar_lea.vmem [#allocation1], 32
    %2803 = vst [vmem:[%s2802] ss:$4 sm:$0xff] %v2565
    %v2804 = vld.sshfl [vmem:[#allocation1] sm:$0xff pattern:$0x73625140]
    %v2805 = vld.sshfl [vmem:[#allocation1 + $0x20] sm:$0xff pattern:$0x73625140]
    %2806 = vst [vmem:[#allocation1] ss:$4 sm:$0xff] %v2576
    %2807 = vst [vmem:[%s2796] ss:$4 sm:$0xff] %v2577
    %2808 = vst [vmem:[%s2798] ss:$4 sm:$0xff] %v2578
    %2809 = vst [vmem:[%s2800] ss:$4 sm:$0xff] %v2568
    %2810 = vst [vmem:[%s2802] ss:$4 sm:$0xff] %v2579
    %v2811 = vld.sshfl [vmem:[#allocation1] sm:$0xff pattern:$0x73625140]
    %v2812 = vld.sshfl [vmem:[#allocation1 + $0x20] sm:$0xff pattern:$0x73625140]
    %s2817 = scalar_lea.vmem [#allocation1], 1
    %2818 = vst [vmem:[%s2817] ss:$4 sm:$0xff] %v2562
    %s2819 = scalar_lea.vmem [#allocation1], 2
    %2820 = vst [vmem:[%s2819] ss:$4 sm:$0xff] %v2573
    %s2821 = scalar_lea.vmem [#allocation1], 3
    %2822 = vst [vmem:[%s2821] ss:$4 sm:$0xff] %v2574
    %s2823 = scalar_lea.vmem [#allocation1], 32
    %2824 = vst [vmem:[%s2823] ss:$4 sm:$0xff] %v2575
    %s2825 = scalar_lea.vmem [#allocation1], 33
    %2826 = vst [vmem:[%s2825] ss:$4 sm:$0xff] %v2565
    %v2827 = vld.sshfl [vmem:[#allocation1] sm:$0xff pattern:$0x73625140]
    %v2828 = vld.sshfl [vmem:[#allocation1 + $0x20] sm:$0xff pattern:$0x73625140]
    %2829 = vst [vmem:[%s2817] ss:$4 sm:$0xff] %v2576
    %2830 = vst [vmem:[%s2819] ss:$4 sm:$0xff] %v2577
    %2831 = vst [vmem:[%s2821] ss:$4 sm:$0xff] %v2578
    %2832 = vst [vmem:[%s2823] ss:$4 sm:$0xff] %v2568
    %2833 = vst [vmem:[%s2825] ss:$4 sm:$0xff] %v2579
    %v2834 = vld.sshfl [vmem:[#allocation1] sm:$0xff pattern:$0x73625140]
    %v2835 = vld.sshfl [vmem:[#allocation1 + $0x20] sm:$0xff pattern:$0x73625140]
    %s2840 = scalar_lea.vmem [#allocation1], 2
    %2841 = vst [vmem:[%s2840] ss:$4 sm:$0xff] %v2562
    %s2842 = scalar_lea.vmem [#allocation1], 3
    %2843 = vst [vmem:[%s2842] ss:$4 sm:$0xff] %v2573
    %s2844 = scalar_lea.vmem [#allocation1], 32
    %2845 = vst [vmem:[%s2844] ss:$4 sm:$0xff] %v2574
    %s2846 = scalar_lea.vmem [#allocation1], 33
    %2847 = vst [vmem:[%s2846] ss:$4 sm:$0xff] %v2575
    %s2848 = scalar_lea.vmem [#allocation1], 34
    %2849 = vst [vmem:[%s2848] ss:$4 sm:$0xff] %v2565
    %v2850 = vld.sshfl [vmem:[#allocation1] sm:$0xff pattern:$0x73625140]
    %v2851 = vld.sshfl [vmem:[#allocation1 + $0x20] sm:$0xff pattern:$0x73625140]
    %2852 = vst [vmem:[%s2840] ss:$4 sm:$0xff] %v2576
    %2853 = vst [vmem:[%s2842] ss:$4 sm:$0xff] %v2577
    %2854 = vst [vmem:[%s2844] ss:$4 sm:$0xff] %v2578
    %2855 = vst [vmem:[%s2846] ss:$4 sm:$0xff] %v2568
    %2856 = vst [vmem:[%s2848] ss:$4 sm:$0xff] %v2579
    %v2857 = vld.sshfl [vmem:[#allocation1] sm:$0xff pattern:$0x73625140]
    %v2858 = vld.sshfl [vmem:[#allocation1 + $0x20] sm:$0xff pattern:$0x73625140]
    %s2863 = scalar_lea.vmem [#allocation1], 3
    %2864 = vst [vmem:[%s2863] ss:$4 sm:$0xff] %v2562
    %s2865 = scalar_lea.vmem [#allocation1], 32
    %2866 = vst [vmem:[%s2865] ss:$4 sm:$0xff] %v2573
    %s2867 = scalar_lea.vmem [#allocation1], 33
    %2868 = vst [vmem:[%s2867] ss:$4 sm:$0xff] %v2574
    %s2869 = scalar_lea.vmem [#allocation1], 34
    %2870 = vst [vmem:[%s2869] ss:$4 sm:$0xff] %v2575
    %s2871 = scalar_lea.vmem [#allocation1], 35
    %2872 = vst [vmem:[%s2871] ss:$4 sm:$0xff] %v2565
    %v2873 = vld.sshfl [vmem:[#allocation1] sm:$0xff pattern:$0x73625140]
    %v2874 = vld.sshfl [vmem:[#allocation1 + $0x20] sm:$0xff pattern:$0x73625140]
    %2875 = vst [vmem:[%s2863] ss:$4 sm:$0xff] %v2576
    %2876 = vst [vmem:[%s2865] ss:$4 sm:$0xff] %v2577
    %2877 = vst [vmem:[%s2867] ss:$4 sm:$0xff] %v2578
    %2878 = vst [vmem:[%s2869] ss:$4 sm:$0xff] %v2568
    %2879 = vst [vmem:[%s2871] ss:$4 sm:$0xff] %v2579
    %v2880 = vld.sshfl [vmem:[#allocation1] sm:$0xff pattern:$0x73625140]
    %v2881 = vld.sshfl [vmem:[#allocation1 + $0x20] sm:$0xff pattern:$0x73625140]
    %v2886 = vsel %vm634, %v2714, %v2736
    %v2887 = vsel %vm634, %v2721, %v2743
    %v2888 = vsel %vm637, %v2737, %v2759
    %v2889 = vsel %vm637, %v2744, %v2766
    %v2890 = vsel %vm640, %v2760, %v2782
    %v2891 = vsel %vm640, %v2767, %v2789
    %v2892 = vsel %vm634, %v2805, %v2827
    %v2893 = vsel %vm634, %v2812, %v2834
    %v2894 = vsel %vm637, %v2828, %v2850
    %v2895 = vsel %vm637, %v2835, %v2857
    %v2896 = vsel %vm640, %v2851, %v2873
    %v2897 = vsel %vm640, %v2858, %v2880
    %v2898 = vmul.f32 %v2713, %v222
    %v2899 = vmul.f32 %v2886, %v223
    %v2900 = vmul.f32 %v2888, %v224
    %v2901 = vmul.f32 %v2890, %v225
    %v2902 = vmul.f32 %v2783, %v226
    %v2903 = vmul.f32 %v2804, %v227
    %v2904 = vmul.f32 %v2892, %v228
    %v2905 = vmul.f32 %v2894, %v229
    %v2906 = vmul.f32 %v2896, %v230
    %v2907 = vmul.f32 %v2874, %v231
    %v2908 = vmul.f32 %v2720, %v222
    %v2909 = vmul.f32 %v2887, %v223
    %v2910 = vmul.f32 %v2889, %v224
    %v2911 = vmul.f32 %v2891, %v225
    %v2912 = vmul.f32 %v2790, %v226
    %v2913 = vmul.f32 %v2811, %v227
    %v2914 = vmul.f32 %v2893, %v228
    %v2915 = vmul.f32 %v2895, %v229
    %v2916 = vmul.f32 %v2897, %v230
    %v2917 = vmul.f32 %v2881, %v231
    %2918 = vst [vmem:[#allocation1] ss:$4 sm:$0xff] %v2624
    %s2919 = scalar_lea.vmem [#allocation1], 1
    %2920 = vst [vmem:[%s2919] ss:$4 sm:$0xff] %v2635
    %s2921 = scalar_lea.vmem [#allocation1], 2
    %2922 = vst [vmem:[%s2921] ss:$4 sm:$0xff] %v2636
    %s2923 = scalar_lea.vmem [#allocation1], 3
    %2924 = vst [vmem:[%s2923] ss:$4 sm:$0xff] %v2637
    %s2925 = scalar_lea.vmem [#allocation1], 32
    %2926 = vst [vmem:[%s2925] ss:$4 sm:$0xff] %v2627
    %v2927 = vld.sshfl [vmem:[#allocation1] sm:$0xff pattern:$0x73625140]
    %v2928 = vld.sshfl [vmem:[#allocation1 + $0x20] sm:$0xff pattern:$0x73625140]
    %v2930 = vsel %vm279, %v2898, 0
    %v2933 = vsel %vm279, %v2899, 0
    %v2936 = vsel %vm279, %v2900, 0
    %v2939 = vsel %vm279, %v2901, 0
    %v2942 = vsel %vm279, %v2902, 0
    %v2945 = vsel %vm279, %v2903, 0
    %v2948 = vsel %vm279, %v2904, 0
    %v2951 = vsel %vm279, %v2905, 0
    %v2954 = vsel %vm279, %v2906, 0
    %v2957 = vsel %vm279, %v2907, 0
    %v2959 = vsel %vm279, %v2927, 0
    %v2961 = vsel %vm279, %v2928, 0
    %2963 = vmatpush.xpose.msra.mxu0 0.0
    %2964 = vmatpush.xpose.msra.mxu0 0.0
    %2965 = vmatpush.xpose.msra.mxu0 0.0
    %2966 = vmatpush.xpose.msra.mxu0 0.0
    %2967 = vmatpush.xpose.msra.mxu0 0.0
    %2968 = vmatpush.xpose.msra.mxu0 0.0
    %2969 = vmatpush.xpose.msra.mxu0 0.0
    %2970 = vmatpush.xpose.msra.mxu0 0.0
    %2971 = vmatpush.xpose.msra.mxu0 0.0
    %2972 = vmatpush.xpose.msra.mxu0 0.0
    %2973 = vmatpush.xpose.msra.mxu0 0.0
    %2974 = vmatpush.xpose.msra.mxu0 0.0
    %2975 = vmatpush.xpose.msra.mxu0 0.0
    %2976 = vmatpush.xpose.msra.mxu0 0.0
    %2977 = vmatpush.xpose.msra.mxu0 %v2961
    %2978 = vmatpush.xpose.msra.mxu0 %v2959
    %2979 = vmatmul.f32.gmra.mxu0 %v2930
    %v2980 = vpop.f32.mrf.mxu0
    %v2981 = vadd.f32 0.0, %v2980
    %2982 = vmatmul.f32.gmra.mxu0 %v2933
    %v2983 = vpop.f32.mrf.mxu0
    %v2984 = vadd.f32 0.0, %v2983
    %2985 = vmatmul.f32.gmra.mxu0 %v2936
    %v2986 = vpop.f32.mrf.mxu0
    %v2987 = vadd.f32 0.0, %v2986
    %2988 = vmatmul.f32.gmra.mxu0 %v2939
    %v2989 = vpop.f32.mrf.mxu0
    %v2990 = vadd.f32 0.0, %v2989
    %2991 = vmatmul.f32.gmra.mxu0 %v2942
    %v2992 = vpop.f32.mrf.mxu0
    %v2993 = vadd.f32 0.0, %v2992
    %2994 = vmatmul.f32.gmra.mxu0 %v2945
    %v2995 = vpop.f32.mrf.mxu0
    %v2996 = vadd.f32 0.0, %v2995
    %2997 = vmatmul.f32.gmra.mxu0 %v2948
    %v2998 = vpop.f32.mrf.mxu0
    %v2999 = vadd.f32 0.0, %v2998
    %3000 = vmatmul.f32.gmra.mxu0 %v2951
    %v3001 = vpop.f32.mrf.mxu0
    %v3002 = vadd.f32 0.0, %v3001
    %3003 = vmatmul.f32.gmra.mxu0 %v2954
    %v3004 = vpop.f32.mrf.mxu0
    %v3005 = vadd.f32 0.0, %v3004
    %3006 = vmatmul.f32.gmra.mxu0 %v2957
    %v3007 = vpop.f32.mrf.mxu0
    %v3008 = vadd.f32 0.0, %v3007
    %3009 = vdwg.mxu0
    %3010 = vst [vmem:[#allocation1] ss:$4 sm:$0xff] %v2638
    %s3011 = scalar_lea.vmem [#allocation1], 1
    %3012 = vst [vmem:[%s3011] ss:$4 sm:$0xff] %v2639
    %s3013 = scalar_lea.vmem [#allocation1], 2
    %3014 = vst [vmem:[%s3013] ss:$4 sm:$0xff] %v2640
    %s3015 = scalar_lea.vmem [#allocation1], 3
    %3016 = vst [vmem:[%s3015] ss:$4 sm:$0xff] %v2630
    %s3017 = scalar_lea.vmem [#allocation1], 32
    %3018 = vst [vmem:[%s3017] ss:$4 sm:$0xff] %v2641
    %v3019 = vld.sshfl [vmem:[#allocation1] sm:$0xff pattern:$0x73625140]
    %v3020 = vld.sshfl [vmem:[#allocation1 + $0x20] sm:$0xff pattern:$0x73625140]
    %v3022 = vsel %vm279, %v2908, 0
    %v3025 = vsel %vm279, %v2909, 0
    %v3028 = vsel %vm279, %v2910, 0
    %v3031 = vsel %vm279, %v2911, 0
    %v3034 = vsel %vm279, %v2912, 0
    %v3037 = vsel %vm279, %v2913, 0
    %v3040 = vsel %vm279, %v2914, 0
    %v3043 = vsel %vm279, %v2915, 0
    %v3046 = vsel %vm279, %v2916, 0
    %v3049 = vsel %vm279, %v2917, 0
    %v3051 = vsel %vm279, %v3019, 0
    %v3053 = vsel %vm279, %v3020, 0
    %3055 = vmatpush.xpose.msra.mxu0 0.0
    %3056 = vmatpush.xpose.msra.mxu0 0.0
    %3057 = vmatpush.xpose.msra.mxu0 0.0
    %3058 = vmatpush.xpose.msra.mxu0 0.0
    %3059 = vmatpush.xpose.msra.mxu0 0.0
    %3060 = vmatpush.xpose.msra.mxu0 0.0
    %3061 = vmatpush.xpose.msra.mxu0 0.0
    %3062 = vmatpush.xpose.msra.mxu0 0.0
    %3063 = vmatpush.xpose.msra.mxu0 0.0
    %3064 = vmatpush.xpose.msra.mxu0 0.0
    %3065 = vmatpush.xpose.msra.mxu0 0.0
    %3066 = vmatpush.xpose.msra.mxu0 0.0
    %3067 = vmatpush.xpose.msra.mxu0 0.0
    %3068 = vmatpush.xpose.msra.mxu0 0.0
    %3069 = vmatpush.xpose.msra.mxu0 %v3053
    %3070 = vmatpush.xpose.msra.mxu0 %v3051
    %3071 = vmatmul.f32.gmra.mxu0 %v3022
    %v3072 = vpop.f32.mrf.mxu0
    %v3073 = vadd.f32 0.0, %v3072
    %3074 = vmatmul.f32.gmra.mxu0 %v3025
    %v3075 = vpop.f32.mrf.mxu0
    %v3076 = vadd.f32 0.0, %v3075
    %3077 = vmatmul.f32.gmra.mxu0 %v3028
    %v3078 = vpop.f32.mrf.mxu0
    %v3079 = vadd.f32 0.0, %v3078
    %3080 = vmatmul.f32.gmra.mxu0 %v3031
    %v3081 = vpop.f32.mrf.mxu0
    %v3082 = vadd.f32 0.0, %v3081
    %3083 = vmatmul.f32.gmra.mxu0 %v3034
    %v3084 = vpop.f32.mrf.mxu0
    %v3085 = vadd.f32 0.0, %v3084
    %3086 = vmatmul.f32.gmra.mxu0 %v3037
    %v3087 = vpop.f32.mrf.mxu0
    %v3088 = vadd.f32 0.0, %v3087
    %3089 = vmatmul.f32.gmra.mxu0 %v3040
    %v3090 = vpop.f32.mrf.mxu0
    %v3091 = vadd.f32 0.0, %v3090
    %3092 = vmatmul.f32.gmra.mxu0 %v3043
    %v3093 = vpop.f32.mrf.mxu0
    %v3094 = vadd.f32 0.0, %v3093
    %3095 = vmatmul.f32.gmra.mxu0 %v3046
    %v3096 = vpop.f32.mrf.mxu0
    %v3097 = vadd.f32 0.0, %v3096
    %3098 = vmatmul.f32.gmra.mxu0 %v3049
    %v3099 = vpop.f32.mrf.mxu0
    %v3100 = vadd.f32 0.0, %v3099
    %3101 = vdwg.mxu0
    %v3102 = vsel %vm853, %v2981, -inf
    %3103 = vmax.xlane.f32.xlu0 %v3102
    %v3104 = vpop.xlane.xlu0 %3103
    %v3105 = vsel %vm853, %v2984, -inf
    %3106 = vmax.xlane.f32.xlu0 %v3105
    %v3107 = vpop.xlane.xlu0 %3106
    %v3108 = vsel %vm853, %v2987, -inf
    %3109 = vmax.xlane.f32.xlu0 %v3108
    %v3110 = vpop.xlane.xlu0 %3109
    %v3111 = vsel %vm853, %v2990, -inf
    %3112 = vmax.xlane.f32.xlu0 %v3111
    %v3113 = vpop.xlane.xlu0 %3112
    %v3114 = vsel %vm853, %v2993, -inf
    %3115 = vmax.xlane.f32.xlu0 %v3114
    %v3116 = vpop.xlane.xlu0 %3115
    %v3117 = vsel %vm853, %v2996, -inf
    %3118 = vmax.xlane.f32.xlu0 %v3117
    %v3119 = vpop.xlane.xlu0 %3118
    %v3120 = vsel %vm853, %v2999, -inf
    %3121 = vmax.xlane.f32.xlu0 %v3120
    %v3122 = vpop.xlane.xlu0 %3121
    %v3123 = vsel %vm853, %v3002, -inf
    %3124 = vmax.xlane.f32.xlu0 %v3123
    %v3125 = vpop.xlane.xlu0 %3124
    %v3126 = vsel %vm853, %v3005, -inf
    %3127 = vmax.xlane.f32.xlu0 %v3126
    %v3128 = vpop.xlane.xlu0 %3127
    %v3129 = vsel %vm853, %v3008, -inf
    %3130 = vmax.xlane.f32.xlu0 %v3129
    %v3131 = vpop.xlane.xlu0 %3130
    %v3132 = vsel %vm853, %v3073, -inf
    %3133 = vmax.xlane.f32.xlu0 %v3132
    %v3134 = vpop.xlane.xlu0 %3133
    %v3135 = vsel %vm853, %v3076, -inf
    %3136 = vmax.xlane.f32.xlu0 %v3135
    %v3137 = vpop.xlane.xlu0 %3136
    %v3138 = vsel %vm853, %v3079, -inf
    %3139 = vmax.xlane.f32.xlu0 %v3138
    %v3140 = vpop.xlane.xlu0 %3139
    %v3141 = vsel %vm853, %v3082, -inf
    %3142 = vmax.xlane.f32.xlu0 %v3141
    %v3143 = vpop.xlane.xlu0 %3142
    %v3144 = vsel %vm853, %v3085, -inf
    %3145 = vmax.xlane.f32.xlu0 %v3144
    %v3146 = vpop.xlane.xlu0 %3145
    %v3147 = vsel %vm853, %v3088, -inf
    %3148 = vmax.xlane.f32.xlu0 %v3147
    %v3149 = vpop.xlane.xlu0 %3148
    %v3150 = vsel %vm853, %v3091, -inf
    %3151 = vmax.xlane.f32.xlu0 %v3150
    %v3152 = vpop.xlane.xlu0 %3151
    %v3153 = vsel %vm853, %v3094, -inf
    %3154 = vmax.xlane.f32.xlu0 %v3153
    %v3155 = vpop.xlane.xlu0 %3154
    %v3156 = vsel %vm853, %v3097, -inf
    %3157 = vmax.xlane.f32.xlu0 %v3156
    %v3158 = vpop.xlane.xlu0 %3157
    %v3159 = vsel %vm853, %v3100, -inf
    %3160 = vmax.xlane.f32.xlu0 %v3159
    %v3161 = vpop.xlane.xlu0 %3160
    %v3162 = vsub.f32 %v2981, %v3104
    %v3163 = vsub.f32 %v2984, %v3107
    %v3164 = vsub.f32 %v2987, %v3110
    %v3165 = vsub.f32 %v2990, %v3113
    %v3166 = vsub.f32 %v2993, %v3116
    %v3167 = vsub.f32 %v2996, %v3119
    %v3168 = vsub.f32 %v2999, %v3122
    %v3169 = vsub.f32 %v3002, %v3125
    %v3170 = vsub.f32 %v3005, %v3128
    %v3171 = vsub.f32 %v3008, %v3131
    %v3172 = vsub.f32 %v3073, %v3134
    %v3173 = vsub.f32 %v3076, %v3137
    %v3174 = vsub.f32 %v3079, %v3140
    %v3175 = vsub.f32 %v3082, %v3143
    %v3176 = vsub.f32 %v3085, %v3146
    %v3177 = vsub.f32 %v3088, %v3149
    %v3178 = vsub.f32 %v3091, %v3152
    %v3179 = vsub.f32 %v3094, %v3155
    %v3180 = vsub.f32 %v3097, %v3158
    %v3181 = vsub.f32 %v3100, %v3161
    %v3182 = vmul.f32 %v3162, 1.442695
    %v3183 = vpow.pop %v3182
    %v3184 = vmul.f32 %v3163, 1.442695
    %v3185 = vpow.pop %v3184
    %v3186 = vmul.f32 %v3164, 1.442695
    %v3187 = vpow.pop %v3186
    %v3188 = vmul.f32 %v3165, 1.442695
    %v3189 = vpow.pop %v3188
    %v3190 = vmul.f32 %v3166, 1.442695
    %v3191 = vpow.pop %v3190
    %v3192 = vmul.f32 %v3167, 1.442695
    %v3193 = vpow.pop %v3192
    %v3194 = vmul.f32 %v3168, 1.442695
    %v3195 = vpow.pop %v3194
    %v3196 = vmul.f32 %v3169, 1.442695
    %v3197 = vpow.pop %v3196
    %v3198 = vmul.f32 %v3170, 1.442695
    %v3199 = vpow.pop %v3198
    %v3200 = vmul.f32 %v3171, 1.442695
    %v3201 = vpow.pop %v3200
    %v3202 = vmul.f32 %v3172, 1.442695
    %v3203 = vpow.pop %v3202
    %v3204 = vmul.f32 %v3173, 1.442695
    %v3205 = vpow.pop %v3204
    %v3206 = vmul.f32 %v3174, 1.442695
    %v3207 = vpow.pop %v3206
    %v3208 = vmul.f32 %v3175, 1.442695
    %v3209 = vpow.pop %v3208
    %v3210 = vmul.f32 %v3176, 1.442695
    %v3211 = vpow.pop %v3210
    %v3212 = vmul.f32 %v3177, 1.442695
    %v3213 = vpow.pop %v3212
    %v3214 = vmul.f32 %v3178, 1.442695
    %v3215 = vpow.pop %v3214
    %v3216 = vmul.f32 %v3179, 1.442695
    %v3217 = vpow.pop %v3216
    %v3218 = vmul.f32 %v3180, 1.442695
    %v3219 = vpow.pop %v3218
    %v3220 = vmul.f32 %v3181, 1.442695
    %v3221 = vpow.pop %v3220
    %v3222 = vsel %vm853, %v3183, 0.0
    %3223 = vadd.xlane.f32.xlu0 %v3222
    %v3224 = vpop.xlane.xlu0 %3223
    %v3225 = vsel %vm853, %v3185, 0.0
    %3226 = vadd.xlane.f32.xlu0 %v3225
    %v3227 = vpop.xlane.xlu0 %3226
    %v3228 = vsel %vm853, %v3187, 0.0
    %3229 = vadd.xlane.f32.xlu0 %v3228
    %v3230 = vpop.xlane.xlu0 %3229
    %v3231 = vsel %vm853, %v3189, 0.0
    %3232 = vadd.xlane.f32.xlu0 %v3231
    %v3233 = vpop.xlane.xlu0 %3232
    %v3234 = vsel %vm853, %v3191, 0.0
    %3235 = vadd.xlane.f32.xlu0 %v3234
    %v3236 = vpop.xlane.xlu0 %3235
    %v3237 = vsel %vm853, %v3193, 0.0
    %3238 = vadd.xlane.f32.xlu0 %v3237
    %v3239 = vpop.xlane.xlu0 %3238
    %v3240 = vsel %vm853, %v3195, 0.0
    %3241 = vadd.xlane.f32.xlu0 %v3240
    %v3242 = vpop.xlane.xlu0 %3241
    %v3243 = vsel %vm853, %v3197, 0.0
    %3244 = vadd.xlane.f32.xlu0 %v3243
    %v3245 = vpop.xlane.xlu0 %3244
    %v3246 = vsel %vm853, %v3199, 0.0
    %3247 = vadd.xlane.f32.xlu0 %v3246
    %v3248 = vpop.xlane.xlu0 %3247
    %v3249 = vsel %vm853, %v3201, 0.0
    %3250 = vadd.xlane.f32.xlu0 %v3249
    %v3251 = vpop.xlane.xlu0 %3250
    %v3252 = vsel %vm853, %v3203, 0.0
    %3253 = vadd.xlane.f32.xlu0 %v3252
    %v3254 = vpop.xlane.xlu0 %3253
    %v3255 = vsel %vm853, %v3205, 0.0
    %3256 = vadd.xlane.f32.xlu0 %v3255
    %v3257 = vpop.xlane.xlu0 %3256
    %v3258 = vsel %vm853, %v3207, 0.0
    %3259 = vadd.xlane.f32.xlu0 %v3258
    %v3260 = vpop.xlane.xlu0 %3259
    %v3261 = vsel %vm853, %v3209, 0.0
    %3262 = vadd.xlane.f32.xlu0 %v3261
    %v3263 = vpop.xlane.xlu0 %3262
    %v3264 = vsel %vm853, %v3211, 0.0
    %3265 = vadd.xlane.f32.xlu0 %v3264
    %v3266 = vpop.xlane.xlu0 %3265
    %v3267 = vsel %vm853, %v3213, 0.0
    %3268 = vadd.xlane.f32.xlu0 %v3267
    %v3269 = vpop.xlane.xlu0 %3268
    %v3270 = vsel %vm853, %v3215, 0.0
    %3271 = vadd.xlane.f32.xlu0 %v3270
    %v3272 = vpop.xlane.xlu0 %3271
    %v3273 = vsel %vm853, %v3217, 0.0
    %3274 = vadd.xlane.f32.xlu0 %v3273
    %v3275 = vpop.xlane.xlu0 %3274
    %v3276 = vsel %vm853, %v3219, 0.0
    %3277 = vadd.xlane.f32.xlu0 %v3276
    %v3278 = vpop.xlane.xlu0 %3277
    %v3279 = vsel %vm853, %v3221, 0.0
    %3280 = vadd.xlane.f32.xlu0 %v3279
    %v3281 = vpop.xlane.xlu0 %3280
    %v3282 = vrcp.pop %v3224
    %v3283 = vrcp.pop %v3227
    %v3284 = vrcp.pop %v3230
    %v3285 = vrcp.pop %v3233
    %v3286 = vrcp.pop %v3236
    %v3287 = vrcp.pop %v3239
    %v3288 = vrcp.pop %v3242
    %v3289 = vrcp.pop %v3245
    %v3290 = vrcp.pop %v3248
    %v3291 = vrcp.pop %v3251
    %v3292 = vrcp.pop %v3254
    %v3293 = vrcp.pop %v3257
    %v3294 = vrcp.pop %v3260
    %v3295 = vrcp.pop %v3263
    %v3296 = vrcp.pop %v3266
    %v3297 = vrcp.pop %v3269
    %v3298 = vrcp.pop %v3272
    %v3299 = vrcp.pop %v3275
    %v3300 = vrcp.pop %v3278
    %v3301 = vrcp.pop %v3281
    %v3302 = vmul.f32 %v3183, %v3282
    %v3303 = vmul.f32 %v3185, %v3283
    %v3304 = vmul.f32 %v3187, %v3284
    %v3305 = vmul.f32 %v3189, %v3285
    %v3306 = vmul.f32 %v3191, %v3286
    %v3307 = vmul.f32 %v3193, %v3287
    %v3308 = vmul.f32 %v3195, %v3288
    %v3309 = vmul.f32 %v3197, %v3289
    %v3310 = vmul.f32 %v3199, %v3290
    %v3311 = vmul.f32 %v3201, %v3291
    %v3312 = vmul.f32 %v3203, %v3292
    %v3313 = vmul.f32 %v3205, %v3293
    %v3314 = vmul.f32 %v3207, %v3294
    %v3315 = vmul.f32 %v3209, %v3295
    %v3316 = vmul.f32 %v3211, %v3296
    %v3317 = vmul.f32 %v3213, %v3297
    %v3318 = vmul.f32 %v3215, %v3298
    %v3319 = vmul.f32 %v3217, %v3299
    %v3320 = vmul.f32 %v3219, %v3300
    %v3321 = vmul.f32 %v3221, %v3301
    %3322 = vst [vmem:[#allocation1] ss:$4 sm:$0xff] %v2686
    %s3323 = scalar_lea.vmem [#allocation1], 1
    %3324 = vst [vmem:[%s3323] ss:$4 sm:$0xff] %v2697
    %s3325 = scalar_lea.vmem [#allocation1], 2
    %3326 = vst [vmem:[%s3325] ss:$4 sm:$0xff] %v2698
    %s3327 = scalar_lea.vmem [#allocation1], 3
    %3328 = vst [vmem:[%s3327] ss:$4 sm:$0xff] %v2699
    %s3329 = scalar_lea.vmem [#allocation1], 32
    %3330 = vst [vmem:[%s3329] ss:$4 sm:$0xff] %v2689
    %v3331 = vld.sshfl [vmem:[#allocation1] sm:$0xff pattern:$0x73625140]
    %v3332 = vld.sshfl [vmem:[#allocation1 + $0x20] sm:$0xff pattern:$0x73625140]
    %v3335 = vsel %vm853, %v3302, 0
    %v3338 = vsel %vm853, %v3303, 0
    %v3341 = vsel %vm853, %v3304, 0
    %v3344 = vsel %vm853, %v3305, 0
    %v3347 = vsel %vm853, %v3306, 0
    %v3350 = vsel %vm853, %v3307, 0
    %v3353 = vsel %vm853, %v3308, 0
    %v3356 = vsel %vm853, %v3309, 0
    %v3359 = vsel %vm853, %v3310, 0
    %v3362 = vsel %vm853, %v3311, 0
    %v3364 = vsel %vm634, %v3332, 0
    %3366 = vmatpush.msra.mxu0 0.0
    %3367 = vmatpush.msra.mxu0 0.0
    %3368 = vmatpush.msra.mxu0 0.0
    %3369 = vmatpush.msra.mxu0 0.0
    %3370 = vmatpush.msra.mxu0 0.0
    %3371 = vmatpush.msra.mxu0 0.0
    %3372 = vmatpush.msra.mxu0 0.0
    %3373 = vmatpush.msra.mxu0 0.0
    %3374 = vmatpush.msra.mxu0 0.0
    %3375 = vmatpush.msra.mxu0 0.0
    %3376 = vmatpush.msra.mxu0 0.0
    %3377 = vmatpush.msra.mxu0 0.0
    %3378 = vmatpush.msra.mxu0 0.0
    %3379 = vmatpush.msra.mxu0 0.0
    %3380 = vmatpush.msra.mxu0 %v3364
    %3381 = vmatpush.msra.mxu0 %v3331
    %3382 = vmatmul.f32.gmra.mxu0 %v3335
    %v3383 = vpop.f32.mrf.mxu0
    %v3384 = vadd.f32 0.0, %v3383
    %3385 = vmatmul.f32.gmra.mxu0 %v3338
    %v3386 = vpop.f32.mrf.mxu0
    %v3387 = vadd.f32 0.0, %v3386
    %3388 = vmatmul.f32.gmra.mxu0 %v3341
    %v3389 = vpop.f32.mrf.mxu0
    %v3390 = vadd.f32 0.0, %v3389
    %3391 = vmatmul.f32.gmra.mxu0 %v3344
    %v3392 = vpop.f32.mrf.mxu0
    %v3393 = vadd.f32 0.0, %v3392
    %3394 = vmatmul.f32.gmra.mxu0 %v3347
    %v3395 = vpop.f32.mrf.mxu0
    %v3396 = vadd.f32 0.0, %v3395
    %3397 = vmatmul.f32.gmra.mxu0 %v3350
    %v3398 = vpop.f32.mrf.mxu0
    %v3399 = vadd.f32 0.0, %v3398
    %3400 = vmatmul.f32.gmra.mxu0 %v3353
    %v3401 = vpop.f32.mrf.mxu0
    %v3402 = vadd.f32 0.0, %v3401
    %3403 = vmatmul.f32.gmra.mxu0 %v3356
    %v3404 = vpop.f32.mrf.mxu0
    %v3405 = vadd.f32 0.0, %v3404
    %3406 = vmatmul.f32.gmra.mxu0 %v3359
    %v3407 = vpop.f32.mrf.mxu0
    %v3408 = vadd.f32 0.0, %v3407
    %3409 = vmatmul.f32.gmra.mxu0 %v3362
    %v3410 = vpop.f32.mrf.mxu0
    %v3411 = vadd.f32 0.0, %v3410
    %3412 = vdwg.mxu0
    %3413 = vst [vmem:[#allocation1] ss:$4 sm:$0xff] %v2700
    %s3414 = scalar_lea.vmem [#allocation1], 1
    %3415 = vst [vmem:[%s3414] ss:$4 sm:$0xff] %v2701
    %s3416 = scalar_lea.vmem [#allocation1], 2
    %3417 = vst [vmem:[%s3416] ss:$4 sm:$0xff] %v2702
    %s3418 = scalar_lea.vmem [#allocation1], 3
    %3419 = vst [vmem:[%s3418] ss:$4 sm:$0xff] %v2692
    %s3420 = scalar_lea.vmem [#allocation1], 32
    %3421 = vst [vmem:[%s3420] ss:$4 sm:$0xff] %v2703
    %v3422 = vld.sshfl [vmem:[#allocation1] sm:$0xff pattern:$0x73625140]
    %v3423 = vld.sshfl [vmem:[#allocation1 + $0x20] sm:$0xff pattern:$0x73625140]
    %v3426 = vsel %vm853, %v3312, 0
    %v3429 = vsel %vm853, %v3313, 0
    %v3432 = vsel %vm853, %v3314, 0
    %v3435 = vsel %vm853, %v3315, 0
    %v3438 = vsel %vm853, %v3316, 0
    %v3441 = vsel %vm853, %v3317, 0
    %v3444 = vsel %vm853, %v3318, 0
    %v3447 = vsel %vm853, %v3319, 0
    %v3450 = vsel %vm853, %v3320, 0
    %v3453 = vsel %vm853, %v3321, 0
    %v3455 = vsel %vm634, %v3423, 0
    %3457 = vmatpush.msra.mxu0 0.0
    %3458 = vmatpush.msra.mxu0 0.0
    %3459 = vmatpush.msra.mxu0 0.0
    %3460 = vmatpush.msra.mxu0 0.0
    %3461 = vmatpush.msra.mxu0 0.0
    %3462 = vmatpush.msra.mxu0 0.0
    %3463 = vmatpush.msra.mxu0 0.0
    %3464 = vmatpush.msra.mxu0 0.0
    %3465 = vmatpush.msra.mxu0 0.0
    %3466 = vmatpush.msra.mxu0 0.0
    %3467 = vmatpush.msra.mxu0 0.0
    %3468 = vmatpush.msra.mxu0 0.0
    %3469 = vmatpush.msra.mxu0 0.0
    %3470 = vmatpush.msra.mxu0 0.0
    %3471 = vmatpush.msra.mxu0 %v3455
    %3472 = vmatpush.msra.mxu0 %v3422
    %3473 = vmatmul.f32.gmra.mxu0 %v3426
    %v3474 = vpop.f32.mrf.mxu0
    %v3475 = vadd.f32 0.0, %v3474
    %3476 = vmatmul.f32.gmra.mxu0 %v3429
    %v3477 = vpop.f32.mrf.mxu0
    %v3478 = vadd.f32 0.0, %v3477
    %3479 = vmatmul.f32.gmra.mxu0 %v3432
    %v3480 = vpop.f32.mrf.mxu0
    %v3481 = vadd.f32 0.0, %v3480
    %3482 = vmatmul.f32.gmra.mxu0 %v3435
    %v3483 = vpop.f32.mrf.mxu0
    %v3484 = vadd.f32 0.0, %v3483
    %3485 = vmatmul.f32.gmra.mxu0 %v3438
    %v3486 = vpop.f32.mrf.mxu0
    %v3487 = vadd.f32 0.0, %v3486
    %3488 = vmatmul.f32.gmra.mxu0 %v3441
    %v3489 = vpop.f32.mrf.mxu0
    %v3490 = vadd.f32 0.0, %v3489
    %3491 = vmatmul.f32.gmra.mxu0 %v3444
    %v3492 = vpop.f32.mrf.mxu0
    %v3493 = vadd.f32 0.0, %v3492
    %3494 = vmatmul.f32.gmra.mxu0 %v3447
    %v3495 = vpop.f32.mrf.mxu0
    %v3496 = vadd.f32 0.0, %v3495
    %3497 = vmatmul.f32.gmra.mxu0 %v3450
    %v3498 = vpop.f32.mrf.mxu0
    %v3499 = vadd.f32 0.0, %v3498
    %3500 = vmatmul.f32.gmra.mxu0 %v3453
    %v3501 = vpop.f32.mrf.mxu0
    %v3502 = vadd.f32 0.0, %v3501
    %3503 = vdwg.mxu0
    %v3504 = vmul.f32 %v3384, %v222
    %v3505 = vmul.f32 %v3387, %v223
    %v3506 = vmul.f32 %v3390, %v224
    %v3507 = vmul.f32 %v3393, %v225
    %v3508 = vmul.f32 %v3396, %v226
    %v3509 = vmul.f32 %v3399, %v227
    %v3510 = vmul.f32 %v3402, %v228
    %v3511 = vmul.f32 %v3405, %v229
    %v3512 = vmul.f32 %v3408, %v230
    %v3513 = vmul.f32 %v3411, %v231
    %v3514 = vmul.f32 %v3475, %v222
    %v3515 = vmul.f32 %v3478, %v223
    %v3516 = vmul.f32 %v3481, %v224
    %v3517 = vmul.f32 %v3484, %v225
    %v3518 = vmul.f32 %v3487, %v226
    %v3519 = vmul.f32 %v3490, %v227
    %v3520 = vmul.f32 %v3493, %v228
    %v3521 = vmul.f32 %v3496, %v229
    %v3522 = vmul.f32 %v3499, %v230
    %v3523 = vmul.f32 %v3502, %v231
    %v3528 = vrot.slane %v3505, 2
    %v3529 = vrot.slane %v3506, 2
    %v3530 = vsel %vm640, %v3528, %v3529
    %v3531 = vrot.slane %v3515, 2
    %v3532 = vrot.slane %v3516, 2
    %v3533 = vsel %vm640, %v3531, %v3532
    %v3538 = vadd.f32 %v3504, %v3530
    %v3539 = vadd.f32 %v3505, %v3529
    %v3540 = vadd.f32 %v3514, %v3533
    %v3541 = vadd.f32 %v3515, %v3532
    %v3544 = vrot.slane %v3506, 4
    %v3545 = vrot.slane %v3507, 4
    %v3546 = vsel %vm637, %v3544, %v3545
    %v3547 = vrot.slane %v3516, 4
    %v3548 = vrot.slane %v3517, 4
    %v3549 = vsel %vm637, %v3547, %v3548
    %v3554 = vadd.f32 %v3538, %v3546
    %v3555 = vadd.f32 %v3539, %v3545
    %v3556 = vadd.f32 %v3540, %v3549
    %v3557 = vadd.f32 %v3541, %v3548
    %v3560 = vrot.slane %v3507, 6
    %v3561 = vrot.slane %v3508, 6
    %v3562 = vsel %vm634, %v3560, %v3561
    %v3563 = vrot.slane %v3517, 6
    %v3564 = vrot.slane %v3518, 6
    %v3565 = vsel %vm634, %v3563, %v3564
    %v3570 = vadd.f32 %v3554, %v3562
    %v3571 = vadd.f32 %v3555, %v3561
    %v3572 = vadd.f32 %v3556, %v3565
    %v3573 = vadd.f32 %v3557, %v3564
    %v3574 = vadd.f32 %v3570, %v3509
    %v3575 = vadd.f32 %v3571, %v3510
    %v3576 = vadd.f32 %v3572, %v3519
    %v3577 = vadd.f32 %v3573, %v3520
    %v3582 = vrot.slane %v3510, 2
    %v3583 = vrot.slane %v3511, 2
    %v3584 = vsel %vm640, %v3582, %v3583
    %v3585 = vrot.slane %v3520, 2
    %v3586 = vrot.slane %v3521, 2
    %v3587 = vsel %vm640, %v3585, %v3586
    %v3592 = vadd.f32 %v3574, %v3584
    %v3593 = vadd.f32 %v3575, %v3583
    %v3594 = vadd.f32 %v3576, %v3587
    %v3595 = vadd.f32 %v3577, %v3586
    %v3598 = vrot.slane %v3511, 4
    %v3599 = vrot.slane %v3512, 4
    %v3600 = vsel %vm637, %v3598, %v3599
    %v3601 = vrot.slane %v3521, 4
    %v3602 = vrot.slane %v3522, 4
    %v3603 = vsel %vm637, %v3601, %v3602
    %v3608 = vadd.f32 %v3592, %v3600
    %v3609 = vadd.f32 %v3593, %v3599
    %v3610 = vadd.f32 %v3594, %v3603
    %v3611 = vadd.f32 %v3595, %v3602
    %v3614 = vrot.slane %v3512, 6
    %v3615 = vrot.slane %v3513, 6
    %v3616 = vsel %vm634, %v3614, %v3615
    %v3617 = vrot.slane %v3522, 6
    %v3618 = vrot.slane %v3523, 6
    %v3619 = vsel %vm634, %v3617, %v3618
    %v3624 = vadd.f32 %v3608, %v3616
    %v3625 = vadd.f32 %v3609, %v3615
    %v3626 = vadd.f32 %v3610, %v3619
    %v3627 = vadd.f32 %v3611, %v3618
    %v3632 = vrot.slane %v3624, 2
    %v3633 = vrot.slane %v3624, 4
    %v3634 = vrot.slane %v3624, 6
    %v3635 = vrot.slane %v3626, 2
    %v3636 = vrot.slane %v3626, 4
    %v3637 = vrot.slane %v3626, 6
    %3638 = vst [vmem:[#allocation1] ss:$4 sm:$0xff] %v3624
    %s3639 = scalar_lea.vmem [#allocation1], 1
    %3640 = vst [vmem:[%s3639] ss:$4 sm:$0xff] %v3632
    %s3641 = scalar_lea.vmem [#allocation1], 2
    %3642 = vst [vmem:[%s3641] ss:$4 sm:$0xff] %v3633
    %s3643 = scalar_lea.vmem [#allocation1], 3
    %3644 = vst [vmem:[%s3643] ss:$4 sm:$0xff] %v3634
    %s3645 = scalar_lea.vmem [#allocation1], 32
    %3646 = vst [vmem:[%s3645] ss:$4 sm:$0xff] %v3625
    %s3647 = scalar_lea.vmem [#allocation1], 33
    %3648 = vst [vmem:[%s3647] ss:$4 sm:$0xff] %v3626
    %s3649 = scalar_lea.vmem [#allocation1], 34
    %3650 = vst [vmem:[%s3649] ss:$4 sm:$0xff] %v3635
    %s3651 = scalar_lea.vmem [#allocation1], 35
    %3652 = vst [vmem:[%s3651] ss:$4 sm:$0xff] %v3636
    %v3653 = vld.sshfl [vmem:[#allocation1] sm:$0xff pattern:$0x73625140]
    %v3654 = vld.sshfl [vmem:[#allocation1 + $0x20] sm:$0xff pattern:$0x73625140]
    %3655 = vst [vmem:[#allocation1] ss:$4 sm:$0xff] %v3637
    %3656 = vst [vmem:[%s3639] ss:$4 sm:$0xff] %v3627
    %v3657 = vld.sshfl [vmem:[#allocation1] sm:$0xff pattern:$0x73625140]
    %v3658 = vsel %vm279, %v3653, 0
    %v3660 = vsel %vm279, %v3654, 0
    %v3662 = vsel %vm279, %v3657, 0
    %3664 = vmatpush.msra.mxu0 0.0
    %3665 = vmatpush.msra.mxu0 0.0
    %3666 = vmatpush.msra.mxu0 0.0
    %3667 = vmatpush.msra.mxu0 0.0
    %3668 = vmatpush.msra.mxu0 0.0
    %3669 = vmatpush.msra.mxu0 0.0
    %3670 = vmatpush.msra.mxu0 0.0
    %3671 = vmatpush.msra.mxu0 0.0
    %3672 = vmatpush.msra.mxu0 0.0
    %3673 = vmatpush.msra.mxu0 0.0
    %3674 = vmatpush.msra.mxu0 0.0
    %3675 = vmatpush.msra.mxu0 0.0
    %3676 = vmatpush.msra.mxu0 0.0
    %3677 = vmatpush.msra.mxu0 0.0
    %3678 = vmatpush.msra.mxu0 %v173
    %3679 = vmatpush.msra.mxu0 %v172
    %3680 = vmatmul.f32.gmra.mxu0 %v3658
    %v3681 = vpop.f32.mrf.mxu0
    %v3682 = vadd.f32 %v1391, %v3681
    %3683 = vmatmul.f32.gmra.mxu0 %v3660
    %v3684 = vpop.f32.mrf.mxu0
    %v3685 = vadd.f32 %v1391, %v3684
    %3686 = vmatmul.f32.gmra.mxu0 %v3662
    %v3687 = vpop.f32.mrf.mxu0
    %v3688 = vadd.f32 %v1391, %v3687
    %3689 = vdwg.mxu0
    %v3693 = vrot.slane %v3682, 2
    %v3694 = vrot.slane %v3682, 4
    %v3695 = vrot.slane %v3682, 6
    %v3696 = vrot.slane %v3685, 2
    %v3697 = vrot.slane %v3685, 4
    %v3698 = vrot.slane %v3685, 6
    %v3699 = vrot.slane %v3688, 2
    %3700 = vst [vmem:[#allocation1] ss:$4 sm:$0xff] %v3682
    %s3701 = scalar_lea.vmem [#allocation1], 1
    %3702 = vst [vmem:[%s3701] ss:$4 sm:$0xff] %v3693
    %s3703 = scalar_lea.vmem [#allocation1], 2
    %3704 = vst [vmem:[%s3703] ss:$4 sm:$0xff] %v3694
    %s3705 = scalar_lea.vmem [#allocation1], 3
    %3706 = vst [vmem:[%s3705] ss:$4 sm:$0xff] %v3695
    %s3707 = scalar_lea.vmem [#allocation1], 32
    %3708 = vst [vmem:[%s3707] ss:$4 sm:$0xff] %v3685
    %v3709 = vld.sshfl [vmem:[#allocation1] sm:$0xff pattern:$0x73625140]
    %v3710 = vld.sshfl [vmem:[#allocation1 + $0x20] sm:$0xff pattern:$0x73625140]
    %3711 = vst [vmem:[#allocation1] ss:$4 sm:$0xff] %v3696
    %3712 = vst [vmem:[%s3701] ss:$4 sm:$0xff] %v3697
    %3713 = vst [vmem:[%s3703] ss:$4 sm:$0xff] %v3698
    %3714 = vst [vmem:[%s3705] ss:$4 sm:$0xff] %v3688
    %3715 = vst [vmem:[%s3707] ss:$4 sm:$0xff] %v3699
    %v3716 = vld.sshfl [vmem:[#allocation1] sm:$0xff pattern:$0x73625140]
    %v3717 = vld.sshfl [vmem:[#allocation1 + $0x20] sm:$0xff pattern:$0x73625140]
    %v3722 = vadd.f32 %v2504, %v3709
    %v3723 = vadd.f32 %v2505, %v3710
    %v3724 = vadd.f32 %v2506, %v3716
    %v3725 = vadd.f32 %v2507, %v3717
    %v3730 = vrot.slane %v3722, 2
    %v3731 = vrot.slane %v3722, 4
    %v3732 = vrot.slane %v3722, 6
    %v3733 = vrot.slane %v3724, 2
    %v3734 = vrot.slane %v3724, 4
    %v3735 = vrot.slane %v3724, 6
    %3736 = vst [vmem:[#allocation1] ss:$4 sm:$0xff] %v3722
    %s3737 = scalar_lea.vmem [#allocation1], 1
    %3738 = vst [vmem:[%s3737] ss:$4 sm:$0xff] %v3730
    %s3739 = scalar_lea.vmem [#allocation1], 2
    %3740 = vst [vmem:[%s3739] ss:$4 sm:$0xff] %v3731
    %s3741 = scalar_lea.vmem [#allocation1], 3
    %3742 = vst [vmem:[%s3741] ss:$4 sm:$0xff] %v3732
    %s3743 = scalar_lea.vmem [#allocation1], 32
    %3744 = vst [vmem:[%s3743] ss:$4 sm:$0xff] %v3723
    %s3745 = scalar_lea.vmem [#allocation1], 33
    %3746 = vst [vmem:[%s3745] ss:$4 sm:$0xff] %v3724
    %s3747 = scalar_lea.vmem [#allocation1], 34
    %3748 = vst [vmem:[%s3747] ss:$4 sm:$0xff] %v3733
    %s3749 = scalar_lea.vmem [#allocation1], 35
    %3750 = vst [vmem:[%s3749] ss:$4 sm:$0xff] %v3734
    %v3751 = vld.sshfl [vmem:[#allocation1] sm:$0xff pattern:$0x73625140]
    %v3752 = vld.sshfl [vmem:[#allocation1 + $0x20] sm:$0xff pattern:$0x73625140]
    %3753 = vst [vmem:[#allocation1] ss:$4 sm:$0xff] %v3735
    %3754 = vst [vmem:[%s3737] ss:$4 sm:$0xff] %v3725
    %v3755 = vld.sshfl [vmem:[#allocation1] sm:$0xff pattern:$0x73625140]
    %v3756 = vsel %vm279, %v3751, 0
    %v3758 = vsel %vm279, %v3752, 0
    %v3760 = vsel %vm279, %v3755, 0
    %3762 = vmatpush.msra.mxu0 0.0
    %3763 = vmatpush.msra.mxu0 0.0
    %3764 = vmatpush.msra.mxu0 0.0
    %3765 = vmatpush.msra.mxu0 0.0
    %3766 = vmatpush.msra.mxu0 0.0
    %3767 = vmatpush.msra.mxu0 0.0
    %3768 = vmatpush.msra.mxu0 0.0
    %3769 = vmatpush.msra.mxu0 0.0
    %3770 = vmatpush.msra.mxu0 0.0
    %3771 = vmatpush.msra.mxu0 0.0
    %3772 = vmatpush.msra.mxu0 0.0
    %3773 = vmatpush.msra.mxu0 0.0
    %3774 = vmatpush.msra.mxu0 0.0
    %3775 = vmatpush.msra.mxu0 0.0
    %3776 = vmatpush.msra.mxu0 %v176
    %3777 = vmatpush.msra.mxu0 %v175
    %3778 = vmatmul.f32.gmra.mxu0 %v3756
    %v3779 = vpop.f32.mrf.mxu0
    %v3780 = vadd.f32 %v1492, %v3779
    %3781 = vmatmul.f32.gmra.mxu0 %v3758
    %v3782 = vpop.f32.mrf.mxu0
    %v3783 = vadd.f32 %v1492, %v3782
    %3784 = vmatmul.f32.gmra.mxu0 %v3760
    %v3785 = vpop.f32.mrf.mxu0
    %v3786 = vadd.f32 %v1492, %v3785
    %3787 = vdwg.mxu0
    %vm3788 = vcmp.ge.f32.partialorder %v3780, 0.0
    %vm3789 = vcmp.ge.f32.partialorder %v3783, 0.0
    %vm3790 = vcmp.ge.f32.partialorder %v3786, 0.0
    %v3791 = vmul.f32 %v3780, 0.01
    %v3792 = vmul.f32 %v3783, 0.01
    %v3793 = vmul.f32 %v3786, 0.01
    %v3794 = vsel %vm3788, %v3780, %v3791
    %v3795 = vsel %vm3789, %v3783, %v3792
    %v3796 = vsel %vm3790, %v3786, %v3793
    %v3798 = vsel %vm279, %v3794, 0
    %v3801 = vsel %vm279, %v3795, 0
    %v3804 = vsel %vm279, %v3796, 0
    %3806 = vmatpush.msra.mxu0 0.0
    %3807 = vmatpush.msra.mxu0 0.0
    %3808 = vmatpush.msra.mxu0 0.0
    %3809 = vmatpush.msra.mxu0 0.0
    %3810 = vmatpush.msra.mxu0 0.0
    %3811 = vmatpush.msra.mxu0 0.0
    %3812 = vmatpush.msra.mxu0 0.0
    %3813 = vmatpush.msra.mxu0 0.0
    %3814 = vmatpush.msra.mxu0 0.0
    %3815 = vmatpush.msra.mxu0 0.0
    %3816 = vmatpush.msra.mxu0 0.0
    %3817 = vmatpush.msra.mxu0 0.0
    %3818 = vmatpush.msra.mxu0 0.0
    %3819 = vmatpush.msra.mxu0 0.0
    %3820 = vmatpush.msra.mxu0 %v179
    %3821 = vmatpush.msra.mxu0 %v178
    %3822 = vmatmul.f32.gmra.mxu0 %v3798
    %v3823 = vpop.f32.mrf.mxu0
    %v3824 = vadd.f32 %v1556, %v3823
    %3825 = vmatmul.f32.gmra.mxu0 %v3801
    %v3826 = vpop.f32.mrf.mxu0
    %v3827 = vadd.f32 %v1556, %v3826
    %3828 = vmatmul.f32.gmra.mxu0 %v3804
    %v3829 = vpop.f32.mrf.mxu0
    %v3830 = vadd.f32 %v1556, %v3829
    %3831 = vdwg.mxu0
    %v3835 = vrot.slane %v3824, 2
    %v3836 = vrot.slane %v3824, 4
    %v3837 = vrot.slane %v3824, 6
    %v3838 = vrot.slane %v3827, 2
    %v3839 = vrot.slane %v3827, 4
    %v3840 = vrot.slane %v3827, 6
    %v3841 = vrot.slane %v3830, 2
    %3842 = vst [vmem:[#allocation1] ss:$4 sm:$0xff] %v3824
    %s3843 = scalar_lea.vmem [#allocation1], 1
    %3844 = vst [vmem:[%s3843] ss:$4 sm:$0xff] %v3835
    %s3845 = scalar_lea.vmem [#allocation1], 2
    %3846 = vst [vmem:[%s3845] ss:$4 sm:$0xff] %v3836
    %s3847 = scalar_lea.vmem [#allocation1], 3
    %3848 = vst [vmem:[%s3847] ss:$4 sm:$0xff] %v3837
    %s3849 = scalar_lea.vmem [#allocation1], 32
    %3850 = vst [vmem:[%s3849] ss:$4 sm:$0xff] %v3827
    %v3851 = vld.sshfl [vmem:[#allocation1] sm:$0xff pattern:$0x73625140]
    %v3852 = vld.sshfl [vmem:[#allocation1 + $0x20] sm:$0xff pattern:$0x73625140]
    %3853 = vst [vmem:[#allocation1] ss:$4 sm:$0xff] %v3838
    %3854 = vst [vmem:[%s3843] ss:$4 sm:$0xff] %v3839
    %3855 = vst [vmem:[%s3845] ss:$4 sm:$0xff] %v3840
    %3856 = vst [vmem:[%s3847] ss:$4 sm:$0xff] %v3830
    %3857 = vst [vmem:[%s3849] ss:$4 sm:$0xff] %v3841
    %v3858 = vld.sshfl [vmem:[#allocation1] sm:$0xff pattern:$0x73625140]
    %v3859 = vld.sshfl [vmem:[#allocation1 + $0x20] sm:$0xff pattern:$0x73625140]
    %v3864 = vadd.f32 %v3722, %v3851
    %v3865 = vadd.f32 %v3723, %v3852
    %v3866 = vadd.f32 %v3724, %v3858
    %v3867 = vadd.f32 %v3725, %v3859
    %v3872 = vrot.slane %v3864, 2
    %v3873 = vrot.slane %v3864, 4
    %v3874 = vrot.slane %v3864, 6
    %v3875 = vrot.slane %v3866, 2
    %v3876 = vrot.slane %v3866, 4
    %v3877 = vrot.slane %v3866, 6
    %3878 = vst [vmem:[#allocation1] ss:$4 sm:$0xff] %v3864
    %s3879 = scalar_lea.vmem [#allocation1], 1
    %3880 = vst [vmem:[%s3879] ss:$4 sm:$0xff] %v3872
    %s3881 = scalar_lea.vmem [#allocation1], 2
    %3882 = vst [vmem:[%s3881] ss:$4 sm:$0xff] %v3873
    %s3883 = scalar_lea.vmem [#allocation1], 3
    %3884 = vst [vmem:[%s3883] ss:$4 sm:$0xff] %v3874
    %s3885 = scalar_lea.vmem [#allocation1], 32
    %3886 = vst [vmem:[%s3885] ss:$4 sm:$0xff] %v3865
    %s3887 = scalar_lea.vmem [#allocation1], 33
    %3888 = vst [vmem:[%s3887] ss:$4 sm:$0xff] %v3866
    %s3889 = scalar_lea.vmem [#allocation1], 34
    %3890 = vst [vmem:[%s3889] ss:$4 sm:$0xff] %v3875
    %s3891 = scalar_lea.vmem [#allocation1], 35
    %3892 = vst [vmem:[%s3891] ss:$4 sm:$0xff] %v3876
    %v3893 = vld.sshfl [vmem:[#allocation1] sm:$0xff pattern:$0x73625140]
    %v3894 = vld.sshfl [vmem:[#allocation1 + $0x20] sm:$0xff pattern:$0x73625140]
    %3895 = vst [vmem:[#allocation1] ss:$4 sm:$0xff] %v3877
    %3896 = vst [vmem:[%s3879] ss:$4 sm:$0xff] %v3867
    %v3897 = vld.sshfl [vmem:[#allocation1] sm:$0xff pattern:$0x73625140]
    %v3898 = vsel %vm279, %v3893, 0
    %v3900 = vsel %vm279, %v3894, 0
    %v3902 = vsel %vm279, %v3897, 0
    %3904 = vmatpush.msra.mxu0 0.0
    %3905 = vmatpush.msra.mxu0 0.0
    %3906 = vmatpush.msra.mxu0 0.0
    %3907 = vmatpush.msra.mxu0 0.0
    %3908 = vmatpush.msra.mxu0 0.0
    %3909 = vmatpush.msra.mxu0 0.0
    %3910 = vmatpush.msra.mxu0 0.0
    %3911 = vmatpush.msra.mxu0 0.0
    %3912 = vmatpush.msra.mxu0 0.0
    %3913 = vmatpush.msra.mxu0 0.0
    %3914 = vmatpush.msra.mxu0 0.0
    %3915 = vmatpush.msra.mxu0 0.0
    %3916 = vmatpush.msra.mxu0 0.0
    %3917 = vmatpush.msra.mxu0 0.0
    %3918 = vmatpush.msra.mxu0 %v197
    %3919 = vmatpush.msra.mxu0 %v196
    %3920 = vmatmul.f32.gmra.mxu0 %v3898
    %v3921 = vpop.f32.mrf.mxu0
    %v3922 = vadd.f32 %v1950, %v3921
    %3923 = vmatmul.f32.gmra.mxu0 %v3900
    %v3924 = vpop.f32.mrf.mxu0
    %v3925 = vadd.f32 %v1950, %v3924
    %3926 = vmatmul.f32.gmra.mxu0 %v3902
    %v3927 = vpop.f32.mrf.mxu0
    %v3928 = vadd.f32 %v1950, %v3927
    %3929 = vdwg.mxu0
    %v3933 = vrot.slane %v3922, 2
    %v3934 = vrot.slane %v3922, 4
    %v3935 = vrot.slane %v3922, 6
    %v3936 = vrot.slane %v3925, 2
    %v3937 = vrot.slane %v3925, 4
    %v3938 = vrot.slane %v3925, 6
    %v3939 = vrot.slane %v3928, 2
    %3940 = vst [vmem:[#allocation1] ss:$4 sm:$0xff] %v3864
    %s3941 = scalar_lea.vmem [#allocation1], 1
    %3942 = vst [vmem:[%s3941] ss:$4 sm:$0xff] %v3872
    %s3943 = scalar_lea.vmem [#allocation1], 2
    %3944 = vst [vmem:[%s3943] ss:$4 sm:$0xff] %v3873
    %s3945 = scalar_lea.vmem [#allocation1], 3
    %3946 = vst [vmem:[%s3945] ss:$4 sm:$0xff] %v3874
    %s3947 = scalar_lea.vmem [#allocation1], 32
    %3948 = vst [vmem:[%s3947] ss:$4 sm:$0xff] %v3865
    %s3949 = scalar_lea.vmem [#allocation1], 33
    %3950 = vst [vmem:[%s3949] ss:$4 sm:$0xff] %v3866
    %s3951 = scalar_lea.vmem [#allocation1], 34
    %3952 = vst [vmem:[%s3951] ss:$4 sm:$0xff] %v3875
    %s3953 = scalar_lea.vmem [#allocation1], 35
    %3954 = vst [vmem:[%s3953] ss:$4 sm:$0xff] %v3876
    %v3955 = vld.sshfl [vmem:[#allocation1] sm:$0xff pattern:$0x73625140]
    %v3956 = vld.sshfl [vmem:[#allocation1 + $0x20] sm:$0xff pattern:$0x73625140]
    %3957 = vst [vmem:[#allocation1] ss:$4 sm:$0xff] %v3877
    %3958 = vst [vmem:[%s3941] ss:$4 sm:$0xff] %v3867
    %v3959 = vld.sshfl [vmem:[#allocation1] sm:$0xff pattern:$0x73625140]
    %v3960 = vsel %vm279, %v3955, 0
    %v3962 = vsel %vm279, %v3956, 0
    %v3964 = vsel %vm279, %v3959, 0
    %3966 = vmatpush.msra.mxu0 0.0
    %3967 = vmatpush.msra.mxu0 0.0
    %3968 = vmatpush.msra.mxu0 0.0
    %3969 = vmatpush.msra.mxu0 0.0
    %3970 = vmatpush.msra.mxu0 0.0
    %3971 = vmatpush.msra.mxu0 0.0
    %3972 = vmatpush.msra.mxu0 0.0
    %3973 = vmatpush.msra.mxu0 0.0
    %3974 = vmatpush.msra.mxu0 0.0
    %3975 = vmatpush.msra.mxu0 0.0
    %3976 = vmatpush.msra.mxu0 0.0
    %3977 = vmatpush.msra.mxu0 0.0
    %3978 = vmatpush.msra.mxu0 0.0
    %3979 = vmatpush.msra.mxu0 0.0
    %3980 = vmatpush.msra.mxu0 %v200
    %3981 = vmatpush.msra.mxu0 %v199
    %3982 = vmatmul.f32.gmra.mxu0 %v3960
    %v3983 = vpop.f32.mrf.mxu0
    %v3984 = vadd.f32 %v2015, %v3983
    %3985 = vmatmul.f32.gmra.mxu0 %v3962
    %v3986 = vpop.f32.mrf.mxu0
    %v3987 = vadd.f32 %v2015, %v3986
    %3988 = vmatmul.f32.gmra.mxu0 %v3964
    %v3989 = vpop.f32.mrf.mxu0
    %v3990 = vadd.f32 %v2015, %v3989
    %3991 = vdwg.mxu0
    %v3995 = vrot.slane %v3984, 2
    %v3996 = vrot.slane %v3984, 4
    %v3997 = vrot.slane %v3984, 6
    %v3998 = vrot.slane %v3987, 2
    %v3999 = vrot.slane %v3987, 4
    %v4000 = vrot.slane %v3987, 6
    %v4001 = vrot.slane %v3990, 2
    %4002 = vst [vmem:[#allocation1] ss:$4 sm:$0xff] %v3922
    %s4003 = scalar_lea.vmem [#allocation1], 1
    %4004 = vst [vmem:[%s4003] ss:$4 sm:$0xff] %v3933
    %s4005 = scalar_lea.vmem [#allocation1], 2
    %4006 = vst [vmem:[%s4005] ss:$4 sm:$0xff] %v3934
    %s4007 = scalar_lea.vmem [#allocation1], 3
    %4008 = vst [vmem:[%s4007] ss:$4 sm:$0xff] %v3935
    %s4009 = scalar_lea.vmem [#allocation1], 32
    %4010 = vst [vmem:[%s4009] ss:$4 sm:$0xff] %v3925
    %v4011 = vld.sshfl [vmem:[#allocation1] sm:$0xff pattern:$0x73625140]
    %v4012 = vld.sshfl [vmem:[#allocation1 + $0x20] sm:$0xff pattern:$0x73625140]
    %v4013 = vsel %vm279, %v4011, 0
    %v4015 = vsel %vm279, %v4012, 0
    %4017 = vmatpush.xpose.msra.mxu0 0.0
    %4018 = vmatpush.xpose.msra.mxu0 0.0
    %4019 = vmatpush.xpose.msra.mxu0 0.0
    %4020 = vmatpush.xpose.msra.mxu0 0.0
    %4021 = vmatpush.xpose.msra.mxu0 0.0
    %4022 = vmatpush.xpose.msra.mxu0 0.0
    %4023 = vmatpush.xpose.msra.mxu0 0.0
    %4024 = vmatpush.xpose.msra.mxu0 0.0
    %4025 = vmatpush.xpose.msra.mxu0 0.0
    %4026 = vmatpush.xpose.msra.mxu0 0.0
    %4027 = vmatpush.xpose.msra.mxu0 0.0
    %4028 = vmatpush.xpose.msra.mxu0 0.0
    %4029 = vmatpush.xpose.msra.mxu0 0.0
    %4030 = vmatpush.xpose.msra.mxu0 0.0
    %4031 = vmatpush.xpose.msra.mxu0 %v4015
    %4032 = vmatpush.xpose.msra.mxu0 %v4013
    %4033 = vmatmul.f32.gmra.mxu0 %v2111
    %v4034 = vpop.f32.mrf.mxu0
    %v4035 = vadd.f32 0.0, %v4034
    %4036 = vdwg.mxu0
    %4037 = vst [vmem:[#allocation1] ss:$4 sm:$0xff] %v3936
    %s4038 = scalar_lea.vmem [#allocation1], 1
    %4039 = vst [vmem:[%s4038] ss:$4 sm:$0xff] %v3937
    %s4040 = scalar_lea.vmem [#allocation1], 2
    %4041 = vst [vmem:[%s4040] ss:$4 sm:$0xff] %v3938
    %s4042 = scalar_lea.vmem [#allocation1], 3
    %4043 = vst [vmem:[%s4042] ss:$4 sm:$0xff] %v3928
    %s4044 = scalar_lea.vmem [#allocation1], 32
    %4045 = vst [vmem:[%s4044] ss:$4 sm:$0xff] %v3939
    %v4046 = vld.sshfl [vmem:[#allocation1] sm:$0xff pattern:$0x73625140]
    %v4047 = vld.sshfl [vmem:[#allocation1 + $0x20] sm:$0xff pattern:$0x73625140]
    %v4048 = vsel %vm279, %v4046, 0
    %v4050 = vsel %vm279, %v4047, 0
    %4052 = vmatpush.xpose.msra.mxu0 0.0
    %4053 = vmatpush.xpose.msra.mxu0 0.0
    %4054 = vmatpush.xpose.msra.mxu0 0.0
    %4055 = vmatpush.xpose.msra.mxu0 0.0
    %4056 = vmatpush.xpose.msra.mxu0 0.0
    %4057 = vmatpush.xpose.msra.mxu0 0.0
    %4058 = vmatpush.xpose.msra.mxu0 0.0
    %4059 = vmatpush.xpose.msra.mxu0 0.0
    %4060 = vmatpush.xpose.msra.mxu0 0.0
    %4061 = vmatpush.xpose.msra.mxu0 0.0
    %4062 = vmatpush.xpose.msra.mxu0 0.0
    %4063 = vmatpush.xpose.msra.mxu0 0.0
    %4064 = vmatpush.xpose.msra.mxu0 0.0
    %4065 = vmatpush.xpose.msra.mxu0 0.0
    %4066 = vmatpush.xpose.msra.mxu0 %v4050
    %4067 = vmatpush.xpose.msra.mxu0 %v4048
    %4068 = vmatmul.f32.gmra.mxu0 %v2149
    %v4069 = vpop.f32.mrf.mxu0
    %v4070 = vadd.f32 0.0, %v4069
    %4071 = vdwg.mxu0
    %v4072 = vsel %vm853, %v4035, -inf
    %4073 = vmax.xlane.f32.xlu0 %v4072
    %v4074 = vpop.xlane.xlu0 %4073
    %v4075 = vsel %vm853, %v4070, -inf
    %4076 = vmax.xlane.f32.xlu0 %v4075
    %v4077 = vpop.xlane.xlu0 %4076
    %v4078 = vsub.f32 %v4035, %v4074
    %v4079 = vsub.f32 %v4070, %v4077
    %v4080 = vmul.f32 %v4078, 1.442695
    %v4081 = vpow.pop %v4080
    %v4082 = vmul.f32 %v4079, 1.442695
    %v4083 = vpow.pop %v4082
    %v4084 = vsel %vm853, %v4081, 0.0
    %4085 = vadd.xlane.f32.xlu0 %v4084
    %v4086 = vpop.xlane.xlu0 %4085
    %v4087 = vsel %vm853, %v4083, 0.0
    %4088 = vadd.xlane.f32.xlu0 %v4087
    %v4089 = vpop.xlane.xlu0 %4088
    %v4090 = vrcp.pop %v4086
    %v4091 = vrcp.pop %v4089
    %v4092 = vmul.f32 %v4081, %v4090
    %v4093 = vmul.f32 %v4083, %v4091
    %4094 = vst [vmem:[#allocation1] ss:$4 sm:$0xff] %v3984
    %s4095 = scalar_lea.vmem [#allocation1], 1
    %4096 = vst [vmem:[%s4095] ss:$4 sm:$0xff] %v3995
    %s4097 = scalar_lea.vmem [#allocation1], 2
    %4098 = vst [vmem:[%s4097] ss:$4 sm:$0xff] %v3996
    %s4099 = scalar_lea.vmem [#allocation1], 3
    %4100 = vst [vmem:[%s4099] ss:$4 sm:$0xff] %v3997
    %s4101 = scalar_lea.vmem [#allocation1], 32
    %4102 = vst [vmem:[%s4101] ss:$4 sm:$0xff] %v3987
    %v4103 = vld.sshfl [vmem:[#allocation1] sm:$0xff pattern:$0x73625140]
    %v4104 = vld.sshfl [vmem:[#allocation1 + $0x20] sm:$0xff pattern:$0x73625140]
    %v4107 = vsel %vm853, %v4092, 0
    %v4109 = vsel %vm634, %v4104, 0
    %4111 = vmatpush.msra.mxu0 0.0
    %4112 = vmatpush.msra.mxu0 0.0
    %4113 = vmatpush.msra.mxu0 0.0
    %4114 = vmatpush.msra.mxu0 0.0
    %4115 = vmatpush.msra.mxu0 0.0
    %4116 = vmatpush.msra.mxu0 0.0
    %4117 = vmatpush.msra.mxu0 0.0
    %4118 = vmatpush.msra.mxu0 0.0
    %4119 = vmatpush.msra.mxu0 0.0
    %4120 = vmatpush.msra.mxu0 0.0
    %4121 = vmatpush.msra.mxu0 0.0
    %4122 = vmatpush.msra.mxu0 0.0
    %4123 = vmatpush.msra.mxu0 0.0
    %4124 = vmatpush.msra.mxu0 0.0
    %4125 = vmatpush.msra.mxu0 %v4109
    %4126 = vmatpush.msra.mxu0 %v4103
    %4127 = vmatmul.f32.gmra.mxu0 %v4107
    %v4128 = vpop.f32.mrf.mxu0
    %v4129 = vadd.f32 0.0, %v4128
    %4130 = vdwg.mxu0
    %4131 = vst [vmem:[#allocation1] ss:$4 sm:$0xff] %v3998
    %s4132 = scalar_lea.vmem [#allocation1], 1
    %4133 = vst [vmem:[%s4132] ss:$4 sm:$0xff] %v3999
    %s4134 = scalar_lea.vmem [#allocation1], 2
    %4135 = vst [vmem:[%s4134] ss:$4 sm:$0xff] %v4000
    %s4136 = scalar_lea.vmem [#allocation1], 3
    %4137 = vst [vmem:[%s4136] ss:$4 sm:$0xff] %v3990
    %s4138 = scalar_lea.vmem [#allocation1], 32
    %4139 = vst [vmem:[%s4138] ss:$4 sm:$0xff] %v4001
    %v4140 = vld.sshfl [vmem:[#allocation1] sm:$0xff pattern:$0x73625140]
    %v4141 = vld.sshfl [vmem:[#allocation1 + $0x20] sm:$0xff pattern:$0x73625140]
    %v4144 = vsel %vm853, %v4093, 0
    %v4146 = vsel %vm634, %v4141, 0
    %4148 = vmatpush.msra.mxu0 0.0
    %4149 = vmatpush.msra.mxu0 0.0
    %4150 = vmatpush.msra.mxu0 0.0
    %4151 = vmatpush.msra.mxu0 0.0
    %4152 = vmatpush.msra.mxu0 0.0
    %4153 = vmatpush.msra.mxu0 0.0
    %4154 = vmatpush.msra.mxu0 0.0
    %4155 = vmatpush.msra.mxu0 0.0
    %4156 = vmatpush.msra.mxu0 0.0
    %4157 = vmatpush.msra.mxu0 0.0
    %4158 = vmatpush.msra.mxu0 0.0
    %4159 = vmatpush.msra.mxu0 0.0
    %4160 = vmatpush.msra.mxu0 0.0
    %4161 = vmatpush.msra.mxu0 0.0
    %4162 = vmatpush.msra.mxu0 %v4146
    %4163 = vmatpush.msra.mxu0 %v4140
    %4164 = vmatmul.f32.gmra.mxu0 %v4144
    %v4165 = vpop.f32.mrf.mxu0
    %v4166 = vadd.f32 0.0, %v4165
    %4167 = vdwg.mxu0
    %v4168 = vmul.f32 %v4129, %v232
    %v4169 = vmul.f32 %v4166, %v232
    %v4172 = vrot.slane %v4168, 1
    %v4173 = vrot.slane %v4169, 1
    %v4176 = vadd.f32 %v4168, %v4172
    %v4177 = vadd.f32 %v4169, %v4173
    %v4178 = vrot.slane %v4168, 2
    %v4179 = vrot.slane %v4169, 2
    %v4182 = vadd.f32 %v4176, %v4178
    %v4183 = vadd.f32 %v4177, %v4179
    %v4184 = vrot.slane %v4168, 3
    %v4185 = vrot.slane %v4169, 3
    %v4188 = vadd.f32 %v4182, %v4184
    %v4189 = vadd.f32 %v4183, %v4185
    %v4190 = vrot.slane %v4168, 4
    %v4191 = vrot.slane %v4169, 4
    %v4194 = vadd.f32 %v4188, %v4190
    %v4195 = vadd.f32 %v4189, %v4191
    %v4196 = vrot.slane %v4168, 5
    %v4197 = vrot.slane %v4169, 5
    %v4200 = vadd.f32 %v4194, %v4196
    %v4201 = vadd.f32 %v4195, %v4197
    %v4202 = vrot.slane %v4168, 6
    %v4203 = vrot.slane %v4169, 6
    %v4206 = vadd.f32 %v4200, %v4202
    %v4207 = vadd.f32 %v4201, %v4203
    %v4208 = vrot.slane %v4168, 7
    %v4209 = vrot.slane %v4169, 7
    %v4212 = vadd.f32 %v4206, %v4208
    %v4213 = vadd.f32 %v4207, %v4209
    %v4216 = vrot.slane %v4213, 7
    %v4217 = vsel %vm1876, %v4216, %v4212
    %v4218 = vsel %vm279, %v4217, 0
    %4220 = vmatpush.msra.mxu0 0.0
    %4221 = vmatpush.msra.mxu0 0.0
    %4222 = vmatpush.msra.mxu0 0.0
    %4223 = vmatpush.msra.mxu0 0.0
    %4224 = vmatpush.msra.mxu0 0.0
    %4225 = vmatpush.msra.mxu0 0.0
    %4226 = vmatpush.msra.mxu0 0.0
    %4227 = vmatpush.msra.mxu0 0.0
    %4228 = vmatpush.msra.mxu0 0.0
    %4229 = vmatpush.msra.mxu0 0.0
    %4230 = vmatpush.msra.mxu0 0.0
    %4231 = vmatpush.msra.mxu0 0.0
    %4232 = vmatpush.msra.mxu0 0.0
    %4233 = vmatpush.msra.mxu0 0.0
    %4234 = vmatpush.msra.mxu0 %v203
    %4235 = vmatpush.msra.mxu0 %v202
    %4236 = vmatmul.f32.gmra.mxu0 %v4218
    %v4237 = vpop.f32.mrf.mxu0
    %v4238 = vadd.f32 %v2318, %v4237
    %4239 = vdwg.mxu0
    %v4241 = vrot.slane %v4238, 1
    %v4243 = vadd.f32 %v1903, %v4238
    %v4244 = vadd.f32 %v1904, %v4241
    %4247 = vst [vmem:[#allocation1] ss:$9 sm:$0xff] %v4243
    %s4248 = scalar_lea.vmem [#allocation1], 1
    %4249 = vst [vmem:[%s4248] ss:$9 sm:$0xff] %v4244
    %v4250 = vld [vmem:[#allocation1] sm:$0xff]
    %v4251 = vsel %vm279, %v4250, 0
    %4253 = vmatpush.msra.mxu0 0.0
    %4254 = vmatpush.msra.mxu0 0.0
    %4255 = vmatpush.msra.mxu0 0.0
    %4256 = vmatpush.msra.mxu0 0.0
    %4257 = vmatpush.msra.mxu0 0.0
    %4258 = vmatpush.msra.mxu0 0.0
    %4259 = vmatpush.msra.mxu0 0.0
    %4260 = vmatpush.msra.mxu0 0.0
    %4261 = vmatpush.msra.mxu0 0.0
    %4262 = vmatpush.msra.mxu0 0.0
    %4263 = vmatpush.msra.mxu0 0.0
    %4264 = vmatpush.msra.mxu0 0.0
    %4265 = vmatpush.msra.mxu0 0.0
    %4266 = vmatpush.msra.mxu0 0.0
    %4267 = vmatpush.msra.mxu0 %v206
    %4268 = vmatpush.msra.mxu0 %v205
    %4269 = vmatmul.f32.gmra.mxu0 %v4251
    %v4270 = vpop.f32.mrf.mxu0
    %v4271 = vadd.f32 %v2352, %v4270
    %4272 = vdwg.mxu0
    %vm4273 = vcmp.ge.f32.partialorder %v4271, 0.0
    %v4274 = vmul.f32 %v4271, 0.01
    %v4275 = vsel %vm4273, %v4271, %v4274
    %v4277 = vsel %vm279, %v4275, 0
    %4279 = vmatpush.msra.mxu0 0.0
    %4280 = vmatpush.msra.mxu0 0.0
    %4281 = vmatpush.msra.mxu0 0.0
    %4282 = vmatpush.msra.mxu0 0.0
    %4283 = vmatpush.msra.mxu0 0.0
    %4284 = vmatpush.msra.mxu0 0.0
    %4285 = vmatpush.msra.mxu0 0.0
    %4286 = vmatpush.msra.mxu0 0.0
    %4287 = vmatpush.msra.mxu0 0.0
    %4288 = vmatpush.msra.mxu0 0.0
    %4289 = vmatpush.msra.mxu0 0.0
    %4290 = vmatpush.msra.mxu0 0.0
    %4291 = vmatpush.msra.mxu0 0.0
    %4292 = vmatpush.msra.mxu0 0.0
    %4293 = vmatpush.msra.mxu0 %v209
    %4294 = vmatpush.msra.mxu0 %v208
    %4295 = vmatmul.f32.gmra.mxu0 %v4277
    %v4296 = vpop.f32.mrf.mxu0
    %v4297 = vadd.f32 %v2386, %v4296
    %4298 = vdwg.mxu0
    %v4300 = vrot.slane %v4297, 1
    %v4302 = vadd.f32 %v4243, %v4297
    %v4303 = vadd.f32 %v4244, %v4300
    %4306 = vst [vmem:[#allocation1] ss:$9 sm:$0xff] %v4302
    %s4307 = scalar_lea.vmem [#allocation1], 1
    %4308 = vst [vmem:[%s4307] ss:$9 sm:$0xff] %v4303
    %v4309 = vld [vmem:[#allocation1] sm:$0xff]
    %v4310 = vsel %vm279, %v4309, 0
    %4312 = vmatpush.msra.mxu0 0.0
    %4313 = vmatpush.msra.mxu0 0.0
    %4314 = vmatpush.msra.mxu0 0.0
    %4315 = vmatpush.msra.mxu0 0.0
    %4316 = vmatpush.msra.mxu0 0.0
    %4317 = vmatpush.msra.mxu0 0.0
    %4318 = vmatpush.msra.mxu0 0.0
    %4319 = vmatpush.msra.mxu0 0.0
    %4320 = vmatpush.msra.mxu0 0.0
    %4321 = vmatpush.msra.mxu0 0.0
    %4322 = vmatpush.msra.mxu0 0.0
    %4323 = vmatpush.msra.mxu0 0.0
    %4324 = vmatpush.msra.mxu0 0.0
    %4325 = vmatpush.msra.mxu0 0.0
    %4326 = vmatpush.msra.mxu0 %v212
    %4327 = vmatpush.msra.mxu0 %v211
    %4328 = vmatmul.f32.gmra.mxu0 %v4310
    %v4329 = vpop.f32.mrf.mxu0
    %v4330 = vadd.f32 %v2417, %v4329
    %4331 = vdwg.mxu0
    %v4332 = vsub.f32 0.0, %v4330
    %v4333 = vmul.f32 %v4332, 1.442695
    %v4334 = vpow.pop %v4333
    %v4335 = vadd.f32 %v4334, 1.0
    %v4336 = vrcp.pop %v4335
    %v4337 = vmul.f32 %v4335, %v4336
    %v4338 = vsub.f32 1.0, %v4337
    %v4339 = vmul.f32 %v4336, %v4338
    %v4340 = vadd.f32 %v4336, %v4339
    %vm4341 = vweird.f32 %v4335
    %vm4342 = vweird.f32 %v4336
    %vm4343 = vmor %vm4341, %vm4342
    %v4344 = vsel %vm4343, %v4336, %v4340
    %v4345 = vand.u32 2147483647, %v4335
    %vm4346 = vcmp.eq.f32.partialorder %v4345, 8.507059e+37
    %v4347 = vand.u32 %v4335, 2147483648
    %v4348 = vor.u32 1.1754944e-38, %v4347
    %v4349 = vsel %vm4346, %v4348, %v4344
    %v4350 = vmul.f32 1.0, %v4349
    %v4352 = vrot.slane %v4350, 1
    %vm4354 = vcmask 57344
    %4355 = vst.msk [vmem:[#allocation2] sm:$0x1] %vm4354, %v4350
    %4356 = vst.msk [vmem:[#allocation2 + $0x1] sm:$0x1] %vm4354, %v4352
    // Predicated region
    $region158: #{tranad_adversarial_forward.1} parent=1 // pred_check
      _
    $region159: #{tranad_adversarial_forward.1} parent=1 // pred_check_branch
      %4358 = sbr.rel (0) target = $region161
    $region160: #{tranad_adversarial_forward.1} parent=1 // pred_region
      %4360 = vsyncadd [#allocation3], 0
      %s4361 = sshll.u32 [#allocation2], 4
      %s4362 = int_to_ptr.vmem [resolvable:$true] %s4361
      %s4363 = sshll.u32 %s79, 4
      %s4364 = int_to_ptr.hbm [resolvable:$true] %s4363
      %4369 = dma.vmem_to_hbm [thread:$0]  %s4362, 32, %s4364, [#allocation3], 16, 16, 1
    $region161: #{tranad_adversarial_forward.1} parent=1 // pred_fallthru
      _
    // Predicated region
    $region162: #{tranad_adversarial_forward.1} parent=1 // pred_check
      _
    $region163: #{tranad_adversarial_forward.1} parent=1 // pred_check_branch
      %4371 = sbr.rel (0) target = $region165
    $region164: #{tranad_adversarial_forward.1} parent=1 // pred_region
      %4373 = dma.done [#allocation3], 32
    $region165: #{tranad_adversarial_forward.1} parent=1 // pred_fallthru
      _
    %4374 = vsyncpa [#allocation3], 1

</llo_original>
